<compile_context>
chip_gen: v5e
topology: v5e:2x2
jax: 0.10.0
libtpu: 0.0.40
codegen_flags: <defaults>
</compile_context>

<pallas_src>
import functools

import jax
import jax.numpy as jnp
from jax import lax
from jax.experimental import pallas as pl
from jax.experimental.pallas import tpu as pltpu


# ----------------------- JAX glue: DF detector ---------------------------------

def _bilinear_resize(x, out_h, out_w):
    """General F.interpolate(mode='bilinear', align_corners=False).  Fallback only
    (odd H or W); the even case uses the closed forms below (no gathers)."""
    B, C, H, W = x.shape

    def coords(out_size, in_size):
        scale = in_size / out_size
        src = (jnp.arange(out_size, dtype=jnp.float32) + 0.5) * scale - 0.5
        src = jnp.maximum(src, 0.0)
        i0 = jnp.clip(jnp.floor(src).astype(jnp.int32), 0, in_size - 1)
        i1 = jnp.minimum(i0 + 1, in_size - 1)
        t = src - i0.astype(jnp.float32)
        return i0, i1, t

    h0, h1, th = coords(out_h, H)
    w0, w1, tw = coords(out_w, W)
    top = x[:, :, h0, :]
    bot = x[:, :, h1, :]
    rows = top * (1.0 - th)[None, None, :, None] + bot * th[None, None, :, None]
    left = rows[:, :, :, w0]
    right = rows[:, :, :, w1]
    return left * (1.0 - tw)[None, None, None, :] + right * tw[None, None, None, :]


def _upsample2x_axis(a, axis):
    """Closed-form bilinear 2x upsample (align_corners=False) along `axis`:
    even outputs = 0.25*prev + 0.75*cur, odd outputs = 0.75*cur + 0.25*next."""
    n = a.shape[axis]
    sl = functools.partial(lax.slice_in_dim, a, axis=axis)
    prev = jnp.concatenate([sl(0, 1), sl(0, n - 1)], axis=axis)
    nxt = jnp.concatenate([sl(1, n), sl(n - 1, n)], axis=axis)
    even = 0.25 * prev + 0.75 * a
    odd = 0.75 * a + 0.25 * nxt
    out = jnp.stack([even, odd], axis=axis + 1)
    shape = list(a.shape)
    shape[axis] = 2 * n
    return out.reshape(shape)


def df_detector(x, min_connections, max_connections):
    """DFDetector.forward (detail richness -> per-pixel connection counts)."""
    B, C, H, W = x.shape
    if H % 2 == 0 and W % 2 == 0:
        # scale_factor=0.5 bilinear == exact 2x2 average pooling
        x_down = x.reshape(B, C, H // 2, 2, W // 2, 2).mean(axis=(3, 5))
        x_down_up = _upsample2x_axis(_upsample2x_axis(x_down, 2), 3)
    else:
        x_down = _bilinear_resize(x, H // 2, W // 2)
        x_down_up = _bilinear_resize(x_down, H, W)
    df_values = jnp.sum(jnp.abs(x - x_down_up), axis=1, keepdims=True)      # [B,1,H,W]
    flat = df_values.reshape(B, -1)
    df_min = flat.min(axis=1).reshape(B, 1, 1, 1)
    df_max = flat.max(axis=1).reshape(B, 1, 1, 1)
    df_norm = (df_values - df_min) / (df_max - df_min + 1e-8)
    df_power = df_norm ** 4
    threshold = 0.9
    mask = (df_power > threshold).astype(jnp.float32)
    conn_range = max_connections - min_connections
    above = jnp.round((df_power - threshold) / (1.0 - threshold + 1e-8) * conn_range)
    above = jnp.maximum(above, 0.0) * mask
    connection_counts = min_connections + above
    return df_values, connection_counts


# --------------------- JAX glue: boundary-row side stream ----------------------

def _boundary_rows(x, tile_h, pad):
    """[B,C,H,W] -> [B,num_t,C,2*pad,W]: the `pad` rows just above / below each row
    tile (zeros at the image border).  Replaces a full halo copy in HBM."""
    B, C, H, W = x.shape
    num_t = H // tile_h
    xr = x.reshape(B, C, num_t, tile_h, W)
    zrow = jnp.zeros((B, C, 1, pad, W), x.dtype)
    tops = jnp.concatenate([zrow, xr[:, :, :-1, tile_h - pad:, :]], axis=2)
    bots = jnp.concatenate([xr[:, :, 1:, :pad, :], zrow], axis=2)
    halo = jnp.concatenate([tops, bots], axis=3)              # [B,C,num_t,2p,W]
    return jnp.transpose(halo, (0, 2, 1, 3, 4))               # [B,num_t,C,2p,W]


# --------------------- tile choice / VMEM budgeting ----------------------------

def _est_vmem_bytes(tile_h, C, W, pad, elem):
    """Per-grid-step VMEM: double-buffered streams + in-kernel temporaries."""
    thW = tile_h * W
    thp = (tile_h + 2 * pad) * W
    return int(
        2 * C * thW * elem            # x input blocks (double buffered)
        + 2 * C * thW * 4             # output blocks (double buffered)
        + 2 * C * 2 * pad * W * elem  # boundary-row blocks
        + 3 * C * thp * 4             # rows + 2 kw-shifted copies
        + 5 * C * thW * 4             # E, hid(2C), ffn, residual slack
        + 40 * thW * 4                # sims / weights / rank / norm planes, counts
    )


def _choose_tile_h(B, H, C, W, pad, elem, budget):
    """Largest row tile (multiple of 8, divides H, lane-dense output) that fits the
    budget, preferring >= 4 grid steps so both v7x TensorCores stay busy."""
    cands = [t for t in range(8, H + 1, 8)
             if H % t == 0 and (t * W) % 128 == 0]
    cands.append(H)                                           # num_t == 1 always legal
    cands = sorted(set(cands))
    fitting = [t for t in cands if _est_vmem_bytes(t, C, W, pad, elem) <= budget]
    if not fitting:
        # TODO(synk): extremely large single-tile images may exceed VMEM here.
        fitting = [min(cands)]
    for min_steps in (4, 2):
        good = [t for t in fitting if B * (H // t) >= min_steps]
        if good:
            return max(good)
    return max(fitting)


def _vmem_capacity_bytes():
    try:
        return int(pltpu.get_tpu_info().vmem_capacity_bytes)
    except Exception:
        return 64 << 20               # conservative (v7x-sized) default


# ------------------------------- Pallas kernel ---------------------------------

def _ipg_kernel(x_ref, hr_ref, k_ref, gns_ref, gno_ref,
                w1_ref, b1_ref, w2_ref, b2_ref, out_ref,
                *, ws, pad, tile_h, width, C, cblk):
    f32 = jnp.float32
    th, W = tile_h, width
    ws2 = ws * ws

    # --- reassemble padded neighbourhood rows in VMEM ---------------------------
    main = x_ref[0].astype(f32)                               # [C, th, W]
    halo = hr_ref[0, 0].astype(f32)                           # [C, 2*pad, W]
    rows = jnp.concatenate([halo[:, :pad, :], main, halo[:, pad:, :]], axis=1)

    # --- the ws kw lane-shifted planes, built ONCE, reused by both passes -------
    xk = []
    for kw in range(ws):
        off = kw - pad
        if off < 0:
            xk.append(jnp.concatenate(
                [jnp.zeros((C, th + 2 * pad, -off), f32), rows[:, :, :W + off]], axis=2))
        elif off == 0:
            xk.append(rows)
        else:
            xk.append(jnp.concatenate(
                [rows[:, :, off:], jnp.zeros((C, th + 2 * pad, off), f32)], axis=2))

    # --- shared per-pixel inverse L2 norm over channels (EUP rsqrt) -------------
    inv_k = []
    for kw in range(ws):
        ss = jnp.sum(xk[kw] * xk[kw], axis=0)                 # [th+2p, W]
        inv_k.append(lax.rsqrt(jnp.maximum(ss, 1e-24)))       # == 1/max(||.||,1e-12)

    center = xk[pad][:, pad:pad + th, :]                      # [C, th, W]
    inv_c = inv_k[pad][pad:pad + th, :]

    # --- cosine similarity of each pixel to its ws*ws neighbourhood -------------
    sims = []
    for kh in range(ws):
        for kw in range(ws):
            nb = xk[kw][:, kh:kh + th, :]
            dot = jnp.sum(center * nb, axis=0)                # [th, W]
            sims.append(dot * inv_c * inv_k[kw][kh:kh + th, :])

    # --- dynamic-k top-k: fused single-pass rank mask (ties -> lower index) -----
    kf = k_ref[0]                                             # [th, W] f32, pre-clamped
    wts = []
    denom = jnp.zeros((th, W), f32)
    for j in range(ws2):
        sj = sims[j]
        rank = jnp.zeros((th, W), f32)
        for i in range(ws2):
            if i == j:
                continue
            beat = (sims[i] >= sj) if i < j else (sims[i] > sj)
            rank = rank + jnp.where(beat, 1.0, 0.0)
        wj = jnp.where(rank < kf, jnp.exp(sj), 0.0)
        wts.append(wj)
        denom = denom + wj
    inv_den = 1.0 / (denom + 1e-8)                            # exact (matches reference)
    wnorm = [w * inv_den for w in wts]

    # --- weighted aggregation + GroupNorm affine + residual (channel-blocked),
    #     emitted as a lane-dense [C, th*W] slab (slice + lane-concat only) -------
    gns = gns_ref[0].astype(f32)                              # [C,1,1]
    gno = gno_ref[0].astype(f32)
    chunks = []
    for c0 in range(0, C, cblk):
        c1 = min(c0 + cblk, C)
        acc = None
        j = 0
        for kh in range(ws):
            for kw in range(ws):
                contrib = xk[kw][c0:c1, kh:kh + th, :] * wnorm[j][None]
                acc = contrib if acc is None else acc + contrib
                j += 1
        enh = acc + center[c0:c1] * gns[c0:c1] + gno[c0:c1]   # [cb, th, W]
        if th == 1:
            chunks.append(enh[:, 0, :])
        else:
            chunks.append(jnp.concatenate([enh[:, r, :] for r in range(th)], axis=-1))
    E = chunks[0] if len(chunks) == 1 else jnp.concatenate(chunks, axis=0)   # [C, th*W]

    # --- conv_ffn: 1x1 conv -> ReLU -> 1x1 conv on the MXU (bf16 in, f32 acc) ---
    hid = jnp.dot(w1_ref[...], E.astype(jnp.bfloat16),
                  preferred_element_type=f32) + b1_ref[...]   # [2C, th*W]
    hid = jnp.maximum(hid, 0.0)
    ffn = jnp.dot(w2_ref[...], hid.astype(jnp.bfloat16),
                  preferred_element_type=f32) + b2_ref[...]   # [C, th*W]

    out_ref[0] = (E + ffn).astype(out_ref.dtype)              # lane-dense store


# --------------------------------- wrapper -------------------------------------

def optimized_ipg_layer(x, params, *, window_size=3, min_connections=1,
                        max_connections=16, dma_dtype=jnp.float32):
    # dma_dtype=jnp.bfloat16 halves the dominant input stream (kernel computes in f32);
    # default f32 for exactness vs the PyTorch reference.
    x = x.astype(jnp.float32)
    B, C, H, W = x.shape
    ws = window_size
    pad = ws // 2
    ws2 = ws * ws

    # same num_groups rule as the PyTorch __init__
    num_groups = 1
    for i in range(min(32, C), 0, -1):
        if C % i == 0:
            num_groups = i
            break
    group_size = C // num_groups

    # ---- DF detector -> per-pixel k (clamped, float, ready for the kernel) ----
    _, counts = df_detector(x, min_connections, max_connections)
    kf = jnp.minimum(counts, float(ws2)).reshape(B, H, W).astype(jnp.float32)

    # ---- GroupNorm over full H*W folded into per-(batch,channel) scale/shift ----
    gamma = params["gn_weight"].reshape(C).astype(jnp.float32)
    beta = params["gn_bias"].reshape(C).astype(jnp.float32)
    xg = x.reshape(B, num_groups, group_size * H * W)
    mean_g = jnp.mean(xg, axis=2)
    var_g = jnp.mean((xg - mean_g[:, :, None]) ** 2, axis=2)
    inv_g = lax.rsqrt(var_g + 1e-5)
    inv_ch = jnp.repeat(inv_g, group_size, axis=1)            # [B, C]
    mean_ch = jnp.repeat(mean_g, group_size, axis=1)
    gn_scale = (gamma[None, :] * inv_ch).reshape(B, C, 1, 1)
    gn_shift = (beta[None, :] - gamma[None, :] * inv_ch * mean_ch).reshape(B, C, 1, 1)

    # ---- generation-aware tile / VMEM budget ----
    elem = jnp.dtype(dma_dtype).itemsize
    vmem_cap = _vmem_capacity_bytes()
    if vmem_cap >= (100 << 20):          # v5e / v6e: 128 MiB VMEM
        tile_budget, vmem_ceiling = 8 << 20, 96 << 20
    else:                                # v7x: 64 MiB VMEM per TensorCore
        tile_budget, vmem_ceiling = int(2.5 * (1 << 20)), 38 << 20
    tile_h = _choose_tile_h(B, H, C, W, pad, elem, tile_budget)
    num_t = H // tile_h
    est = _est_vmem_bytes(tile_h, C, W, pad, elem)
    wbytes = 2 * (2 * (2 * C * C) * 2 + 8 * 3 * C)
    vmem_limit = int(min(vmem_ceiling, max(16 << 20, est + wbytes + (4 << 20))))

    # ---- inputs: x streamed as-is + tiny boundary-row side stream ----
    x_in = x.astype(dma_dtype)
    hrows = _boundary_rows(x_in, tile_h, pad)                 # [B,num_t,C,2p,W]

    # ---- FFN parameters (bf16 weights for the MXU, f32 biases) ----
    w1 = params["w1"].reshape(2 * C, C).astype(jnp.bfloat16)
    b1 = params["b1"].reshape(2 * C, 1).astype(jnp.float32)
    w2 = params["w2"].reshape(C, 2 * C).astype(jnp.bfloat16)
    b2 = params["b2"].reshape(C, 1).astype(jnp.float32)

    # ---- grid: both axes parallel; larger extent first (v7x megacore split) ----
    if num_t >= B:
        grid = (num_t, B)

        def _bt(g0, g1):
            return g1, g0
    else:
        grid = (B, num_t)

        def _bt(g0, g1):
            return g0, g1

    def x_map(g0, g1):
        b, t = _bt(g0, g1)
        return (b, 0, t, 0)

    def hr_map(g0, g1):
        b, t = _bt(g0, g1)
        return (b, t, 0, 0, 0)

    def k_map(g0, g1):
        b, t = _bt(g0, g1)
        return (b, t, 0)

    def gn_map(g0, g1):
        b, t = _bt(g0, g1)
        return (b, 0, 0, 0)

    def out_map(g0, g1):
        b, t = _bt(g0, g1)
        return (b, 0, t)

    def const_map(ndim):
        return lambda g0, g1, _n=ndim: (0,) * _n

    kernel = functools.partial(_ipg_kernel, ws=ws, pad=pad, tile_h=tile_h,
                               width=W, C=C, cblk=min(C, 8))

    thW = tile_h * W
    flops_px = 2 * ws2 * C + C + 2 * ws2 * ws2 + 2 * ws2 * C + 8 * C * C
    cost = pl.CostEstimate(
        flops=int(B * H * W * flops_px),
        transcendentals=int(B * H * W * (ws2 + 3)),
        bytes_accessed=int(x_in.size * elem + B * C * H * W * 4
                           + kf.size * 4 + hrows.size * elem),
    )

    out2d = pl.pallas_call(
        kernel,
        out_shape=jax.ShapeDtypeStruct((B, C, H * W), jnp.float32),
        grid=grid,
        in_specs=[
            pl.BlockSpec((1, C, tile_h, W), x_map),           # x row tile
            pl.BlockSpec((1, 1, C, 2 * pad, W), hr_map),      # boundary rows
            pl.BlockSpec((1, tile_h, W), k_map),              # per-pixel k (float)
            pl.BlockSpec((1, C, 1, 1), gn_map),               # GroupNorm scale
            pl.BlockSpec((1, C, 1, 1), gn_map),               # GroupNorm shift
            pl.BlockSpec((2 * C, C), const_map(2)),           # w1 (bf16)
            pl.BlockSpec((2 * C, 1), const_map(2)),           # b1
            pl.BlockSpec((C, 2 * C), const_map(2)),           # w2 (bf16)
            pl.BlockSpec((C, 1), const_map(2)),               # b2
        ],
        out_specs=pl.BlockSpec((1, C, thW), out_map),         # lane-dense output slab
        compiler_params=pltpu.CompilerParams(
            dimension_semantics=("parallel", "parallel"),
            vmem_limit_bytes=vmem_limit),
        cost_estimate=cost,
    )(x_in, hrows, kf, gn_scale, gn_shift, w1, b1, w2, b2)

    return out2d.reshape(B, C, H, W)


# ----------------------------------- main ---------------------------------------

if __name__ == "__main__":
    B, C, H, W = 2, 4, 16, 16
    key = jax.random.PRNGKey(0)
    kx, k1, k2, k3, k4, k5, k6 = jax.random.split(key, 7)

    x = jax.random.normal(kx, (B, C, H, W), dtype=jnp.float32)

    # deterministic synthetic parameters (shapes from the module __init__)
    params = {
        "gn_weight": jnp.ones((C,), jnp.float32) + 0.1 * jax.random.normal(k1, (C,), jnp.float32),
        "gn_bias": 0.1 * jax.random.normal(k2, (C,), jnp.float32),
        "w1": 0.1 * jax.random.normal(k3, (2 * C, C), jnp.float32),   # Conv2d(C, 2C, 1)
        "b1": 0.1 * jax.random.normal(k4, (2 * C,), jnp.float32),
        "w2": 0.1 * jax.random.normal(k5, (C, 2 * C), jnp.float32),   # Conv2d(2C, C, 1)
        "b2": 0.1 * jax.random.normal(k6, (C,), jnp.float32),
    }

    fwd = jax.jit(functools.partial(optimized_ipg_layer, window_size=3,
                                    min_connections=1, max_connections=16))
    out = fwd(x, params)
    jax.block_until_ready(out)
    assert out.shape == (B, C, H, W) and out.dtype == jnp.float32
    assert bool(jnp.isfinite(out).all())
    print("KERNEL_OK")
</pallas_src>

<mosaic_0001>
module attributes {stable_mosaic.version = 11 : i64} {
  func.func @_ipg_kernel(%arg0: i32, %arg1: i32, %arg2: memref<1x4x8x16xf32, #tpu.memory_space<vmem>>, %arg3: memref<1x1x4x2x16xf32, #tpu.memory_space<vmem>>, %arg4: memref<1x8x16xf32, #tpu.memory_space<vmem>>, %arg5: memref<1x4x1x1xf32, #tpu.memory_space<vmem>>, %arg6: memref<1x4x1x1xf32, #tpu.memory_space<vmem>>, %arg7: memref<8x4xbf16, #tpu.memory_space<vmem>>, %arg8: memref<8x1xf32, #tpu.memory_space<vmem>>, %arg9: memref<4x8xbf16, #tpu.memory_space<vmem>>, %arg10: memref<4x1xf32, #tpu.memory_space<vmem>>, %arg11: memref<1x4x128xf32, #tpu.memory_space<vmem>>) attributes {dimension_semantics = [#tpu.dimension_semantics<parallel>, #tpu.dimension_semantics<parallel>], iteration_bounds = array<i64: 2, 2>, scalar_prefetch = 0 : i64, scratch_operands = 0 : i64, tpu.core_type = #tpu.core_type<tc>, window_params = [{transform_indices = @transform_0, window_bounds = array<i64: 1, 4, 8, 16>}, {transform_indices = @transform_1, window_bounds = array<i64: 1, 1, 4, 2, 16>}, {transform_indices = @transform_2, window_bounds = array<i64: 1, 8, 16>}, {transform_indices = @transform_3, window_bounds = array<i64: 1, 4, 1, 1>}, {transform_indices = @transform_4, window_bounds = array<i64: 1, 4, 1, 1>}, {pipeline_mode = #tpu.pipeline_mode<synchronous>, transform_indices = @transform_5, window_bounds = array<i64: 8, 4>}, {pipeline_mode = #tpu.pipeline_mode<synchronous>, transform_indices = @transform_6, window_bounds = array<i64: 8, 1>}, {pipeline_mode = #tpu.pipeline_mode<synchronous>, transform_indices = @transform_7, window_bounds = array<i64: 4, 8>}, {pipeline_mode = #tpu.pipeline_mode<synchronous>, transform_indices = @transform_8, window_bounds = array<i64: 4, 1>}, {transform_indices = @transform_9, window_bounds = array<i64: 1, 4, 128>}]} {
    %c0 = arith.constant 0 : index
    %c0_0 = arith.constant 0 : index
    %c0_1 = arith.constant 0 : index
    %c0_2 = arith.constant 0 : index
    %0 = vector.load %arg2[%c0, %c0_0, %c0_1, %c0_2] : memref<1x4x8x16xf32, #tpu.memory_space<vmem>>, vector<1x4x8x16xf32>
    %1 = vector.shape_cast %0 : vector<1x4x8x16xf32> to vector<4x8x16xf32>
    %c0_3 = arith.constant 0 : index
    %c0_4 = arith.constant 0 : index
    %c0_5 = arith.constant 0 : index
    %c0_6 = arith.constant 0 : index
    %c0_7 = arith.constant 0 : index
    %2 = vector.load %arg3[%c0_3, %c0_4, %c0_5, %c0_6, %c0_7] : memref<1x1x4x2x16xf32, #tpu.memory_space<vmem>>, vector<1x1x4x2x16xf32>
    %3 = vector.shape_cast %2 : vector<1x1x4x2x16xf32> to vector<4x2x16xf32>
    %4 = vector.extract_strided_slice %3 {offsets = [0, 0, 0], sizes = [4, 1, 16], strides = [1, 1, 1]} : vector<4x2x16xf32> to vector<4x1x16xf32>
    %5 = vector.extract_strided_slice %3 {offsets = [0, 1, 0], sizes = [4, 1, 16], strides = [1, 1, 1]} : vector<4x2x16xf32> to vector<4x1x16xf32>
    %6 = tpu.concatenate %4, %1, %5 in 1 : vector<4x1x16xf32>, vector<4x8x16xf32>, vector<4x1x16xf32> -> vector<4x10x16xf32>
    %cst = arith.constant 0.000000e+00 : f32
    %7 = vector.broadcast %cst : f32 to vector<4x10x1xf32>
    %8 = vector.extract_strided_slice %6 {offsets = [0, 0, 0], sizes = [4, 10, 15], strides = [1, 1, 1]} : vector<4x10x16xf32> to vector<4x10x15xf32>
    %9 = tpu.concatenate %7, %8 in 2 : vector<4x10x1xf32>, vector<4x10x15xf32> -> vector<4x10x16xf32>
    %10 = vector.extract_strided_slice %6 {offsets = [0, 0, 1], sizes = [4, 10, 15], strides = [1, 1, 1]} : vector<4x10x16xf32> to vector<4x10x15xf32>
    %cst_8 = arith.constant 0.000000e+00 : f32
    %11 = vector.broadcast %cst_8 : f32 to vector<4x10x1xf32>
    %12 = tpu.concatenate %10, %11 in 2 : vector<4x10x15xf32>, vector<4x10x1xf32> -> vector<4x10x16xf32>
    %13 = arith.mulf %9, %9 : vector<4x10x16xf32>
    %cst_9 = arith.constant dense<0.000000e+00> : vector<10x16xf32>
    %14 = vector.multi_reduction <add>, %13, %cst_9 [0] : vector<4x10x16xf32> to vector<10x16xf32>
    %cst_10 = arith.constant 1.000000e-24 : f32
    %15 = vector.broadcast %cst_10 : f32 to vector<10x16xf32>
    %16 = arith.maximumf %14, %15 : vector<10x16xf32>
    %17 = math.rsqrt %16 : vector<10x16xf32>
    %18 = arith.mulf %6, %6 : vector<4x10x16xf32>
    %cst_11 = arith.constant dense<0.000000e+00> : vector<10x16xf32>
    %19 = vector.multi_reduction <add>, %18, %cst_11 [0] : vector<4x10x16xf32> to vector<10x16xf32>
    %cst_12 = arith.constant 1.000000e-24 : f32
    %20 = vector.broadcast %cst_12 : f32 to vector<10x16xf32>
    %21 = arith.maximumf %19, %20 : vector<10x16xf32>
    %22 = math.rsqrt %21 : vector<10x16xf32>
    %23 = arith.mulf %12, %12 : vector<4x10x16xf32>
    %cst_13 = arith.constant dense<0.000000e+00> : vector<10x16xf32>
    %24 = vector.multi_reduction <add>, %23, %cst_13 [0] : vector<4x10x16xf32> to vector<10x16xf32>
    %cst_14 = arith.constant 1.000000e-24 : f32
    %25 = vector.broadcast %cst_14 : f32 to vector<10x16xf32>
    %26 = arith.maximumf %24, %25 : vector<10x16xf32>
    %27 = math.rsqrt %26 : vector<10x16xf32>
    %28 = vector.extract_strided_slice %6 {offsets = [0, 1, 0], sizes = [4, 8, 16], strides = [1, 1, 1]} : vector<4x10x16xf32> to vector<4x8x16xf32>
    %29 = vector.extract_strided_slice %22 {offsets = [1, 0], sizes = [8, 16], strides = [1, 1]} : vector<10x16xf32> to vector<8x16xf32>
    %30 = vector.extract_strided_slice %9 {offsets = [0, 0, 0], sizes = [4, 8, 16], strides = [1, 1, 1]} : vector<4x10x16xf32> to vector<4x8x16xf32>
    %31 = arith.mulf %28, %30 : vector<4x8x16xf32>
    %cst_15 = arith.constant dense<0.000000e+00> : vector<8x16xf32>
    %32 = vector.multi_reduction <add>, %31, %cst_15 [0] : vector<4x8x16xf32> to vector<8x16xf32>
    %33 = arith.mulf %32, %29 : vector<8x16xf32>
    %34 = vector.extract_strided_slice %17 {offsets = [0, 0], sizes = [8, 16], strides = [1, 1]} : vector<10x16xf32> to vector<8x16xf32>
    %35 = arith.mulf %33, %34 : vector<8x16xf32>
    %36 = vector.extract_strided_slice %6 {offsets = [0, 0, 0], sizes = [4, 8, 16], strides = [1, 1, 1]} : vector<4x10x16xf32> to vector<4x8x16xf32>
    %37 = arith.mulf %28, %36 : vector<4x8x16xf32>
    %cst_16 = arith.constant dense<0.000000e+00> : vector<8x16xf32>
    %38 = vector.multi_reduction <add>, %37, %cst_16 [0] : vector<4x8x16xf32> to vector<8x16xf32>
    %39 = arith.mulf %38, %29 : vector<8x16xf32>
    %40 = vector.extract_strided_slice %22 {offsets = [0, 0], sizes = [8, 16], strides = [1, 1]} : vector<10x16xf32> to vector<8x16xf32>
    %41 = arith.mulf %39, %40 : vector<8x16xf32>
    %42 = vector.extract_strided_slice %12 {offsets = [0, 0, 0], sizes = [4, 8, 16], strides = [1, 1, 1]} : vector<4x10x16xf32> to vector<4x8x16xf32>
    %43 = arith.mulf %28, %42 : vector<4x8x16xf32>
    %cst_17 = arith.constant dense<0.000000e+00> : vector<8x16xf32>
    %44 = vector.multi_reduction <add>, %43, %cst_17 [0] : vector<4x8x16xf32> to vector<8x16xf32>
    %45 = arith.mulf %44, %29 : vector<8x16xf32>
    %46 = vector.extract_strided_slice %27 {offsets = [0, 0], sizes = [8, 16], strides = [1, 1]} : vector<10x16xf32> to vector<8x16xf32>
    %47 = arith.mulf %45, %46 : vector<8x16xf32>
    %48 = vector.extract_strided_slice %9 {offsets = [0, 1, 0], sizes = [4, 8, 16], strides = [1, 1, 1]} : vector<4x10x16xf32> to vector<4x8x16xf32>
    %49 = arith.mulf %28, %48 : vector<4x8x16xf32>
    %cst_18 = arith.constant dense<0.000000e+00> : vector<8x16xf32>
    %50 = vector.multi_reduction <add>, %49, %cst_18 [0] : vector<4x8x16xf32> to vector<8x16xf32>
    %51 = arith.mulf %50, %29 : vector<8x16xf32>
    %52 = vector.extract_strided_slice %17 {offsets = [1, 0], sizes = [8, 16], strides = [1, 1]} : vector<10x16xf32> to vector<8x16xf32>
    %53 = arith.mulf %51, %52 : vector<8x16xf32>
    %54 = vector.extract_strided_slice %6 {offsets = [0, 1, 0], sizes = [4, 8, 16], strides = [1, 1, 1]} : vector<4x10x16xf32> to vector<4x8x16xf32>
    %55 = arith.mulf %28, %54 : vector<4x8x16xf32>
    %cst_19 = arith.constant dense<0.000000e+00> : vector<8x16xf32>
    %56 = vector.multi_reduction <add>, %55, %cst_19 [0] : vector<4x8x16xf32> to vector<8x16xf32>
    %57 = arith.mulf %56, %29 : vector<8x16xf32>
    %58 = vector.extract_strided_slice %22 {offsets = [1, 0], sizes = [8, 16], strides = [1, 1]} : vector<10x16xf32> to vector<8x16xf32>
    %59 = arith.mulf %57, %58 : vector<8x16xf32>
    %60 = vector.extract_strided_slice %12 {offsets = [0, 1, 0], sizes = [4, 8, 16], strides = [1, 1, 1]} : vector<4x10x16xf32> to vector<4x8x16xf32>
    %61 = arith.mulf %28, %60 : vector<4x8x16xf32>
    %cst_20 = arith.constant dense<0.000000e+00> : vector<8x16xf32>
    %62 = vector.multi_reduction <add>, %61, %cst_20 [0] : vector<4x8x16xf32> to vector<8x16xf32>
    %63 = arith.mulf %62, %29 : vector<8x16xf32>
    %64 = vector.extract_strided_slice %27 {offsets = [1, 0], sizes = [8, 16], strides = [1, 1]} : vector<10x16xf32> to vector<8x16xf32>
    %65 = arith.mulf %63, %64 : vector<8x16xf32>
    %66 = vector.extract_strided_slice %9 {offsets = [0, 2, 0], sizes = [4, 8, 16], strides = [1, 1, 1]} : vector<4x10x16xf32> to vector<4x8x16xf32>
    %67 = arith.mulf %28, %66 : vector<4x8x16xf32>
    %cst_21 = arith.constant dense<0.000000e+00> : vector<8x16xf32>
    %68 = vector.multi_reduction <add>, %67, %cst_21 [0] : vector<4x8x16xf32> to vector<8x16xf32>
    %69 = arith.mulf %68, %29 : vector<8x16xf32>
    %70 = vector.extract_strided_slice %17 {offsets = [2, 0], sizes = [8, 16], strides = [1, 1]} : vector<10x16xf32> to vector<8x16xf32>
    %71 = arith.mulf %69, %70 : vector<8x16xf32>
    %72 = vector.extract_strided_slice %6 {offsets = [0, 2, 0], sizes = [4, 8, 16], strides = [1, 1, 1]} : vector<4x10x16xf32> to vector<4x8x16xf32>
    %73 = arith.mulf %28, %72 : vector<4x8x16xf32>
    %cst_22 = arith.constant dense<0.000000e+00> : vector<8x16xf32>
    %74 = vector.multi_reduction <add>, %73, %cst_22 [0] : vector<4x8x16xf32> to vector<8x16xf32>
    %75 = arith.mulf %74, %29 : vector<8x16xf32>
    %76 = vector.extract_strided_slice %22 {offsets = [2, 0], sizes = [8, 16], strides = [1, 1]} : vector<10x16xf32> to vector<8x16xf32>
    %77 = arith.mulf %75, %76 : vector<8x16xf32>
    %78 = vector.extract_strided_slice %12 {offsets = [0, 2, 0], sizes = [4, 8, 16], strides = [1, 1, 1]} : vector<4x10x16xf32> to vector<4x8x16xf32>
    %79 = arith.mulf %28, %78 : vector<4x8x16xf32>
    %cst_23 = arith.constant dense<0.000000e+00> : vector<8x16xf32>
    %80 = vector.multi_reduction <add>, %79, %cst_23 [0] : vector<4x8x16xf32> to vector<8x16xf32>
    %81 = arith.mulf %80, %29 : vector<8x16xf32>
    %82 = vector.extract_strided_slice %27 {offsets = [2, 0], sizes = [8, 16], strides = [1, 1]} : vector<10x16xf32> to vector<8x16xf32>
    %83 = arith.mulf %81, %82 : vector<8x16xf32>
    %c0_24 = arith.constant 0 : index
    %c0_25 = arith.constant 0 : index
    %c0_26 = arith.constant 0 : index
    %84 = vector.load %arg4[%c0_24, %c0_25, %c0_26] : memref<1x8x16xf32, #tpu.memory_space<vmem>>, vector<1x8x16xf32>
    %85 = vector.shape_cast %84 : vector<1x8x16xf32> to vector<8x16xf32>
    %cst_27 = arith.constant 0.000000e+00 : f32
    %86 = vector.broadcast %cst_27 : f32 to vector<8x16xf32>
    %cst_28 = arith.constant 0.000000e+00 : f32
    %87 = vector.broadcast %cst_28 : f32 to vector<8x16xf32>
    %88 = arith.cmpf ogt, %41, %35 : vector<8x16xf32>
    %cst_29 = arith.constant 1.000000e+00 : f32
    %cst_30 = arith.constant 0.000000e+00 : f32
    %89 = vector.broadcast %cst_29 : f32 to vector<8x16xf32>
    %90 = vector.broadcast %cst_30 : f32 to vector<8x16xf32>
    %91 = arith.select %88, %89, %90 : vector<8x16xi1>, vector<8x16xf32>
    %92 = arith.addf %87, %91 : vector<8x16xf32>
    %93 = arith.cmpf ogt, %47, %35 : vector<8x16xf32>
    %cst_31 = arith.constant 1.000000e+00 : f32
    %cst_32 = arith.constant 0.000000e+00 : f32
    %94 = vector.broadcast %cst_31 : f32 to vector<8x16xf32>
    %95 = vector.broadcast %cst_32 : f32 to vector<8x16xf32>
    %96 = arith.select %93, %94, %95 : vector<8x16xi1>, vector<8x16xf32>
    %97 = arith.addf %92, %96 : vector<8x16xf32>
    %98 = arith.cmpf ogt, %53, %35 : vector<8x16xf32>
    %cst_33 = arith.constant 1.000000e+00 : f32
    %cst_34 = arith.constant 0.000000e+00 : f32
    %99 = vector.broadcast %cst_33 : f32 to vector<8x16xf32>
    %100 = vector.broadcast %cst_34 : f32 to vector<8x16xf32>
    %101 = arith.select %98, %99, %100 : vector<8x16xi1>, vector<8x16xf32>
    %102 = arith.addf %97, %101 : vector<8x16xf32>
    %103 = arith.cmpf ogt, %59, %35 : vector<8x16xf32>
    %cst_35 = arith.constant 1.000000e+00 : f32
    %cst_36 = arith.constant 0.000000e+00 : f32
    %104 = vector.broadcast %cst_35 : f32 to vector<8x16xf32>
    %105 = vector.broadcast %cst_36 : f32 to vector<8x16xf32>
    %106 = arith.select %103, %104, %105 : vector<8x16xi1>, vector<8x16xf32>
    %107 = arith.addf %102, %106 : vector<8x16xf32>
    %108 = arith.cmpf ogt, %65, %35 : vector<8x16xf32>
    %cst_37 = arith.constant 1.000000e+00 : f32
    %cst_38 = arith.constant 0.000000e+00 : f32
    %109 = vector.broadcast %cst_37 : f32 to vector<8x16xf32>
    %110 = vector.broadcast %cst_38 : f32 to vector<8x16xf32>
    %111 = arith.select %108, %109, %110 : vector<8x16xi1>, vector<8x16xf32>
    %112 = arith.addf %107, %111 : vector<8x16xf32>
    %113 = arith.cmpf ogt, %71, %35 : vector<8x16xf32>
    %cst_39 = arith.constant 1.000000e+00 : f32
    %cst_40 = arith.constant 0.000000e+00 : f32
    %114 = vector.broadcast %cst_39 : f32 to vector<8x16xf32>
    %115 = vector.broadcast %cst_40 : f32 to vector<8x16xf32>
    %116 = arith.select %113, %114, %115 : vector<8x16xi1>, vector<8x16xf32>
    %117 = arith.addf %112, %116 : vector<8x16xf32>
    %118 = arith.cmpf ogt, %77, %35 : vector<8x16xf32>
    %cst_41 = arith.constant 1.000000e+00 : f32
    %cst_42 = arith.constant 0.000000e+00 : f32
    %119 = vector.broadcast %cst_41 : f32 to vector<8x16xf32>
    %120 = vector.broadcast %cst_42 : f32 to vector<8x16xf32>
    %121 = arith.select %118, %119, %120 : vector<8x16xi1>, vector<8x16xf32>
    %122 = arith.addf %117, %121 : vector<8x16xf32>
    %123 = arith.cmpf ogt, %83, %35 : vector<8x16xf32>
    %cst_43 = arith.constant 1.000000e+00 : f32
    %cst_44 = arith.constant 0.000000e+00 : f32
    %124 = vector.broadcast %cst_43 : f32 to vector<8x16xf32>
    %125 = vector.broadcast %cst_44 : f32 to vector<8x16xf32>
    %126 = arith.select %123, %124, %125 : vector<8x16xi1>, vector<8x16xf32>
    %127 = arith.addf %122, %126 : vector<8x16xf32>
    %128 = arith.cmpf olt, %127, %85 : vector<8x16xf32>
    %129 = math.exp %35 : vector<8x16xf32>
    %cst_45 = arith.constant 0.000000e+00 : f32
    %130 = vector.broadcast %cst_45 : f32 to vector<8x16xf32>
    %131 = arith.select %128, %129, %130 : vector<8x16xi1>, vector<8x16xf32>
    %132 = arith.addf %86, %131 : vector<8x16xf32>
    %cst_46 = arith.constant 0.000000e+00 : f32
    %133 = vector.broadcast %cst_46 : f32 to vector<8x16xf32>
    %134 = arith.cmpf oge, %35, %41 : vector<8x16xf32>
    %cst_47 = arith.constant 1.000000e+00 : f32
    %cst_48 = arith.constant 0.000000e+00 : f32
    %135 = vector.broadcast %cst_47 : f32 to vector<8x16xf32>
    %136 = vector.broadcast %cst_48 : f32 to vector<8x16xf32>
    %137 = arith.select %134, %135, %136 : vector<8x16xi1>, vector<8x16xf32>
    %138 = arith.addf %133, %137 : vector<8x16xf32>
    %139 = arith.cmpf ogt, %47, %41 : vector<8x16xf32>
    %cst_49 = arith.constant 1.000000e+00 : f32
    %cst_50 = arith.constant 0.000000e+00 : f32
    %140 = vector.broadcast %cst_49 : f32 to vector<8x16xf32>
    %141 = vector.broadcast %cst_50 : f32 to vector<8x16xf32>
    %142 = arith.select %139, %140, %141 : vector<8x16xi1>, vector<8x16xf32>
    %143 = arith.addf %138, %142 : vector<8x16xf32>
    %144 = arith.cmpf ogt, %53, %41 : vector<8x16xf32>
    %cst_51 = arith.constant 1.000000e+00 : f32
    %cst_52 = arith.constant 0.000000e+00 : f32
    %145 = vector.broadcast %cst_51 : f32 to vector<8x16xf32>
    %146 = vector.broadcast %cst_52 : f32 to vector<8x16xf32>
    %147 = arith.select %144, %145, %146 : vector<8x16xi1>, vector<8x16xf32>
    %148 = arith.addf %143, %147 : vector<8x16xf32>
    %149 = arith.cmpf ogt, %59, %41 : vector<8x16xf32>
    %cst_53 = arith.constant 1.000000e+00 : f32
    %cst_54 = arith.constant 0.000000e+00 : f32
    %150 = vector.broadcast %cst_53 : f32 to vector<8x16xf32>
    %151 = vector.broadcast %cst_54 : f32 to vector<8x16xf32>
    %152 = arith.select %149, %150, %151 : vector<8x16xi1>, vector<8x16xf32>
    %153 = arith.addf %148, %152 : vector<8x16xf32>
    %154 = arith.cmpf ogt, %65, %41 : vector<8x16xf32>
    %cst_55 = arith.constant 1.000000e+00 : f32
    %cst_56 = arith.constant 0.000000e+00 : f32
    %155 = vector.broadcast %cst_55 : f32 to vector<8x16xf32>
    %156 = vector.broadcast %cst_56 : f32 to vector<8x16xf32>
    %157 = arith.select %154, %155, %156 : vector<8x16xi1>, vector<8x16xf32>
    %158 = arith.addf %153, %157 : vector<8x16xf32>
    %159 = arith.cmpf ogt, %71, %41 : vector<8x16xf32>
    %cst_57 = arith.constant 1.000000e+00 : f32
    %cst_58 = arith.constant 0.000000e+00 : f32
    %160 = vector.broadcast %cst_57 : f32 to vector<8x16xf32>
    %161 = vector.broadcast %cst_58 : f32 to vector<8x16xf32>
    %162 = arith.select %159, %160, %161 : vector<8x16xi1>, vector<8x16xf32>
    %163 = arith.addf %158, %162 : vector<8x16xf32>
    %164 = arith.cmpf ogt, %77, %41 : vector<8x16xf32>
    %cst_59 = arith.constant 1.000000e+00 : f32
    %cst_60 = arith.constant 0.000000e+00 : f32
    %165 = vector.broadcast %cst_59 : f32 to vector<8x16xf32>
    %166 = vector.broadcast %cst_60 : f32 to vector<8x16xf32>
    %167 = arith.select %164, %165, %166 : vector<8x16xi1>, vector<8x16xf32>
    %168 = arith.addf %163, %167 : vector<8x16xf32>
    %169 = arith.cmpf ogt, %83, %41 : vector<8x16xf32>
    %cst_61 = arith.constant 1.000000e+00 : f32
    %cst_62 = arith.constant 0.000000e+00 : f32
    %170 = vector.broadcast %cst_61 : f32 to vector<8x16xf32>
    %171 = vector.broadcast %cst_62 : f32 to vector<8x16xf32>
    %172 = arith.select %169, %170, %171 : vector<8x16xi1>, vector<8x16xf32>
    %173 = arith.addf %168, %172 : vector<8x16xf32>
    %174 = arith.cmpf olt, %173, %85 : vector<8x16xf32>
    %175 = math.exp %41 : vector<8x16xf32>
    %cst_63 = arith.constant 0.000000e+00 : f32
    %176 = vector.broadcast %cst_63 : f32 to vector<8x16xf32>
    %177 = arith.select %174, %175, %176 : vector<8x16xi1>, vector<8x16xf32>
    %178 = arith.addf %132, %177 : vector<8x16xf32>
    %cst_64 = arith.constant 0.000000e+00 : f32
    %179 = vector.broadcast %cst_64 : f32 to vector<8x16xf32>
    %180 = arith.cmpf oge, %35, %47 : vector<8x16xf32>
    %cst_65 = arith.constant 1.000000e+00 : f32
    %cst_66 = arith.constant 0.000000e+00 : f32
    %181 = vector.broadcast %cst_65 : f32 to vector<8x16xf32>
    %182 = vector.broadcast %cst_66 : f32 to vector<8x16xf32>
    %183 = arith.select %180, %181, %182 : vector<8x16xi1>, vector<8x16xf32>
    %184 = arith.addf %179, %183 : vector<8x16xf32>
    %185 = arith.cmpf oge, %41, %47 : vector<8x16xf32>
    %cst_67 = arith.constant 1.000000e+00 : f32
    %cst_68 = arith.constant 0.000000e+00 : f32
    %186 = vector.broadcast %cst_67 : f32 to vector<8x16xf32>
    %187 = vector.broadcast %cst_68 : f32 to vector<8x16xf32>
    %188 = arith.select %185, %186, %187 : vector<8x16xi1>, vector<8x16xf32>
    %189 = arith.addf %184, %188 : vector<8x16xf32>
    %190 = arith.cmpf ogt, %53, %47 : vector<8x16xf32>
    %cst_69 = arith.constant 1.000000e+00 : f32
    %cst_70 = arith.constant 0.000000e+00 : f32
    %191 = vector.broadcast %cst_69 : f32 to vector<8x16xf32>
    %192 = vector.broadcast %cst_70 : f32 to vector<8x16xf32>
    %193 = arith.select %190, %191, %192 : vector<8x16xi1>, vector<8x16xf32>
    %194 = arith.addf %189, %193 : vector<8x16xf32>
    %195 = arith.cmpf ogt, %59, %47 : vector<8x16xf32>
    %cst_71 = arith.constant 1.000000e+00 : f32
    %cst_72 = arith.constant 0.000000e+00 : f32
    %196 = vector.broadcast %cst_71 : f32 to vector<8x16xf32>
    %197 = vector.broadcast %cst_72 : f32 to vector<8x16xf32>
    %198 = arith.select %195, %196, %197 : vector<8x16xi1>, vector<8x16xf32>
    %199 = arith.addf %194, %198 : vector<8x16xf32>
    %200 = arith.cmpf ogt, %65, %47 : vector<8x16xf32>
    %cst_73 = arith.constant 1.000000e+00 : f32
    %cst_74 = arith.constant 0.000000e+00 : f32
    %201 = vector.broadcast %cst_73 : f32 to vector<8x16xf32>
    %202 = vector.broadcast %cst_74 : f32 to vector<8x16xf32>
    %203 = arith.select %200, %201, %202 : vector<8x16xi1>, vector<8x16xf32>
    %204 = arith.addf %199, %203 : vector<8x16xf32>
    %205 = arith.cmpf ogt, %71, %47 : vector<8x16xf32>
    %cst_75 = arith.constant 1.000000e+00 : f32
    %cst_76 = arith.constant 0.000000e+00 : f32
    %206 = vector.broadcast %cst_75 : f32 to vector<8x16xf32>
    %207 = vector.broadcast %cst_76 : f32 to vector<8x16xf32>
    %208 = arith.select %205, %206, %207 : vector<8x16xi1>, vector<8x16xf32>
    %209 = arith.addf %204, %208 : vector<8x16xf32>
    %210 = arith.cmpf ogt, %77, %47 : vector<8x16xf32>
    %cst_77 = arith.constant 1.000000e+00 : f32
    %cst_78 = arith.constant 0.000000e+00 : f32
    %211 = vector.broadcast %cst_77 : f32 to vector<8x16xf32>
    %212 = vector.broadcast %cst_78 : f32 to vector<8x16xf32>
    %213 = arith.select %210, %211, %212 : vector<8x16xi1>, vector<8x16xf32>
    %214 = arith.addf %209, %213 : vector<8x16xf32>
    %215 = arith.cmpf ogt, %83, %47 : vector<8x16xf32>
    %cst_79 = arith.constant 1.000000e+00 : f32
    %cst_80 = arith.constant 0.000000e+00 : f32
    %216 = vector.broadcast %cst_79 : f32 to vector<8x16xf32>
    %217 = vector.broadcast %cst_80 : f32 to vector<8x16xf32>
    %218 = arith.select %215, %216, %217 : vector<8x16xi1>, vector<8x16xf32>
    %219 = arith.addf %214, %218 : vector<8x16xf32>
    %220 = arith.cmpf olt, %219, %85 : vector<8x16xf32>
    %221 = math.exp %47 : vector<8x16xf32>
    %cst_81 = arith.constant 0.000000e+00 : f32
    %222 = vector.broadcast %cst_81 : f32 to vector<8x16xf32>
    %223 = arith.select %220, %221, %222 : vector<8x16xi1>, vector<8x16xf32>
    %224 = arith.addf %178, %223 : vector<8x16xf32>
    %cst_82 = arith.constant 0.000000e+00 : f32
    %225 = vector.broadcast %cst_82 : f32 to vector<8x16xf32>
    %226 = arith.cmpf oge, %35, %53 : vector<8x16xf32>
    %cst_83 = arith.constant 1.000000e+00 : f32
    %cst_84 = arith.constant 0.000000e+00 : f32
    %227 = vector.broadcast %cst_83 : f32 to vector<8x16xf32>
    %228 = vector.broadcast %cst_84 : f32 to vector<8x16xf32>
    %229 = arith.select %226, %227, %228 : vector<8x16xi1>, vector<8x16xf32>
    %230 = arith.addf %225, %229 : vector<8x16xf32>
    %231 = arith.cmpf oge, %41, %53 : vector<8x16xf32>
    %cst_85 = arith.constant 1.000000e+00 : f32
    %cst_86 = arith.constant 0.000000e+00 : f32
    %232 = vector.broadcast %cst_85 : f32 to vector<8x16xf32>
    %233 = vector.broadcast %cst_86 : f32 to vector<8x16xf32>
    %234 = arith.select %231, %232, %233 : vector<8x16xi1>, vector<8x16xf32>
    %235 = arith.addf %230, %234 : vector<8x16xf32>
    %236 = arith.cmpf oge, %47, %53 : vector<8x16xf32>
    %cst_87 = arith.constant 1.000000e+00 : f32
    %cst_88 = arith.constant 0.000000e+00 : f32
    %237 = vector.broadcast %cst_87 : f32 to vector<8x16xf32>
    %238 = vector.broadcast %cst_88 : f32 to vector<8x16xf32>
    %239 = arith.select %236, %237, %238 : vector<8x16xi1>, vector<8x16xf32>
    %240 = arith.addf %235, %239 : vector<8x16xf32>
    %241 = arith.cmpf ogt, %59, %53 : vector<8x16xf32>
    %cst_89 = arith.constant 1.000000e+00 : f32
    %cst_90 = arith.constant 0.000000e+00 : f32
    %242 = vector.broadcast %cst_89 : f32 to vector<8x16xf32>
    %243 = vector.broadcast %cst_90 : f32 to vector<8x16xf32>
    %244 = arith.select %241, %242, %243 : vector<8x16xi1>, vector<8x16xf32>
    %245 = arith.addf %240, %244 : vector<8x16xf32>
    %246 = arith.cmpf ogt, %65, %53 : vector<8x16xf32>
    %cst_91 = arith.constant 1.000000e+00 : f32
    %cst_92 = arith.constant 0.000000e+00 : f32
    %247 = vector.broadcast %cst_91 : f32 to vector<8x16xf32>
    %248 = vector.broadcast %cst_92 : f32 to vector<8x16xf32>
    %249 = arith.select %246, %247, %248 : vector<8x16xi1>, vector<8x16xf32>
    %250 = arith.addf %245, %249 : vector<8x16xf32>
    %251 = arith.cmpf ogt, %71, %53 : vector<8x16xf32>
    %cst_93 = arith.constant 1.000000e+00 : f32
    %cst_94 = arith.constant 0.000000e+00 : f32
    %252 = vector.broadcast %cst_93 : f32 to vector<8x16xf32>
    %253 = vector.broadcast %cst_94 : f32 to vector<8x16xf32>
    %254 = arith.select %251, %252, %253 : vector<8x16xi1>, vector<8x16xf32>
    %255 = arith.addf %250, %254 : vector<8x16xf32>
    %256 = arith.cmpf ogt, %77, %53 : vector<8x16xf32>
    %cst_95 = arith.constant 1.000000e+00 : f32
    %cst_96 = arith.constant 0.000000e+00 : f32
    %257 = vector.broadcast %cst_95 : f32 to vector<8x16xf32>
    %258 = vector.broadcast %cst_96 : f32 to vector<8x16xf32>
    %259 = arith.select %256, %257, %258 : vector<8x16xi1>, vector<8x16xf32>
    %260 = arith.addf %255, %259 : vector<8x16xf32>
    %261 = arith.cmpf ogt, %83, %53 : vector<8x16xf32>
    %cst_97 = arith.constant 1.000000e+00 : f32
    %cst_98 = arith.constant 0.000000e+00 : f32
    %262 = vector.broadcast %cst_97 : f32 to vector<8x16xf32>
    %263 = vector.broadcast %cst_98 : f32 to vector<8x16xf32>
    %264 = arith.select %261, %262, %263 : vector<8x16xi1>, vector<8x16xf32>
    %265 = arith.addf %260, %264 : vector<8x16xf32>
    %266 = arith.cmpf olt, %265, %85 : vector<8x16xf32>
    %267 = math.exp %53 : vector<8x16xf32>
    %cst_99 = arith.constant 0.000000e+00 : f32
    %268 = vector.broadcast %cst_99 : f32 to vector<8x16xf32>
    %269 = arith.select %266, %267, %268 : vector<8x16xi1>, vector<8x16xf32>
    %270 = arith.addf %224, %269 : vector<8x16xf32>
    %cst_100 = arith.constant 0.000000e+00 : f32
    %271 = vector.broadcast %cst_100 : f32 to vector<8x16xf32>
    %272 = arith.cmpf oge, %35, %59 : vector<8x16xf32>
    %cst_101 = arith.constant 1.000000e+00 : f32
    %cst_102 = arith.constant 0.000000e+00 : f32
    %273 = vector.broadcast %cst_101 : f32 to vector<8x16xf32>
    %274 = vector.broadcast %cst_102 : f32 to vector<8x16xf32>
    %275 = arith.select %272, %273, %274 : vector<8x16xi1>, vector<8x16xf32>
    %276 = arith.addf %271, %275 : vector<8x16xf32>
    %277 = arith.cmpf oge, %41, %59 : vector<8x16xf32>
    %cst_103 = arith.constant 1.000000e+00 : f32
    %cst_104 = arith.constant 0.000000e+00 : f32
    %278 = vector.broadcast %cst_103 : f32 to vector<8x16xf32>
    %279 = vector.broadcast %cst_104 : f32 to vector<8x16xf32>
    %280 = arith.select %277, %278, %279 : vector<8x16xi1>, vector<8x16xf32>
    %281 = arith.addf %276, %280 : vector<8x16xf32>
    %282 = arith.cmpf oge, %47, %59 : vector<8x16xf32>
    %cst_105 = arith.constant 1.000000e+00 : f32
    %cst_106 = arith.constant 0.000000e+00 : f32
    %283 = vector.broadcast %cst_105 : f32 to vector<8x16xf32>
    %284 = vector.broadcast %cst_106 : f32 to vector<8x16xf32>
    %285 = arith.select %282, %283, %284 : vector<8x16xi1>, vector<8x16xf32>
    %286 = arith.addf %281, %285 : vector<8x16xf32>
    %287 = arith.cmpf oge, %53, %59 : vector<8x16xf32>
    %cst_107 = arith.constant 1.000000e+00 : f32
    %cst_108 = arith.constant 0.000000e+00 : f32
    %288 = vector.broadcast %cst_107 : f32 to vector<8x16xf32>
    %289 = vector.broadcast %cst_108 : f32 to vector<8x16xf32>
    %290 = arith.select %287, %288, %289 : vector<8x16xi1>, vector<8x16xf32>
    %291 = arith.addf %286, %290 : vector<8x16xf32>
    %292 = arith.cmpf ogt, %65, %59 : vector<8x16xf32>
    %cst_109 = arith.constant 1.000000e+00 : f32
    %cst_110 = arith.constant 0.000000e+00 : f32
    %293 = vector.broadcast %cst_109 : f32 to vector<8x16xf32>
    %294 = vector.broadcast %cst_110 : f32 to vector<8x16xf32>
    %295 = arith.select %292, %293, %294 : vector<8x16xi1>, vector<8x16xf32>
    %296 = arith.addf %291, %295 : vector<8x16xf32>
    %297 = arith.cmpf ogt, %71, %59 : vector<8x16xf32>
    %cst_111 = arith.constant 1.000000e+00 : f32
    %cst_112 = arith.constant 0.000000e+00 : f32
    %298 = vector.broadcast %cst_111 : f32 to vector<8x16xf32>
    %299 = vector.broadcast %cst_112 : f32 to vector<8x16xf32>
    %300 = arith.select %297, %298, %299 : vector<8x16xi1>, vector<8x16xf32>
    %301 = arith.addf %296, %300 : vector<8x16xf32>
    %302 = arith.cmpf ogt, %77, %59 : vector<8x16xf32>
    %cst_113 = arith.constant 1.000000e+00 : f32
    %cst_114 = arith.constant 0.000000e+00 : f32
    %303 = vector.broadcast %cst_113 : f32 to vector<8x16xf32>
    %304 = vector.broadcast %cst_114 : f32 to vector<8x16xf32>
    %305 = arith.select %302, %303, %304 : vector<8x16xi1>, vector<8x16xf32>
    %306 = arith.addf %301, %305 : vector<8x16xf32>
    %307 = arith.cmpf ogt, %83, %59 : vector<8x16xf32>
    %cst_115 = arith.constant 1.000000e+00 : f32
    %cst_116 = arith.constant 0.000000e+00 : f32
    %308 = vector.broadcast %cst_115 : f32 to vector<8x16xf32>
    %309 = vector.broadcast %cst_116 : f32 to vector<8x16xf32>
    %310 = arith.select %307, %308, %309 : vector<8x16xi1>, vector<8x16xf32>
    %311 = arith.addf %306, %310 : vector<8x16xf32>
    %312 = arith.cmpf olt, %311, %85 : vector<8x16xf32>
    %313 = math.exp %59 : vector<8x16xf32>
    %cst_117 = arith.constant 0.000000e+00 : f32
    %314 = vector.broadcast %cst_117 : f32 to vector<8x16xf32>
    %315 = arith.select %312, %313, %314 : vector<8x16xi1>, vector<8x16xf32>
    %316 = arith.addf %270, %315 : vector<8x16xf32>
    %cst_118 = arith.constant 0.000000e+00 : f32
    %317 = vector.broadcast %cst_118 : f32 to vector<8x16xf32>
    %318 = arith.cmpf oge, %35, %65 : vector<8x16xf32>
    %cst_119 = arith.constant 1.000000e+00 : f32
    %cst_120 = arith.constant 0.000000e+00 : f32
    %319 = vector.broadcast %cst_119 : f32 to vector<8x16xf32>
    %320 = vector.broadcast %cst_120 : f32 to vector<8x16xf32>
    %321 = arith.select %318, %319, %320 : vector<8x16xi1>, vector<8x16xf32>
    %322 = arith.addf %317, %321 : vector<8x16xf32>
    %323 = arith.cmpf oge, %41, %65 : vector<8x16xf32>
    %cst_121 = arith.constant 1.000000e+00 : f32
    %cst_122 = arith.constant 0.000000e+00 : f32
    %324 = vector.broadcast %cst_121 : f32 to vector<8x16xf32>
    %325 = vector.broadcast %cst_122 : f32 to vector<8x16xf32>
    %326 = arith.select %323, %324, %325 : vector<8x16xi1>, vector<8x16xf32>
    %327 = arith.addf %322, %326 : vector<8x16xf32>
    %328 = arith.cmpf oge, %47, %65 : vector<8x16xf32>
    %cst_123 = arith.constant 1.000000e+00 : f32
    %cst_124 = arith.constant 0.000000e+00 : f32
    %329 = vector.broadcast %cst_123 : f32 to vector<8x16xf32>
    %330 = vector.broadcast %cst_124 : f32 to vector<8x16xf32>
    %331 = arith.select %328, %329, %330 : vector<8x16xi1>, vector<8x16xf32>
    %332 = arith.addf %327, %331 : vector<8x16xf32>
    %333 = arith.cmpf oge, %53, %65 : vector<8x16xf32>
    %cst_125 = arith.constant 1.000000e+00 : f32
    %cst_126 = arith.constant 0.000000e+00 : f32
    %334 = vector.broadcast %cst_125 : f32 to vector<8x16xf32>
    %335 = vector.broadcast %cst_126 : f32 to vector<8x16xf32>
    %336 = arith.select %333, %334, %335 : vector<8x16xi1>, vector<8x16xf32>
    %337 = arith.addf %332, %336 : vector<8x16xf32>
    %338 = arith.cmpf oge, %59, %65 : vector<8x16xf32>
    %cst_127 = arith.constant 1.000000e+00 : f32
    %cst_128 = arith.constant 0.000000e+00 : f32
    %339 = vector.broadcast %cst_127 : f32 to vector<8x16xf32>
    %340 = vector.broadcast %cst_128 : f32 to vector<8x16xf32>
    %341 = arith.select %338, %339, %340 : vector<8x16xi1>, vector<8x16xf32>
    %342 = arith.addf %337, %341 : vector<8x16xf32>
    %343 = arith.cmpf ogt, %71, %65 : vector<8x16xf32>
    %cst_129 = arith.constant 1.000000e+00 : f32
    %cst_130 = arith.constant 0.000000e+00 : f32
    %344 = vector.broadcast %cst_129 : f32 to vector<8x16xf32>
    %345 = vector.broadcast %cst_130 : f32 to vector<8x16xf32>
    %346 = arith.select %343, %344, %345 : vector<8x16xi1>, vector<8x16xf32>
    %347 = arith.addf %342, %346 : vector<8x16xf32>
    %348 = arith.cmpf ogt, %77, %65 : vector<8x16xf32>
    %cst_131 = arith.constant 1.000000e+00 : f32
    %cst_132 = arith.constant 0.000000e+00 : f32
    %349 = vector.broadcast %cst_131 : f32 to vector<8x16xf32>
    %350 = vector.broadcast %cst_132 : f32 to vector<8x16xf32>
    %351 = arith.select %348, %349, %350 : vector<8x16xi1>, vector<8x16xf32>
    %352 = arith.addf %347, %351 : vector<8x16xf32>
    %353 = arith.cmpf ogt, %83, %65 : vector<8x16xf32>
    %cst_133 = arith.constant 1.000000e+00 : f32
    %cst_134 = arith.constant 0.000000e+00 : f32
    %354 = vector.broadcast %cst_133 : f32 to vector<8x16xf32>
    %355 = vector.broadcast %cst_134 : f32 to vector<8x16xf32>
    %356 = arith.select %353, %354, %355 : vector<8x16xi1>, vector<8x16xf32>
    %357 = arith.addf %352, %356 : vector<8x16xf32>
    %358 = arith.cmpf olt, %357, %85 : vector<8x16xf32>
    %359 = math.exp %65 : vector<8x16xf32>
    %cst_135 = arith.constant 0.000000e+00 : f32
    %360 = vector.broadcast %cst_135 : f32 to vector<8x16xf32>
    %361 = arith.select %358, %359, %360 : vector<8x16xi1>, vector<8x16xf32>
    %362 = arith.addf %316, %361 : vector<8x16xf32>
    %cst_136 = arith.constant 0.000000e+00 : f32
    %363 = vector.broadcast %cst_136 : f32 to vector<8x16xf32>
    %364 = arith.cmpf oge, %35, %71 : vector<8x16xf32>
    %cst_137 = arith.constant 1.000000e+00 : f32
    %cst_138 = arith.constant 0.000000e+00 : f32
    %365 = vector.broadcast %cst_137 : f32 to vector<8x16xf32>
    %366 = vector.broadcast %cst_138 : f32 to vector<8x16xf32>
    %367 = arith.select %364, %365, %366 : vector<8x16xi1>, vector<8x16xf32>
    %368 = arith.addf %363, %367 : vector<8x16xf32>
    %369 = arith.cmpf oge, %41, %71 : vector<8x16xf32>
    %cst_139 = arith.constant 1.000000e+00 : f32
    %cst_140 = arith.constant 0.000000e+00 : f32
    %370 = vector.broadcast %cst_139 : f32 to vector<8x16xf32>
    %371 = vector.broadcast %cst_140 : f32 to vector<8x16xf32>
    %372 = arith.select %369, %370, %371 : vector<8x16xi1>, vector<8x16xf32>
    %373 = arith.addf %368, %372 : vector<8x16xf32>
    %374 = arith.cmpf oge, %47, %71 : vector<8x16xf32>
    %cst_141 = arith.constant 1.000000e+00 : f32
    %cst_142 = arith.constant 0.000000e+00 : f32
    %375 = vector.broadcast %cst_141 : f32 to vector<8x16xf32>
    %376 = vector.broadcast %cst_142 : f32 to vector<8x16xf32>
    %377 = arith.select %374, %375, %376 : vector<8x16xi1>, vector<8x16xf32>
    %378 = arith.addf %373, %377 : vector<8x16xf32>
    %379 = arith.cmpf oge, %53, %71 : vector<8x16xf32>
    %cst_143 = arith.constant 1.000000e+00 : f32
    %cst_144 = arith.constant 0.000000e+00 : f32
    %380 = vector.broadcast %cst_143 : f32 to vector<8x16xf32>
    %381 = vector.broadcast %cst_144 : f32 to vector<8x16xf32>
    %382 = arith.select %379, %380, %381 : vector<8x16xi1>, vector<8x16xf32>
    %383 = arith.addf %378, %382 : vector<8x16xf32>
    %384 = arith.cmpf oge, %59, %71 : vector<8x16xf32>
    %cst_145 = arith.constant 1.000000e+00 : f32
    %cst_146 = arith.constant 0.000000e+00 : f32
    %385 = vector.broadcast %cst_145 : f32 to vector<8x16xf32>
    %386 = vector.broadcast %cst_146 : f32 to vector<8x16xf32>
    %387 = arith.select %384, %385, %386 : vector<8x16xi1>, vector<8x16xf32>
    %388 = arith.addf %383, %387 : vector<8x16xf32>
    %389 = arith.cmpf oge, %65, %71 : vector<8x16xf32>
    %cst_147 = arith.constant 1.000000e+00 : f32
    %cst_148 = arith.constant 0.000000e+00 : f32
    %390 = vector.broadcast %cst_147 : f32 to vector<8x16xf32>
    %391 = vector.broadcast %cst_148 : f32 to vector<8x16xf32>
    %392 = arith.select %389, %390, %391 : vector<8x16xi1>, vector<8x16xf32>
    %393 = arith.addf %388, %392 : vector<8x16xf32>
    %394 = arith.cmpf ogt, %77, %71 : vector<8x16xf32>
    %cst_149 = arith.constant 1.000000e+00 : f32
    %cst_150 = arith.constant 0.000000e+00 : f32
    %395 = vector.broadcast %cst_149 : f32 to vector<8x16xf32>
    %396 = vector.broadcast %cst_150 : f32 to vector<8x16xf32>
    %397 = arith.select %394, %395, %396 : vector<8x16xi1>, vector<8x16xf32>
    %398 = arith.addf %393, %397 : vector<8x16xf32>
    %399 = arith.cmpf ogt, %83, %71 : vector<8x16xf32>
    %cst_151 = arith.constant 1.000000e+00 : f32
    %cst_152 = arith.constant 0.000000e+00 : f32
    %400 = vector.broadcast %cst_151 : f32 to vector<8x16xf32>
    %401 = vector.broadcast %cst_152 : f32 to vector<8x16xf32>
    %402 = arith.select %399, %400, %401 : vector<8x16xi1>, vector<8x16xf32>
    %403 = arith.addf %398, %402 : vector<8x16xf32>
    %404 = arith.cmpf olt, %403, %85 : vector<8x16xf32>
    %405 = math.exp %71 : vector<8x16xf32>
    %cst_153 = arith.constant 0.000000e+00 : f32
    %406 = vector.broadcast %cst_153 : f32 to vector<8x16xf32>
    %407 = arith.select %404, %405, %406 : vector<8x16xi1>, vector<8x16xf32>
    %408 = arith.addf %362, %407 : vector<8x16xf32>
    %cst_154 = arith.constant 0.000000e+00 : f32
    %409 = vector.broadcast %cst_154 : f32 to vector<8x16xf32>
    %410 = arith.cmpf oge, %35, %77 : vector<8x16xf32>
    %cst_155 = arith.constant 1.000000e+00 : f32
    %cst_156 = arith.constant 0.000000e+00 : f32
    %411 = vector.broadcast %cst_155 : f32 to vector<8x16xf32>
    %412 = vector.broadcast %cst_156 : f32 to vector<8x16xf32>
    %413 = arith.select %410, %411, %412 : vector<8x16xi1>, vector<8x16xf32>
    %414 = arith.addf %409, %413 : vector<8x16xf32>
    %415 = arith.cmpf oge, %41, %77 : vector<8x16xf32>
    %cst_157 = arith.constant 1.000000e+00 : f32
    %cst_158 = arith.constant 0.000000e+00 : f32
    %416 = vector.broadcast %cst_157 : f32 to vector<8x16xf32>
    %417 = vector.broadcast %cst_158 : f32 to vector<8x16xf32>
    %418 = arith.select %415, %416, %417 : vector<8x16xi1>, vector<8x16xf32>
    %419 = arith.addf %414, %418 : vector<8x16xf32>
    %420 = arith.cmpf oge, %47, %77 : vector<8x16xf32>
    %cst_159 = arith.constant 1.000000e+00 : f32
    %cst_160 = arith.constant 0.000000e+00 : f32
    %421 = vector.broadcast %cst_159 : f32 to vector<8x16xf32>
    %422 = vector.broadcast %cst_160 : f32 to vector<8x16xf32>
    %423 = arith.select %420, %421, %422 : vector<8x16xi1>, vector<8x16xf32>
    %424 = arith.addf %419, %423 : vector<8x16xf32>
    %425 = arith.cmpf oge, %53, %77 : vector<8x16xf32>
    %cst_161 = arith.constant 1.000000e+00 : f32
    %cst_162 = arith.constant 0.000000e+00 : f32
    %426 = vector.broadcast %cst_161 : f32 to vector<8x16xf32>
    %427 = vector.broadcast %cst_162 : f32 to vector<8x16xf32>
    %428 = arith.select %425, %426, %427 : vector<8x16xi1>, vector<8x16xf32>
    %429 = arith.addf %424, %428 : vector<8x16xf32>
    %430 = arith.cmpf oge, %59, %77 : vector<8x16xf32>
    %cst_163 = arith.constant 1.000000e+00 : f32
    %cst_164 = arith.constant 0.000000e+00 : f32
    %431 = vector.broadcast %cst_163 : f32 to vector<8x16xf32>
    %432 = vector.broadcast %cst_164 : f32 to vector<8x16xf32>
    %433 = arith.select %430, %431, %432 : vector<8x16xi1>, vector<8x16xf32>
    %434 = arith.addf %429, %433 : vector<8x16xf32>
    %435 = arith.cmpf oge, %65, %77 : vector<8x16xf32>
    %cst_165 = arith.constant 1.000000e+00 : f32
    %cst_166 = arith.constant 0.000000e+00 : f32
    %436 = vector.broadcast %cst_165 : f32 to vector<8x16xf32>
    %437 = vector.broadcast %cst_166 : f32 to vector<8x16xf32>
    %438 = arith.select %435, %436, %437 : vector<8x16xi1>, vector<8x16xf32>
    %439 = arith.addf %434, %438 : vector<8x16xf32>
    %440 = arith.cmpf oge, %71, %77 : vector<8x16xf32>
    %cst_167 = arith.constant 1.000000e+00 : f32
    %cst_168 = arith.constant 0.000000e+00 : f32
    %441 = vector.broadcast %cst_167 : f32 to vector<8x16xf32>
    %442 = vector.broadcast %cst_168 : f32 to vector<8x16xf32>
    %443 = arith.select %440, %441, %442 : vector<8x16xi1>, vector<8x16xf32>
    %444 = arith.addf %439, %443 : vector<8x16xf32>
    %445 = arith.cmpf ogt, %83, %77 : vector<8x16xf32>
    %cst_169 = arith.constant 1.000000e+00 : f32
    %cst_170 = arith.constant 0.000000e+00 : f32
    %446 = vector.broadcast %cst_169 : f32 to vector<8x16xf32>
    %447 = vector.broadcast %cst_170 : f32 to vector<8x16xf32>
    %448 = arith.select %445, %446, %447 : vector<8x16xi1>, vector<8x16xf32>
    %449 = arith.addf %444, %448 : vector<8x16xf32>
    %450 = arith.cmpf olt, %449, %85 : vector<8x16xf32>
    %451 = math.exp %77 : vector<8x16xf32>
    %cst_171 = arith.constant 0.000000e+00 : f32
    %452 = vector.broadcast %cst_171 : f32 to vector<8x16xf32>
    %453 = arith.select %450, %451, %452 : vector<8x16xi1>, vector<8x16xf32>
    %454 = arith.addf %408, %453 : vector<8x16xf32>
    %cst_172 = arith.constant 0.000000e+00 : f32
    %455 = vector.broadcast %cst_172 : f32 to vector<8x16xf32>
    %456 = arith.cmpf oge, %35, %83 : vector<8x16xf32>
    %cst_173 = arith.constant 1.000000e+00 : f32
    %cst_174 = arith.constant 0.000000e+00 : f32
    %457 = vector.broadcast %cst_173 : f32 to vector<8x16xf32>
    %458 = vector.broadcast %cst_174 : f32 to vector<8x16xf32>
    %459 = arith.select %456, %457, %458 : vector<8x16xi1>, vector<8x16xf32>
    %460 = arith.addf %455, %459 : vector<8x16xf32>
    %461 = arith.cmpf oge, %41, %83 : vector<8x16xf32>
    %cst_175 = arith.constant 1.000000e+00 : f32
    %cst_176 = arith.constant 0.000000e+00 : f32
    %462 = vector.broadcast %cst_175 : f32 to vector<8x16xf32>
    %463 = vector.broadcast %cst_176 : f32 to vector<8x16xf32>
    %464 = arith.select %461, %462, %463 : vector<8x16xi1>, vector<8x16xf32>
    %465 = arith.addf %460, %464 : vector<8x16xf32>
    %466 = arith.cmpf oge, %47, %83 : vector<8x16xf32>
    %cst_177 = arith.constant 1.000000e+00 : f32
    %cst_178 = arith.constant 0.000000e+00 : f32
    %467 = vector.broadcast %cst_177 : f32 to vector<8x16xf32>
    %468 = vector.broadcast %cst_178 : f32 to vector<8x16xf32>
    %469 = arith.select %466, %467, %468 : vector<8x16xi1>, vector<8x16xf32>
    %470 = arith.addf %465, %469 : vector<8x16xf32>
    %471 = arith.cmpf oge, %53, %83 : vector<8x16xf32>
    %cst_179 = arith.constant 1.000000e+00 : f32
    %cst_180 = arith.constant 0.000000e+00 : f32
    %472 = vector.broadcast %cst_179 : f32 to vector<8x16xf32>
    %473 = vector.broadcast %cst_180 : f32 to vector<8x16xf32>
    %474 = arith.select %471, %472, %473 : vector<8x16xi1>, vector<8x16xf32>
    %475 = arith.addf %470, %474 : vector<8x16xf32>
    %476 = arith.cmpf oge, %59, %83 : vector<8x16xf32>
    %cst_181 = arith.constant 1.000000e+00 : f32
    %cst_182 = arith.constant 0.000000e+00 : f32
    %477 = vector.broadcast %cst_181 : f32 to vector<8x16xf32>
    %478 = vector.broadcast %cst_182 : f32 to vector<8x16xf32>
    %479 = arith.select %476, %477, %478 : vector<8x16xi1>, vector<8x16xf32>
    %480 = arith.addf %475, %479 : vector<8x16xf32>
    %481 = arith.cmpf oge, %65, %83 : vector<8x16xf32>
    %cst_183 = arith.constant 1.000000e+00 : f32
    %cst_184 = arith.constant 0.000000e+00 : f32
    %482 = vector.broadcast %cst_183 : f32 to vector<8x16xf32>
    %483 = vector.broadcast %cst_184 : f32 to vector<8x16xf32>
    %484 = arith.select %481, %482, %483 : vector<8x16xi1>, vector<8x16xf32>
    %485 = arith.addf %480, %484 : vector<8x16xf32>
    %486 = arith.cmpf oge, %71, %83 : vector<8x16xf32>
    %cst_185 = arith.constant 1.000000e+00 : f32
    %cst_186 = arith.constant 0.000000e+00 : f32
    %487 = vector.broadcast %cst_185 : f32 to vector<8x16xf32>
    %488 = vector.broadcast %cst_186 : f32 to vector<8x16xf32>
    %489 = arith.select %486, %487, %488 : vector<8x16xi1>, vector<8x16xf32>
    %490 = arith.addf %485, %489 : vector<8x16xf32>
    %491 = arith.cmpf oge, %77, %83 : vector<8x16xf32>
    %cst_187 = arith.constant 1.000000e+00 : f32
    %cst_188 = arith.constant 0.000000e+00 : f32
    %492 = vector.broadcast %cst_187 : f32 to vector<8x16xf32>
    %493 = vector.broadcast %cst_188 : f32 to vector<8x16xf32>
    %494 = arith.select %491, %492, %493 : vector<8x16xi1>, vector<8x16xf32>
    %495 = arith.addf %490, %494 : vector<8x16xf32>
    %496 = arith.cmpf olt, %495, %85 : vector<8x16xf32>
    %497 = math.exp %83 : vector<8x16xf32>
    %cst_189 = arith.constant 0.000000e+00 : f32
    %498 = vector.broadcast %cst_189 : f32 to vector<8x16xf32>
    %499 = arith.select %496, %497, %498 : vector<8x16xi1>, vector<8x16xf32>
    %500 = arith.addf %454, %499 : vector<8x16xf32>
    %cst_190 = arith.constant 9.99999993E-9 : f32
    %501 = vector.broadcast %cst_190 : f32 to vector<8x16xf32>
    %502 = arith.addf %500, %501 : vector<8x16xf32>
    %cst_191 = arith.constant 1.000000e+00 : f32
    %503 = vector.broadcast %cst_191 : f32 to vector<8x16xf32>
    %504 = arith.divf %503, %502 : vector<8x16xf32>
    %505 = arith.mulf %131, %504 : vector<8x16xf32>
    %506 = arith.mulf %177, %504 : vector<8x16xf32>
    %507 = arith.mulf %223, %504 : vector<8x16xf32>
    %508 = arith.mulf %269, %504 : vector<8x16xf32>
    %509 = arith.mulf %315, %504 : vector<8x16xf32>
    %510 = arith.mulf %361, %504 : vector<8x16xf32>
    %511 = arith.mulf %407, %504 : vector<8x16xf32>
    %512 = arith.mulf %453, %504 : vector<8x16xf32>
    %513 = arith.mulf %499, %504 : vector<8x16xf32>
    %c0_192 = arith.constant 0 : index
    %c0_193 = arith.constant 0 : index
    %c0_194 = arith.constant 0 : index
    %c0_195 = arith.constant 0 : index
    %514 = vector.load %arg5[%c0_192, %c0_193, %c0_194, %c0_195] : memref<1x4x1x1xf32, #tpu.memory_space<vmem>>, vector<1x4x1x1xf32>
    %515 = vector.shape_cast %514 : vector<1x4x1x1xf32> to vector<4x1x1xf32>
    %c0_196 = arith.constant 0 : index
    %c0_197 = arith.constant 0 : index
    %c0_198 = arith.constant 0 : index
    %c0_199 = arith.constant 0 : index
    %516 = vector.load %arg6[%c0_196, %c0_197, %c0_198, %c0_199] : memref<1x4x1x1xf32, #tpu.memory_space<vmem>>, vector<1x4x1x1xf32>
    %517 = vector.shape_cast %516 : vector<1x4x1x1xf32> to vector<4x1x1xf32>
    %518 = vector.extract_strided_slice %9 {offsets = [0, 0, 0], sizes = [4, 8, 16], strides = [1, 1, 1]} : vector<4x10x16xf32> to vector<4x8x16xf32>
    %519 = vector.shape_cast %505 : vector<8x16xf32> to vector<1x8x16xf32>
    %520 = vector.broadcast %519 : vector<1x8x16xf32> to vector<4x8x16xf32>
    %521 = arith.mulf %518, %520 : vector<4x8x16xf32>
    %522 = vector.extract_strided_slice %6 {offsets = [0, 0, 0], sizes = [4, 8, 16], strides = [1, 1, 1]} : vector<4x10x16xf32> to vector<4x8x16xf32>
    %523 = vector.shape_cast %506 : vector<8x16xf32> to vector<1x8x16xf32>
    %524 = vector.broadcast %523 : vector<1x8x16xf32> to vector<4x8x16xf32>
    %525 = arith.mulf %522, %524 : vector<4x8x16xf32>
    %526 = arith.addf %521, %525 : vector<4x8x16xf32>
    %527 = vector.extract_strided_slice %12 {offsets = [0, 0, 0], sizes = [4, 8, 16], strides = [1, 1, 1]} : vector<4x10x16xf32> to vector<4x8x16xf32>
    %528 = vector.shape_cast %507 : vector<8x16xf32> to vector<1x8x16xf32>
    %529 = vector.broadcast %528 : vector<1x8x16xf32> to vector<4x8x16xf32>
    %530 = arith.mulf %527, %529 : vector<4x8x16xf32>
    %531 = arith.addf %526, %530 : vector<4x8x16xf32>
    %532 = vector.extract_strided_slice %9 {offsets = [0, 1, 0], sizes = [4, 8, 16], strides = [1, 1, 1]} : vector<4x10x16xf32> to vector<4x8x16xf32>
    %533 = vector.shape_cast %508 : vector<8x16xf32> to vector<1x8x16xf32>
    %534 = vector.broadcast %533 : vector<1x8x16xf32> to vector<4x8x16xf32>
    %535 = arith.mulf %532, %534 : vector<4x8x16xf32>
    %536 = arith.addf %531, %535 : vector<4x8x16xf32>
    %537 = vector.extract_strided_slice %6 {offsets = [0, 1, 0], sizes = [4, 8, 16], strides = [1, 1, 1]} : vector<4x10x16xf32> to vector<4x8x16xf32>
    %538 = vector.shape_cast %509 : vector<8x16xf32> to vector<1x8x16xf32>
    %539 = vector.broadcast %538 : vector<1x8x16xf32> to vector<4x8x16xf32>
    %540 = arith.mulf %537, %539 : vector<4x8x16xf32>
    %541 = arith.addf %536, %540 : vector<4x8x16xf32>
    %542 = vector.extract_strided_slice %12 {offsets = [0, 1, 0], sizes = [4, 8, 16], strides = [1, 1, 1]} : vector<4x10x16xf32> to vector<4x8x16xf32>
    %543 = vector.shape_cast %510 : vector<8x16xf32> to vector<1x8x16xf32>
    %544 = vector.broadcast %543 : vector<1x8x16xf32> to vector<4x8x16xf32>
    %545 = arith.mulf %542, %544 : vector<4x8x16xf32>
    %546 = arith.addf %541, %545 : vector<4x8x16xf32>
    %547 = vector.extract_strided_slice %9 {offsets = [0, 2, 0], sizes = [4, 8, 16], strides = [1, 1, 1]} : vector<4x10x16xf32> to vector<4x8x16xf32>
    %548 = vector.shape_cast %511 : vector<8x16xf32> to vector<1x8x16xf32>
    %549 = vector.broadcast %548 : vector<1x8x16xf32> to vector<4x8x16xf32>
    %550 = arith.mulf %547, %549 : vector<4x8x16xf32>
    %551 = arith.addf %546, %550 : vector<4x8x16xf32>
    %552 = vector.extract_strided_slice %6 {offsets = [0, 2, 0], sizes = [4, 8, 16], strides = [1, 1, 1]} : vector<4x10x16xf32> to vector<4x8x16xf32>
    %553 = vector.shape_cast %512 : vector<8x16xf32> to vector<1x8x16xf32>
    %554 = vector.broadcast %553 : vector<1x8x16xf32> to vector<4x8x16xf32>
    %555 = arith.mulf %552, %554 : vector<4x8x16xf32>
    %556 = arith.addf %551, %555 : vector<4x8x16xf32>
    %557 = vector.extract_strided_slice %12 {offsets = [0, 2, 0], sizes = [4, 8, 16], strides = [1, 1, 1]} : vector<4x10x16xf32> to vector<4x8x16xf32>
    %558 = vector.shape_cast %513 : vector<8x16xf32> to vector<1x8x16xf32>
    %559 = vector.broadcast %558 : vector<1x8x16xf32> to vector<4x8x16xf32>
    %560 = arith.mulf %557, %559 : vector<4x8x16xf32>
    %561 = arith.addf %556, %560 : vector<4x8x16xf32>
    %562 = vector.broadcast %515 : vector<4x1x1xf32> to vector<4x8x16xf32>
    %563 = arith.mulf %28, %562 : vector<4x8x16xf32>
    %564 = arith.addf %561, %563 : vector<4x8x16xf32>
    %565 = vector.broadcast %517 : vector<4x1x1xf32> to vector<4x8x16xf32>
    %566 = arith.addf %564, %565 : vector<4x8x16xf32>
    %567 = vector.extract_strided_slice %566 {offsets = [0, 0, 0], sizes = [4, 1, 16], strides = [1, 1, 1]} : vector<4x8x16xf32> to vector<4x1x16xf32>
    %568 = vector.shape_cast %567 : vector<4x1x16xf32> to vector<4x16xf32>
    %569 = vector.extract_strided_slice %566 {offsets = [0, 1, 0], sizes = [4, 1, 16], strides = [1, 1, 1]} : vector<4x8x16xf32> to vector<4x1x16xf32>
    %570 = vector.shape_cast %569 : vector<4x1x16xf32> to vector<4x16xf32>
    %571 = vector.extract_strided_slice %566 {offsets = [0, 2, 0], sizes = [4, 1, 16], strides = [1, 1, 1]} : vector<4x8x16xf32> to vector<4x1x16xf32>
    %572 = vector.shape_cast %571 : vector<4x1x16xf32> to vector<4x16xf32>
    %573 = vector.extract_strided_slice %566 {offsets = [0, 3, 0], sizes = [4, 1, 16], strides = [1, 1, 1]} : vector<4x8x16xf32> to vector<4x1x16xf32>
    %574 = vector.shape_cast %573 : vector<4x1x16xf32> to vector<4x16xf32>
    %575 = vector.extract_strided_slice %566 {offsets = [0, 4, 0], sizes = [4, 1, 16], strides = [1, 1, 1]} : vector<4x8x16xf32> to vector<4x1x16xf32>
    %576 = vector.shape_cast %575 : vector<4x1x16xf32> to vector<4x16xf32>
    %577 = vector.extract_strided_slice %566 {offsets = [0, 5, 0], sizes = [4, 1, 16], strides = [1, 1, 1]} : vector<4x8x16xf32> to vector<4x1x16xf32>
    %578 = vector.shape_cast %577 : vector<4x1x16xf32> to vector<4x16xf32>
    %579 = vector.extract_strided_slice %566 {offsets = [0, 6, 0], sizes = [4, 1, 16], strides = [1, 1, 1]} : vector<4x8x16xf32> to vector<4x1x16xf32>
    %580 = vector.shape_cast %579 : vector<4x1x16xf32> to vector<4x16xf32>
    %581 = vector.extract_strided_slice %566 {offsets = [0, 7, 0], sizes = [4, 1, 16], strides = [1, 1, 1]} : vector<4x8x16xf32> to vector<4x1x16xf32>
    %582 = vector.shape_cast %581 : vector<4x1x16xf32> to vector<4x16xf32>
    %583 = tpu.concatenate %568, %570, %572, %574, %576, %578, %580, %582 in 1 : vector<4x16xf32>, vector<4x16xf32>, vector<4x16xf32>, vector<4x16xf32>, vector<4x16xf32>, vector<4x16xf32>, vector<4x16xf32>, vector<4x16xf32> -> vector<4x128xf32>
    %c0_200 = arith.constant 0 : index
    %c0_201 = arith.constant 0 : index
    %584 = vector.load %arg7[%c0_200, %c0_201] : memref<8x4xbf16, #tpu.memory_space<vmem>>, vector<8x4xbf16>
    %585 = arith.truncf %583 : vector<4x128xf32> to vector<4x128xbf16>
    %cst_202 = arith.constant dense<0.000000e+00> : vector<8x128xf32>
    %586 = tpu.matmul %584, %585, %cst_202 {dimension_numbers = #tpu.dot_dimension_numbers<[1], [0], [0], [1], [0, 0, 1, 1], [], []>} : vector<8x4xbf16>, vector<4x128xbf16>, vector<8x128xf32> -> vector<8x128xf32>
    %c0_203 = arith.constant 0 : index
    %c0_204 = arith.constant 0 : index
    %587 = vector.load %arg8[%c0_203, %c0_204] : memref<8x1xf32, #tpu.memory_space<vmem>>, vector<8x1xf32>
    %588 = vector.broadcast %587 : vector<8x1xf32> to vector<8x128xf32>
    %589 = arith.addf %586, %588 : vector<8x128xf32>
    %cst_205 = arith.constant 0.000000e+00 : f32
    %590 = vector.broadcast %cst_205 : f32 to vector<8x128xf32>
    %591 = arith.maximumf %589, %590 : vector<8x128xf32>
    %c0_206 = arith.constant 0 : index
    %c0_207 = arith.constant 0 : index
    %592 = vector.load %arg9[%c0_206, %c0_207] : memref<4x8xbf16, #tpu.memory_space<vmem>>, vector<4x8xbf16>
    %593 = arith.truncf %591 : vector<8x128xf32> to vector<8x128xbf16>
    %cst_208 = arith.constant dense<0.000000e+00> : vector<4x128xf32>
    %594 = tpu.matmul %592, %593, %cst_208 {dimension_numbers = #tpu.dot_dimension_numbers<[1], [0], [0], [1], [0, 0, 1, 1], [], []>} : vector<4x8xbf16>, vector<8x128xbf16>, vector<4x128xf32> -> vector<4x128xf32>
    %c0_209 = arith.constant 0 : index
    %c0_210 = arith.constant 0 : index
    %595 = vector.load %arg10[%c0_209, %c0_210] : memref<4x1xf32, #tpu.memory_space<vmem>>, vector<4x1xf32>
    %596 = vector.broadcast %595 : vector<4x1xf32> to vector<4x128xf32>
    %597 = arith.addf %594, %596 : vector<4x128xf32>
    %598 = arith.addf %583, %597 : vector<4x128xf32>
    %c0_211 = arith.constant 0 : index
    %c0_212 = arith.constant 0 : index
    %c0_213 = arith.constant 0 : index
    %599 = vector.load %arg11[%c0_211, %c0_212, %c0_213] : memref<1x4x128xf32, #tpu.memory_space<vmem>>, vector<1x4x128xf32>
    %600 = vector.shape_cast %599 : vector<1x4x128xf32> to vector<4x128xf32>
    %601 = vector.shape_cast %598 : vector<4x128xf32> to vector<1x4x128xf32>
    tpu.vector_store %arg11[%c0_211, %c0_212, %c0_213], %601 {strides = array<i32>} : memref<1x4x128xf32, #tpu.memory_space<vmem>>, vector<1x4x128xf32>,
    return
  }
  func.func @transform_0(%arg0: i32, %arg1: i32) -> (i32, i32, i32, i32) {
    %c0_i32 = arith.constant 0 : i32
    %c0_i32_0 = arith.constant 0 : i32
    %c0_i32_1 = arith.constant 0 : i32
    return %arg1, %c0_i32, %arg0, %c0_i32_0 : i32, i32, i32, i32
  }
  func.func @transform_1(%arg0: i32, %arg1: i32) -> (i32, i32, i32, i32, i32) {
    %c0_i32 = arith.constant 0 : i32
    %c0_i32_0 = arith.constant 0 : i32
    %c0_i32_1 = arith.constant 0 : i32
    %c0_i32_2 = arith.constant 0 : i32
    return %arg1, %arg0, %c0_i32, %c0_i32_0, %c0_i32_1 : i32, i32, i32, i32, i32
  }
  func.func @transform_2(%arg0: i32, %arg1: i32) -> (i32, i32, i32) {
    %c0_i32 = arith.constant 0 : i32
    %c0_i32_0 = arith.constant 0 : i32
    return %arg1, %arg0, %c0_i32 : i32, i32, i32
  }
  func.func @transform_3(%arg0: i32, %arg1: i32) -> (i32, i32, i32, i32) {
    %c0_i32 = arith.constant 0 : i32
    %c0_i32_0 = arith.constant 0 : i32
    %c0_i32_1 = arith.constant 0 : i32
    %c0_i32_2 = arith.constant 0 : i32
    return %arg1, %c0_i32, %c0_i32_0, %c0_i32_1 : i32, i32, i32, i32
  }
  func.func @transform_4(%arg0: i32, %arg1: i32) -> (i32, i32, i32, i32) {
    %c0_i32 = arith.constant 0 : i32
    %c0_i32_0 = arith.constant 0 : i32
    %c0_i32_1 = arith.constant 0 : i32
    %c0_i32_2 = arith.constant 0 : i32
    return %arg1, %c0_i32, %c0_i32_0, %c0_i32_1 : i32, i32, i32, i32
  }
  func.func @transform_5(%arg0: i32, %arg1: i32) -> (i32, i32) {
    %c0_i32 = arith.constant 0 : i32
    %c0_i32_0 = arith.constant 0 : i32
    %c0_i32_1 = arith.constant 0 : i32
    return %c0_i32, %c0_i32_0 : i32, i32
  }
  func.func @transform_6(%arg0: i32, %arg1: i32) -> (i32, i32) {
    %c0_i32 = arith.constant 0 : i32
    %c0_i32_0 = arith.constant 0 : i32
    %c0_i32_1 = arith.constant 0 : i32
    return %c0_i32, %c0_i32_0 : i32, i32
  }
  func.func @transform_7(%arg0: i32, %arg1: i32) -> (i32, i32) {
    %c0_i32 = arith.constant 0 : i32
    %c0_i32_0 = arith.constant 0 : i32
    %c0_i32_1 = arith.constant 0 : i32
    return %c0_i32, %c0_i32_0 : i32, i32
  }
  func.func @transform_8(%arg0: i32, %arg1: i32) -> (i32, i32) {
    %c0_i32 = arith.constant 0 : i32
    %c0_i32_0 = arith.constant 0 : i32
    %c0_i32_1 = arith.constant 0 : i32
    return %c0_i32, %c0_i32_0 : i32, i32
  }
  func.func @transform_9(%arg0: i32, %arg1: i32) -> (i32, i32, i32) {
    %c0_i32 = arith.constant 0 : i32
    %c0_i32_0 = arith.constant 0 : i32
    return %arg1, %c0_i32, %arg0 : i32, i32, i32
  }
}

</mosaic_0001>

<llo_original>
// kernel: optimized_ipg_layer.1
$region0: #{optimized_ipg_layer.1}
  #allocation0 [shape = 'u32[]', space=smem, size = 0x4, offset = 0x4, fixed_abs, tag = 'smem constant byte address 0x4 - core index']
  #allocation1 [shape = 'u32[72,128]{1,0:T(1,128)}', space=vmem, size = 0x9000, scoped, tag = 'internal scratch']
  %s0 = inlined_call_operand.vmem [shape: f32[2,4,16,16], index: 0, kind: input, shape index: {}]
  %s1 = inlined_call_operand.vmem [shape: f32[2,2,4,2,16], index: 1, kind: input, shape index: {}]
  %s2 = inlined_call_operand.vmem [shape: f32[2,16,16], index: 2, kind: input, shape index: {}]
  %s3 = inlined_call_operand.vmem [shape: f32[2,4,1,1], index: 3, kind: input, shape index: {}]
  %s4 = inlined_call_operand.vmem [shape: f32[2,4,1,1], index: 4, kind: input, shape index: {}]
  %s5 = inlined_call_operand.vmem [shape: bf16[8,4], index: 5, kind: input, shape index: {}]
  %s6 = inlined_call_operand.vmem [shape: f32[8,1], index: 6, kind: input, shape index: {}]
  %s7 = inlined_call_operand.vmem [shape: bf16[4,8], index: 7, kind: input, shape index: {}]
  %s8 = inlined_call_operand.vmem [shape: f32[4,1], index: 8, kind: input, shape index: {}]
  %s9 = inlined_call_operand.vmem [shape: f32[2,4,256], index: 9, kind: output, shape index: {}]
  %s10 = sld [smem:[#allocation0]]
  $region107: #{optimized_ipg_layer.1} parent=0
    _
  %s12 = ssub.s32 1, %s10
  %s13 = scalar_select 0, %s12, %s10
  $region1: #{optimized_ipg_layer.1} parent=0
    #allocation2 [shape = 'u8[32768]{0}', space=vmem, size = 0x8000, scoped, tag = 'input window, operand 0']
    loop: start=0, step=1, limit=6
    $region2: #{optimized_ipg_layer.1} parent=1 // loop_pre_header
      _
    $region3: #{optimized_ipg_layer.1} parent=1 // loop_header
      %s15 = sphi 0, %s19
      %p16 = scmp.ge.s32.totalorder %s15, 6
      %s22 = sphi 0, %s34
      %s23 = sphi 0, %s30
      %s24 = sphi 0, %s22
      %s25 = sphi 0, %s23
      %s26 = sphi 0, %s24
      %s27 = sphi 0, %s25
      %s39 = sphi 0, %s41
      %s42 = sphi 0, %s39
      %s43 = sphi 0, %s42
      %s59 = sphi 0, %s43
      %s67 = sphi 0, %s69
      %s70 = sphi 0, %s67
      %s71 = sphi 0, %s70
      %s87 = sphi 0, %s71
      %s95 = sphi 0, %s97
      %s98 = sphi 0, %s95
      %s99 = sphi 0, %s98
      %s115 = sphi 0, %s99
      %s121 = sphi 0, %s123
      %s124 = sphi 0, %s121
      %s125 = sphi 0, %s124
      %s141 = sphi 0, %s125
      %s147 = sphi 0, %s149
      %s150 = sphi 0, %s147
      %s151 = sphi 0, %s150
      %s167 = sphi 0, %s151
      %s171 = sphi 0, %s171
      %s173 = sphi 0, %s171
      %s174 = sphi 0, %s173
      %s188 = sphi 0, %s174
      %s192 = sphi 0, %s192
      %s194 = sphi 0, %s192
      %s195 = sphi 0, %s194
      %s209 = sphi 0, %s195
      %s213 = sphi 0, %s213
      %s215 = sphi 0, %s213
      %s216 = sphi 0, %s215
      %s230 = sphi 0, %s216
      %s234 = sphi 0, %s234
      %s236 = sphi 0, %s234
      %s237 = sphi 0, %s236
      %s251 = sphi 0, %s237
      %s259 = sphi 0, %s261
      %s262 = sphi 0, %s259
      %s263 = sphi 0, %s262
      %s279 = sphi 0, %s263
    $region4: #{optimized_ipg_layer.1} parent=1 // loop_header_branch
      %18 = sbr.rel (%p16) target = $region8
    $region5: #{optimized_ipg_layer.1} parent=1 // loop_body
      %s20 = ssub.s32 %s15, 1
      %s21 = ssub.s32 %s15, 2
      %s28 = sadd.s32 1, %s23
      %p29 = scmp.ge.s32.totalorder %s28, 2
      %s30 = scalar_select %p29, 0, %s28
      %s31 = sadd.s32 1, %s22
      %s32 = scalar_select %p29, %s31, %s22
      %p33 = scmp.ge.s32.totalorder %s32, 2
      %s34 = scalar_select %p33, 0, %s32
      %s35 = ssub.s32 %s23, %s30
      %s36 = ssub.s32 %s22, %s34
      %s37 = sor.u32 %s35, %s36
      %p38 = scmp.eq.s32.totalorder %s37, 0
      %s40 = sadd.s32 %s39, 1
      %s41 = scalar_select %p38, %s39, %s40
      %p44 = pneg %p38
      %p45 = scmp.eq.s32.totalorder %s15, 3
      %p46 = por %p44, %p45
      %p47 = scmp.ne.s32.totalorder %s39, %s42
      %p48 = scmp.eq.s32.totalorder %s15, 0
      %p49 = por %p47, %p48
      %p50 = scmp.ne.s32.totalorder %s39, %s42
      %p51 = scmp.eq.s32.totalorder %s20, 3
      %p52 = por %p50, %p51
      %p53 = scmp.ne.s32.totalorder %s42, %s43
      %p54 = scmp.eq.s32.totalorder %s20, 0
      %p55 = por %p53, %p54
      %p56 = scmp.ne.s32.totalorder %s42, %s43
      %p57 = scmp.eq.s32.totalorder %s21, 3
      %p58 = por %p56, %p57
      %p60 = scmp.ne.s32.totalorder %s43, %s59
      %p61 = scmp.eq.s32.totalorder %s21, 0
      %p62 = por %p60, %p61
      %s63 = ssub.s32 %s23, %s30
      %s64 = ssub.s32 %s22, %s34
      %s65 = sor.u32 %s63, %s64
      %p66 = scmp.eq.s32.totalorder %s65, 0
      %s68 = sadd.s32 %s67, 1
      %s69 = scalar_select %p66, %s67, %s68
      %p72 = pneg %p66
      %p73 = scmp.eq.s32.totalorder %s15, 3
      %p74 = por %p72, %p73
      %p75 = scmp.ne.s32.totalorder %s67, %s70
      %p76 = scmp.eq.s32.totalorder %s15, 0
      %p77 = por %p75, %p76
      %p78 = scmp.ne.s32.totalorder %s67, %s70
      %p79 = scmp.eq.s32.totalorder %s20, 3
      %p80 = por %p78, %p79
      %p81 = scmp.ne.s32.totalorder %s70, %s71
      %p82 = scmp.eq.s32.totalorder %s20, 0
      %p83 = por %p81, %p82
      %p84 = scmp.ne.s32.totalorder %s70, %s71
      %p85 = scmp.eq.s32.totalorder %s21, 3
      %p86 = por %p84, %p85
      %p88 = scmp.ne.s32.totalorder %s71, %s87
      %p89 = scmp.eq.s32.totalorder %s21, 0
      %p90 = por %p88, %p89
      %s91 = ssub.s32 %s23, %s30
      %s92 = ssub.s32 %s22, %s34
      %s93 = sor.u32 %s91, %s92
      %p94 = scmp.eq.s32.totalorder %s93, 0
      %s96 = sadd.s32 %s95, 1
      %s97 = scalar_select %p94, %s95, %s96
      %p100 = pneg %p94
      %p101 = scmp.eq.s32.totalorder %s15, 3
      %p102 = por %p100, %p101
      %p103 = scmp.ne.s32.totalorder %s95, %s98
      %p104 = scmp.eq.s32.totalorder %s15, 0
      %p105 = por %p103, %p104
      %p106 = scmp.ne.s32.totalorder %s95, %s98
      %p107 = scmp.eq.s32.totalorder %s20, 3
      %p108 = por %p106, %p107
      %p109 = scmp.ne.s32.totalorder %s98, %s99
      %p110 = scmp.eq.s32.totalorder %s20, 0
      %p111 = por %p109, %p110
      %p112 = scmp.ne.s32.totalorder %s98, %s99
      %p113 = scmp.eq.s32.totalorder %s21, 3
      %p114 = por %p112, %p113
      %p116 = scmp.ne.s32.totalorder %s99, %s115
      %p117 = scmp.eq.s32.totalorder %s21, 0
      %p118 = por %p116, %p117
      %s119 = ssub.s32 %s23, %s30
      %p120 = scmp.eq.s32.totalorder %s119, 0
      %s122 = sadd.s32 %s121, 1
      %s123 = scalar_select %p120, %s121, %s122
      %p126 = pneg %p120
      %p127 = scmp.eq.s32.totalorder %s15, 3
      %p128 = por %p126, %p127
      %p129 = scmp.ne.s32.totalorder %s121, %s124
      %p130 = scmp.eq.s32.totalorder %s15, 0
      %p131 = por %p129, %p130
      %p132 = scmp.ne.s32.totalorder %s121, %s124
      %p133 = scmp.eq.s32.totalorder %s20, 3
      %p134 = por %p132, %p133
      %p135 = scmp.ne.s32.totalorder %s124, %s125
      %p136 = scmp.eq.s32.totalorder %s20, 0
      %p137 = por %p135, %p136
      %p138 = scmp.ne.s32.totalorder %s124, %s125
      %p139 = scmp.eq.s32.totalorder %s21, 3
      %p140 = por %p138, %p139
      %p142 = scmp.ne.s32.totalorder %s125, %s141
      %p143 = scmp.eq.s32.totalorder %s21, 0
      %p144 = por %p142, %p143
      %s145 = ssub.s32 %s23, %s30
      %p146 = scmp.eq.s32.totalorder %s145, 0
      %s148 = sadd.s32 %s147, 1
      %s149 = scalar_select %p146, %s147, %s148
      %p152 = pneg %p146
      %p153 = scmp.eq.s32.totalorder %s15, 3
      %p154 = por %p152, %p153
      %p155 = scmp.ne.s32.totalorder %s147, %s150
      %p156 = scmp.eq.s32.totalorder %s15, 0
      %p157 = por %p155, %p156
      %p158 = scmp.ne.s32.totalorder %s147, %s150
      %p159 = scmp.eq.s32.totalorder %s20, 3
      %p160 = por %p158, %p159
      %p161 = scmp.ne.s32.totalorder %s150, %s151
      %p162 = scmp.eq.s32.totalorder %s20, 0
      %p163 = por %p161, %p162
      %p164 = scmp.ne.s32.totalorder %s150, %s151
      %p165 = scmp.eq.s32.totalorder %s21, 3
      %p166 = por %p164, %p165
      %p168 = scmp.ne.s32.totalorder %s151, %s167
      %p169 = scmp.eq.s32.totalorder %s21, 0
      %p170 = por %p168, %p169
      %s172 = sadd.s32 %s171, 1
      %p175 = scmp.eq.s32.totalorder %s15, 3
      %p176 = scmp.ne.s32.totalorder %s171, %s173
      %p177 = scmp.eq.s32.totalorder %s15, 0
      %p178 = por %p176, %p177
      %p179 = scmp.ne.s32.totalorder %s171, %s173
      %p180 = scmp.eq.s32.totalorder %s20, 3
      %p181 = por %p179, %p180
      %p182 = scmp.ne.s32.totalorder %s173, %s174
      %p183 = scmp.eq.s32.totalorder %s20, 0
      %p184 = por %p182, %p183
      %p185 = scmp.ne.s32.totalorder %s173, %s174
      %p186 = scmp.eq.s32.totalorder %s21, 3
      %p187 = por %p185, %p186
      %p189 = scmp.ne.s32.totalorder %s174, %s188
      %p190 = scmp.eq.s32.totalorder %s21, 0
      %p191 = por %p189, %p190
      %s193 = sadd.s32 %s192, 1
      %p196 = scmp.eq.s32.totalorder %s15, 3
      %p197 = scmp.ne.s32.totalorder %s192, %s194
      %p198 = scmp.eq.s32.totalorder %s15, 0
      %p199 = por %p197, %p198
      %p200 = scmp.ne.s32.totalorder %s192, %s194
      %p201 = scmp.eq.s32.totalorder %s20, 3
      %p202 = por %p200, %p201
      %p203 = scmp.ne.s32.totalorder %s194, %s195
      %p204 = scmp.eq.s32.totalorder %s20, 0
      %p205 = por %p203, %p204
      %p206 = scmp.ne.s32.totalorder %s194, %s195
      %p207 = scmp.eq.s32.totalorder %s21, 3
      %p208 = por %p206, %p207
      %p210 = scmp.ne.s32.totalorder %s195, %s209
      %p211 = scmp.eq.s32.totalorder %s21, 0
      %p212 = por %p210, %p211
      %s214 = sadd.s32 %s213, 1
      %p217 = scmp.eq.s32.totalorder %s15, 3
      %p218 = scmp.ne.s32.totalorder %s213, %s215
      %p219 = scmp.eq.s32.totalorder %s15, 0
      %p220 = por %p218, %p219
      %p221 = scmp.ne.s32.totalorder %s213, %s215
      %p222 = scmp.eq.s32.totalorder %s20, 3
      %p223 = por %p221, %p222
      %p224 = scmp.ne.s32.totalorder %s215, %s216
      %p225 = scmp.eq.s32.totalorder %s20, 0
      %p226 = por %p224, %p225
      %p227 = scmp.ne.s32.totalorder %s215, %s216
      %p228 = scmp.eq.s32.totalorder %s21, 3
      %p229 = por %p227, %p228
      %p231 = scmp.ne.s32.totalorder %s216, %s230
      %p232 = scmp.eq.s32.totalorder %s21, 0
      %p233 = por %p231, %p232
      %s235 = sadd.s32 %s234, 1
      %p238 = scmp.eq.s32.totalorder %s15, 3
      %p239 = scmp.ne.s32.totalorder %s234, %s236
      %p240 = scmp.eq.s32.totalorder %s15, 0
      %p241 = por %p239, %p240
      %p242 = scmp.ne.s32.totalorder %s234, %s236
      %p243 = scmp.eq.s32.totalorder %s20, 3
      %p244 = por %p242, %p243
      %p245 = scmp.ne.s32.totalorder %s236, %s237
      %p246 = scmp.eq.s32.totalorder %s20, 0
      %p247 = por %p245, %p246
      %p248 = scmp.ne.s32.totalorder %s236, %s237
      %p249 = scmp.eq.s32.totalorder %s21, 3
      %p250 = por %p248, %p249
      %p252 = scmp.ne.s32.totalorder %s237, %s251
      %p253 = scmp.eq.s32.totalorder %s21, 0
      %p254 = por %p252, %p253
      %s255 = ssub.s32 %s23, %s30
      %s256 = ssub.s32 %s22, %s34
      %s257 = sor.u32 %s255, %s256
      %p258 = scmp.eq.s32.totalorder %s257, 0
      %s260 = sadd.s32 %s259, 1
      %s261 = scalar_select %p258, %s259, %s260
      %p264 = pneg %p258
      %p265 = scmp.eq.s32.totalorder %s15, 3
      %p266 = por %p264, %p265
      %p267 = scmp.ne.s32.totalorder %s259, %s262
      %p268 = scmp.eq.s32.totalorder %s15, 0
      %p269 = por %p267, %p268
      %p270 = scmp.ne.s32.totalorder %s259, %s262
      %p271 = scmp.eq.s32.totalorder %s20, 3
      %p272 = por %p270, %p271
      %p273 = scmp.ne.s32.totalorder %s262, %s263
      %p274 = scmp.eq.s32.totalorder %s20, 0
      %p275 = por %p273, %p274
      %p276 = scmp.ne.s32.totalorder %s262, %s263
      %p277 = scmp.eq.s32.totalorder %s21, 3
      %p278 = por %p276, %p277
      %p280 = scmp.ne.s32.totalorder %s263, %s279
      %p281 = scmp.eq.s32.totalorder %s21, 0
      %p282 = por %p280, %p281
      %p283 = scmp.le.s32.totalorder 1, %s15
      %p284 = scmp.lt.s32.totalorder %s15, 5
      %p285 = pnand %p283, %p284
      %p286 = pneg %p285
      // Predicated region
      $region9: #{optimized_ipg_layer.1} parent=5 // pred_check
        _
      $region10: #{optimized_ipg_layer.1} parent=5 // pred_check_branch
        %288 = sbr.rel (%p285) target = $region12
      $region11: #{optimized_ipg_layer.1} parent=5 // pred_region
        %s289 = ssub.s32 %s15, 1
        // Predicated region
        $region13: #{optimized_ipg_layer.1} parent=11 // pred_check
          %p290 = pneg %p184
        $region14: #{optimized_ipg_layer.1} parent=11 // pred_check_branch
          %292 = sbr.rel (%p290) target = $region16
        $region15: #{optimized_ipg_layer.1} parent=11 // pred_region
          _
        $region16: #{optimized_ipg_layer.1} parent=11 // pred_fallthru
          _
        // Predicated region
        $region17: #{optimized_ipg_layer.1} parent=11 // pred_check
          %p293 = pneg %p205
        $region18: #{optimized_ipg_layer.1} parent=11 // pred_check_branch
          %295 = sbr.rel (%p293) target = $region20
        $region19: #{optimized_ipg_layer.1} parent=11 // pred_region
          _
        $region20: #{optimized_ipg_layer.1} parent=11 // pred_fallthru
          _
        // Predicated region
        $region21: #{optimized_ipg_layer.1} parent=11 // pred_check
          %p296 = pneg %p226
        $region22: #{optimized_ipg_layer.1} parent=11 // pred_check_branch
          %298 = sbr.rel (%p296) target = $region24
        $region23: #{optimized_ipg_layer.1} parent=11 // pred_region
          _
        $region24: #{optimized_ipg_layer.1} parent=11 // pred_fallthru
          _
        // Predicated region
        $region25: #{optimized_ipg_layer.1} parent=11 // pred_check
          %p299 = pneg %p247
        $region26: #{optimized_ipg_layer.1} parent=11 // pred_check_branch
          %301 = sbr.rel (%p299) target = $region28
        $region27: #{optimized_ipg_layer.1} parent=11 // pred_region
          _
        $region28: #{optimized_ipg_layer.1} parent=11 // pred_fallthru
          _
      $region12: #{optimized_ipg_layer.1} parent=5 // pred_fallthru
        _
      %p302 = scmp.lt.s32.totalorder %s15, 4
      // Predicated region
      $region29: #{optimized_ipg_layer.1} parent=5 // pred_check
        %p303 = pneg %p302
      $region30: #{optimized_ipg_layer.1} parent=5 // pred_check_branch
        %305 = sbr.rel (%p303) target = $region32
      $region31: #{optimized_ipg_layer.1} parent=5 // pred_region
        // Predicated region
        $region33: #{optimized_ipg_layer.1} parent=31 // pred_check
          %p306 = pneg %p49
        $region34: #{optimized_ipg_layer.1} parent=31 // pred_check_branch
          %308 = sbr.rel (%p306) target = $region36
        $region35: #{optimized_ipg_layer.1} parent=31 // pred_region
          %s309 = sand.u32 %s39, 1
          %s310 = sand.u32 %s39, 1
          %s311 = smul.addr %s310, 32
          %s312 = scalar_lea.vmem [#allocation2], %s311
          %s313 = smul.addr %s23, 8
          %s314 = sadd.s32 %s22, %s313
          %s315 = smul.addr %s314, 8
          %s316 = scalar_lea.vmem %s0, %s315
          // Predicated region
          $region37: #{optimized_ipg_layer.1} parent=35 // pred_check
            _
          $region38: #{optimized_ipg_layer.1} parent=35 // pred_check_branch
            %318 = sbr.rel (0) target = $region40
          $region39: #{optimized_ipg_layer.1} parent=35 // pred_region
            // Predicated region
            $region41: #{optimized_ipg_layer.1} parent=39 // pred_check
              _
            $region42: #{optimized_ipg_layer.1} parent=39 // pred_check_branch
              %320 = sbr.rel (0) target = $region44
            $region43: #{optimized_ipg_layer.1} parent=39 // pred_region
              // Predicated region
              $region56: #{optimized_ipg_layer.1} parent=43 // pred_check
                _
              $region57: #{optimized_ipg_layer.1} parent=43 // pred_check_branch
                %342 = sbr.rel (0) target = $region59
              $region58: #{optimized_ipg_layer.1} parent=43 // pred_region
                loop: start=0, step=1, limit=1
                $region60: #{optimized_ipg_layer.1} parent=58 // loop_pre_header
                  _
                $region61: #{optimized_ipg_layer.1} parent=58 // loop_header
                  %s344 = sphi 0, %s348
                  %p345 = scmp.ge.s32.totalorder %s344, 1
                  %s349 = sphi %s316, %s316
                  %s350 = sphi %s312, %s312
                $region62: #{optimized_ipg_layer.1} parent=58 // loop_header_branch
                  %347 = sbr.rel (%p345) target = $region66
                $region63: #{optimized_ipg_layer.1} parent=58 // loop_body
                  %v351 = vld [vmem:[%s349] sm:$0xff]
                  %352 = vst [vmem:[%s350] sm:$0xff] %v351
                  %v353 = vld [vmem:[%s349 + $0x10] sm:$0xff]
                  %354 = vst [vmem:[%s350 + $0x8] sm:$0xff] %v353
                  %v355 = vld [vmem:[%s349 + $0x20] sm:$0xff]
                  %356 = vst [vmem:[%s350 + $0x10] sm:$0xff] %v355
                  %v357 = vld [vmem:[%s349 + $0x30] sm:$0xff]
                  %358 = vst [vmem:[%s350 + $0x18] sm:$0xff] %v357
                $region64: #{optimized_ipg_layer.1} parent=58 // loop_footer
                  %s348 = sadd.s32 1, %s344
                $region65: #{optimized_ipg_layer.1} parent=58 // loop_footer_branch
                  %343 = sbr.rel target = $region61
                $region66: #{optimized_ipg_layer.1} parent=58 // loop_exit
                  _
              $region59: #{optimized_ipg_layer.1} parent=43 // pred_fallthru
                _
              // Predicated region
              $region67: #{optimized_ipg_layer.1} parent=43 // pred_check
                _
              $region68: #{optimized_ipg_layer.1} parent=43 // pred_check_branch
                %360 = sbr.rel target = $region70
              $region69: #{optimized_ipg_layer.1} parent=43 // pred_region
                _
              $region70: #{optimized_ipg_layer.1} parent=43 // pred_fallthru
                _
            $region44: #{optimized_ipg_layer.1} parent=39 // pred_fallthru
              _
            // Predicated region
            $region45: #{optimized_ipg_layer.1} parent=39 // pred_check
              _
            $region46: #{optimized_ipg_layer.1} parent=39 // pred_check_branch
              %322 = sbr.rel target = $region48
            $region47: #{optimized_ipg_layer.1} parent=39 // pred_region
              %s324 = ssub.s32 256, 1
              loop: start=0, step=1, limit=1
              $region49: #{optimized_ipg_layer.1} parent=47 // loop_pre_header
                _
              $region50: #{optimized_ipg_layer.1} parent=47 // loop_header
                %s326 = sphi 0, %s330
                %p327 = scmp.ge.s32.totalorder %s326, 1
                %s331 = sphi %s316, %s316
                %s332 = sphi %s312, %s312
              $region51: #{optimized_ipg_layer.1} parent=47 // loop_header_branch
                %329 = sbr.rel (%p327) target = $region55
              $region52: #{optimized_ipg_layer.1} parent=47 // loop_body
                %v333 = vld [vmem:[%s331] sm:%s324]
                %334 = vst [vmem:[%s332] sm:%s324] %v333
                %v335 = vld [vmem:[%s331 + $0x10] sm:%s324]
                %336 = vst [vmem:[%s332 + $0x8] sm:%s324] %v335
                %v337 = vld [vmem:[%s331 + $0x20] sm:%s324]
                %338 = vst [vmem:[%s332 + $0x10] sm:%s324] %v337
                %v339 = vld [vmem:[%s331 + $0x30] sm:%s324]
                %340 = vst [vmem:[%s332 + $0x18] sm:%s324] %v339
              $region53: #{optimized_ipg_layer.1} parent=47 // loop_footer
                %s330 = sadd.s32 1, %s326
              $region54: #{optimized_ipg_layer.1} parent=47 // loop_footer_branch
                %325 = sbr.rel target = $region50
              $region55: #{optimized_ipg_layer.1} parent=47 // loop_exit
                _
            $region48: #{optimized_ipg_layer.1} parent=39 // pred_fallthru
              _
          $region40: #{optimized_ipg_layer.1} parent=35 // pred_fallthru
            _
          %361 = vnop
        $region36: #{optimized_ipg_layer.1} parent=31 // pred_fallthru
          _
        // Predicated region
        $region71: #{optimized_ipg_layer.1} parent=31 // pred_check
          %p362 = pneg %p77
        $region72: #{optimized_ipg_layer.1} parent=31 // pred_check_branch
          %364 = sbr.rel (%p362) target = $region74
        $region73: #{optimized_ipg_layer.1} parent=31 // pred_region
          %p365 = scmp.lt.s32.totalorder %s23, 1
          %s366 = scalar_select %p365, %s23, 1
          %p367 = scmp.lt.s32.totalorder %s22, 1
          %s368 = scalar_select %p367, %s22, 1
          %s369 = smul.addr %s368, 4
          %s370 = smul.addr %s366, 8
          %s371 = sadd.s32 %s369, %s370
          %s372 = smul.addr %s371, 2
          %s373 = scalar_lea.vmem %s1, %s372
        $region74: #{optimized_ipg_layer.1} parent=31 // pred_fallthru
          _
        // Predicated region
        $region75: #{optimized_ipg_layer.1} parent=31 // pred_check
          %p374 = pneg %p105
        $region76: #{optimized_ipg_layer.1} parent=31 // pred_check_branch
          %376 = sbr.rel (%p374) target = $region78
        $region77: #{optimized_ipg_layer.1} parent=31 // pred_region
          %p377 = scmp.lt.s32.totalorder %s23, 1
          %s378 = scalar_select %p377, %s23, 1
          %p379 = scmp.lt.s32.totalorder %s22, 1
          %s380 = scalar_select %p379, %s22, 1
          %s381 = smul.addr %s378, 2
          %s382 = sadd.s32 %s380, %s381
          %s383 = smul.addr %s382, 8
          %s384 = scalar_lea.vmem %s2, %s383
        $region78: #{optimized_ipg_layer.1} parent=31 // pred_fallthru
          _
        // Predicated region
        $region79: #{optimized_ipg_layer.1} parent=31 // pred_check
          %p385 = pneg %p131
        $region80: #{optimized_ipg_layer.1} parent=31 // pred_check_branch
          %387 = sbr.rel (%p385) target = $region82
        $region81: #{optimized_ipg_layer.1} parent=31 // pred_region
          %p388 = scmp.lt.s32.totalorder %s23, 1
          %s389 = scalar_select %p388, %s23, 1
          %s390 = smul.addr %s389, 4
          %s391 = scalar_lea.vmem %s3, %s390
        $region82: #{optimized_ipg_layer.1} parent=31 // pred_fallthru
          _
        // Predicated region
        $region83: #{optimized_ipg_layer.1} parent=31 // pred_check
          %p392 = pneg %p157
        $region84: #{optimized_ipg_layer.1} parent=31 // pred_check_branch
          %394 = sbr.rel (%p392) target = $region86
        $region85: #{optimized_ipg_layer.1} parent=31 // pred_region
          %p395 = scmp.lt.s32.totalorder %s23, 1
          %s396 = scalar_select %p395, %s23, 1
          %s397 = smul.addr %s396, 4
          %s398 = scalar_lea.vmem %s4, %s397
        $region86: #{optimized_ipg_layer.1} parent=31 // pred_fallthru
          _
      $region32: #{optimized_ipg_layer.1} parent=5 // pred_fallthru
        _
      %p399 = scmp.le.s32.totalorder 1, %s15
      %p400 = scmp.lt.s32.totalorder %s15, 5
      %p401 = pnand %p399, %p400
      %p402 = pneg %p401
      // Predicated region
      $region87: #{optimized_ipg_layer.1} parent=5 // pred_check
        _
      $region88: #{optimized_ipg_layer.1} parent=5 // pred_check_branch
        %404 = sbr.rel (%p401) target = $region90
      $region89: #{optimized_ipg_layer.1} parent=5 // pred_region
        %s405 = ssub.s32 %s15, 1
        %s406 = sand.u32 %s42, 1
        %s407 = sand.u32 %s42, 1
        %s408 = smul.addr %s407, 32
        %s409 = scalar_lea.vmem [#allocation2], %s408
        // Predicated region
        $region91: #{optimized_ipg_layer.1} parent=89 // pred_check
          %p410 = pneg %p55
        $region92: #{optimized_ipg_layer.1} parent=89 // pred_check_branch
          %412 = sbr.rel (%p410) target = $region94
        $region93: #{optimized_ipg_layer.1} parent=89 // pred_region
          _
        $region94: #{optimized_ipg_layer.1} parent=89 // pred_fallthru
          _
        %s413 = sand.u32 %s42, 1
        %s414 = sand.u32 %s42, 1
        %s415 = smul.addr %s414, 32
        %s416 = scalar_lea.vmem [#allocation2], %s415
        %p417 = pneg %p55
        %p418 = pneg %p52
        %p419 = scmp.lt.s32.totalorder %s25, 1
        %s420 = scalar_select %p419, %s25, 1
        %p421 = scmp.lt.s32.totalorder %s24, 1
        %s422 = scalar_select %p421, %s24, 1
        %s423 = smul.addr %s422, 4
        %s424 = smul.addr %s420, 8
        %s425 = sadd.s32 %s423, %s424
        %s426 = smul.addr %s425, 2
        %s427 = scalar_lea.vmem %s1, %s426
        %p428 = pneg %p83
        %p429 = pneg %p80
        %p430 = scmp.lt.s32.totalorder %s25, 1
        %s431 = scalar_select %p430, %s25, 1
        %p432 = scmp.lt.s32.totalorder %s24, 1
        %s433 = scalar_select %p432, %s24, 1
        %s434 = smul.addr %s431, 2
        %s435 = sadd.s32 %s433, %s434
        %s436 = smul.addr %s435, 8
        %s437 = scalar_lea.vmem %s2, %s436
        %p438 = pneg %p111
        %p439 = pneg %p108
        %p440 = scmp.lt.s32.totalorder %s25, 1
        %s441 = scalar_select %p440, %s25, 1
        %s442 = smul.addr %s441, 4
        %s443 = scalar_lea.vmem %s3, %s442
        %p444 = pneg %p137
        %p445 = pneg %p134
        %p446 = scmp.lt.s32.totalorder %s25, 1
        %s447 = scalar_select %p446, %s25, 1
        %s448 = smul.addr %s447, 4
        %s449 = scalar_lea.vmem %s4, %s448
        %p450 = pneg %p163
        %p451 = pneg %p160
        %p452 = pneg %p184
        %p453 = pneg %p181
        %p454 = pneg %p205
        %p455 = pneg %p202
        %p456 = pneg %p226
        %p457 = pneg %p223
        %p458 = pneg %p247
        %p459 = pneg %p244
        %p460 = pneg %p275
        %p461 = pneg %p272
        %p462 = scmp.lt.s32.totalorder %s25, 1
        %s463 = scalar_select %p462, %s25, 1
        %p464 = scmp.lt.s32.totalorder %s24, 1
        %s465 = scalar_select %p464, %s24, 1
        %s466 = smul.addr %s463, 2
        %s467 = sadd.s32 %s465, %s466
        %s468 = smul.addr %s467, 4
        %s469 = scalar_lea.vmem %s9, %s468
        %p470 = scmp.lt.s32.totalorder %s25, 1
        %s471 = scalar_select %p470, %s25, 1
        %p472 = scmp.lt.s32.totalorder %s24, 1
        %s473 = scalar_select %p472, %s24, 1
        %s474 = smul.addr %s473, 4
        %s475 = smul.addr %s471, 8
        %s476 = sadd.s32 %s474, %s475
        %s477 = smul.addr %s476, 2
        %s478 = scalar_lea.vmem %s1, %s477
        %p479 = scmp.lt.s32.totalorder %s25, 1
        %s480 = scalar_select %p479, %s25, 1
        %p481 = scmp.lt.s32.totalorder %s24, 1
        %s482 = scalar_select %p481, %s24, 1
        %s483 = smul.addr %s480, 2
        %s484 = sadd.s32 %s482, %s483
        %s485 = smul.addr %s484, 8
        %s486 = scalar_lea.vmem %s2, %s485
        %p487 = scmp.lt.s32.totalorder %s25, 1
        %s488 = scalar_select %p487, %s25, 1
        %s489 = smul.addr %s488, 4
        %s490 = scalar_lea.vmem %s3, %s489
        %p491 = scmp.lt.s32.totalorder %s25, 1
        %s492 = scalar_select %p491, %s25, 1
        %s493 = smul.addr %s492, 4
        %s494 = scalar_lea.vmem %s4, %s493
        %p495 = scmp.lt.s32.totalorder %s25, 1
        %s496 = scalar_select %p495, %s25, 1
        %p497 = scmp.lt.s32.totalorder %s24, 1
        %s498 = scalar_select %p497, %s24, 1
        %s499 = smul.addr %s496, 2
        %s500 = sadd.s32 %s498, %s499
        %s501 = smul.addr %s500, 4
        %s502 = scalar_lea.vmem %s9, %s501
        %v504 = vld [vmem:[%s409] sm:$0xff]
        %v505 = vld [vmem:[%s409 + $0x8] sm:$0xff]
        %v506 = vld [vmem:[%s409 + $0x10] sm:$0xff]
        %v507 = vld [vmem:[%s409 + $0x18] sm:$0xff]
        %v508 = vld [vmem:[%s478] sm:$0x3]
        %v509 = vld [vmem:[%s478 + $0x2] sm:$0x3]
        %v510 = vld [vmem:[%s478 + $0x4] sm:$0x3]
        %v511 = vld [vmem:[%s478 + $0x6] sm:$0x3]
        %v516 = vrot.slane %v504, 7
        %v517 = vrot.slane %v505, 7
        %v518 = vrot.slane %v506, 7
        %v519 = vrot.slane %v507, 7
        %vm524 = vcmask 1040384
        %v525 = vsel %vm524, %v508, %v516
        %v526 = vsel %vm524, %v509, %v517
        %v527 = vsel %vm524, %v510, %v518
        %v528 = vsel %vm524, %v511, %v519
        %v529 = vsel %vm524, %v516, %v508
        %v530 = vsel %vm524, %v517, %v509
        %v531 = vsel %vm524, %v518, %v510
        %v532 = vsel %vm524, %v519, %v511
        %541 = vrot.lane.b32.xlu0 %v525, 1
        %v542 = vpop.permute.xlu0 %541
        %543 = vrot.lane.b32.xlu0 %v529, 1
        %v544 = vpop.permute.xlu0 %543
        %545 = vrot.lane.b32.xlu0 %v526, 1
        %v546 = vpop.permute.xlu0 %545
        %547 = vrot.lane.b32.xlu0 %v530, 1
        %v548 = vpop.permute.xlu0 %547
        %549 = vrot.lane.b32.xlu0 %v527, 1
        %v550 = vpop.permute.xlu0 %549
        %551 = vrot.lane.b32.xlu0 %v531, 1
        %v552 = vpop.permute.xlu0 %551
        %553 = vrot.lane.b32.xlu0 %v528, 1
        %v554 = vpop.permute.xlu0 %553
        %555 = vrot.lane.b32.xlu0 %v532, 1
        %v556 = vpop.permute.xlu0 %555
        %vm565 = vcmask 7168
        %v566 = vsel %vm565, 0.0, %v542
        %v567 = vsel %vm565, 0.0, %v544
        %v568 = vsel %vm565, 0.0, %v546
        %v569 = vsel %vm565, 0.0, %v548
        %v570 = vsel %vm565, 0.0, %v550
        %v571 = vsel %vm565, 0.0, %v552
        %v572 = vsel %vm565, 0.0, %v554
        %v573 = vsel %vm565, 0.0, %v556
        %574 = vrot.lane.b32.xlu0 %v525, 127
        %v575 = vpop.permute.xlu0 %574
        %576 = vrot.lane.b32.xlu0 %v529, 127
        %v577 = vpop.permute.xlu0 %576
        %578 = vrot.lane.b32.xlu0 %v526, 127
        %v579 = vpop.permute.xlu0 %578
        %580 = vrot.lane.b32.xlu0 %v530, 127
        %v581 = vpop.permute.xlu0 %580
        %582 = vrot.lane.b32.xlu0 %v527, 127
        %v583 = vpop.permute.xlu0 %582
        %584 = vrot.lane.b32.xlu0 %v531, 127
        %v585 = vpop.permute.xlu0 %584
        %586 = vrot.lane.b32.xlu0 %v528, 127
        %v587 = vpop.permute.xlu0 %586
        %588 = vrot.lane.b32.xlu0 %v532, 127
        %v589 = vpop.permute.xlu0 %588
        %vm598 = vcmask 121856
        %v599 = vsel %vm598, %v575, 0.0
        %v600 = vsel %vm598, %v577, 0.0
        %v601 = vsel %vm598, %v579, 0.0
        %v602 = vsel %vm598, %v581, 0.0
        %v603 = vsel %vm598, %v583, 0.0
        %v604 = vsel %vm598, %v585, 0.0
        %v605 = vsel %vm598, %v587, 0.0
        %v606 = vsel %vm598, %v589, 0.0
        %v607 = vmul.f32 %v566, %v566
        %v608 = vmul.f32 %v567, %v567
        %v609 = vmul.f32 %v568, %v568
        %v610 = vmul.f32 %v569, %v569
        %v611 = vmul.f32 %v570, %v570
        %v612 = vmul.f32 %v571, %v571
        %v613 = vmul.f32 %v572, %v572
        %v614 = vmul.f32 %v573, %v573
        %vm615 = vcmask 130048
        %v616 = vsel %vm615, %v607, 0.0
        %v617 = vsel %vm615, %v609, 0.0
        %v618 = vadd.f32 %v616, %v617
        %v619 = vsel %vm615, %v611, 0.0
        %v620 = vadd.f32 %v618, %v619
        %v621 = vsel %vm615, %v613, 0.0
        %v622 = vadd.f32 %v620, %v621
        %vm623 = vcmask 123904
        %v624 = vsel %vm623, %v608, 0.0
        %v625 = vsel %vm623, %v610, 0.0
        %v626 = vadd.f32 %v624, %v625
        %v627 = vsel %vm623, %v612, 0.0
        %v628 = vadd.f32 %v626, %v627
        %v629 = vsel %vm623, %v614, 0.0
        %v630 = vadd.f32 %v628, %v629
        %v631 = vmax.f32 %v622, 1e-24
        %v632 = vmax.f32 %v630, 1e-24
        %v633 = vrsqrt.pop %v631
        %v634 = vmul.f32 %v633, %v631
        %v635 = vmul.f32 %v634, %v633
        %v636 = vmul.f32 0.5, %v635
        %v637 = vsub.f32 1.5, %v636
        %v638 = vmul.f32 %v633, %v637
        %vm639 = vweird.f32 %v631
        %vm640 = vweird.f32 %v633
        %vm641 = vmor %vm639, %vm640
        %v642 = vsel %vm641, %v633, %v638
        %v643 = vrsqrt.pop %v632
        %v644 = vmul.f32 %v643, %v632
        %v645 = vmul.f32 %v644, %v643
        %v646 = vmul.f32 0.5, %v645
        %v647 = vsub.f32 1.5, %v646
        %v648 = vmul.f32 %v643, %v647
        %vm649 = vweird.f32 %v632
        %vm650 = vweird.f32 %v643
        %vm651 = vmor %vm649, %vm650
        %v652 = vsel %vm651, %v643, %v648
        %v653 = vmul.f32 %v525, %v525
        %v654 = vmul.f32 %v529, %v529
        %v655 = vmul.f32 %v526, %v526
        %v656 = vmul.f32 %v530, %v530
        %v657 = vmul.f32 %v527, %v527
        %v658 = vmul.f32 %v531, %v531
        %v659 = vmul.f32 %v528, %v528
        %v660 = vmul.f32 %v532, %v532
        %v661 = vsel %vm615, %v653, 0.0
        %v662 = vsel %vm615, %v655, 0.0
        %v663 = vadd.f32 %v661, %v662
        %v664 = vsel %vm615, %v657, 0.0
        %v665 = vadd.f32 %v663, %v664
        %v666 = vsel %vm615, %v659, 0.0
        %v667 = vadd.f32 %v665, %v666
        %v668 = vsel %vm623, %v654, 0.0
        %v669 = vsel %vm623, %v656, 0.0
        %v670 = vadd.f32 %v668, %v669
        %v671 = vsel %vm623, %v658, 0.0
        %v672 = vadd.f32 %v670, %v671
        %v673 = vsel %vm623, %v660, 0.0
        %v674 = vadd.f32 %v672, %v673
        %v675 = vmax.f32 %v667, 1e-24
        %v676 = vmax.f32 %v674, 1e-24
        %v677 = vrsqrt.pop %v675
        %v678 = vmul.f32 %v677, %v675
        %v679 = vmul.f32 %v678, %v677
        %v680 = vmul.f32 0.5, %v679
        %v681 = vsub.f32 1.5, %v680
        %v682 = vmul.f32 %v677, %v681
        %vm683 = vweird.f32 %v675
        %vm684 = vweird.f32 %v677
        %vm685 = vmor %vm683, %vm684
        %v686 = vsel %vm685, %v677, %v682
        %v687 = vrsqrt.pop %v676
        %v688 = vmul.f32 %v687, %v676
        %v689 = vmul.f32 %v688, %v687
        %v690 = vmul.f32 0.5, %v689
        %v691 = vsub.f32 1.5, %v690
        %v692 = vmul.f32 %v687, %v691
        %vm693 = vweird.f32 %v676
        %vm694 = vweird.f32 %v687
        %vm695 = vmor %vm693, %vm694
        %v696 = vsel %vm695, %v687, %v692
        %v697 = vmul.f32 %v599, %v599
        %v698 = vmul.f32 %v600, %v600
        %v699 = vmul.f32 %v601, %v601
        %v700 = vmul.f32 %v602, %v602
        %v701 = vmul.f32 %v603, %v603
        %v702 = vmul.f32 %v604, %v604
        %v703 = vmul.f32 %v605, %v605
        %v704 = vmul.f32 %v606, %v606
        %v705 = vsel %vm615, %v697, 0.0
        %v706 = vsel %vm615, %v699, 0.0
        %v707 = vadd.f32 %v705, %v706
        %v708 = vsel %vm615, %v701, 0.0
        %v709 = vadd.f32 %v707, %v708
        %v710 = vsel %vm615, %v703, 0.0
        %v711 = vadd.f32 %v709, %v710
        %v712 = vsel %vm623, %v698, 0.0
        %v713 = vsel %vm623, %v700, 0.0
        %v714 = vadd.f32 %v712, %v713
        %v715 = vsel %vm623, %v702, 0.0
        %v716 = vadd.f32 %v714, %v715
        %v717 = vsel %vm623, %v704, 0.0
        %v718 = vadd.f32 %v716, %v717
        %v719 = vmax.f32 %v711, 1e-24
        %v720 = vmax.f32 %v718, 1e-24
        %v721 = vrsqrt.pop %v719
        %v722 = vmul.f32 %v721, %v719
        %v723 = vmul.f32 %v722, %v721
        %v724 = vmul.f32 0.5, %v723
        %v725 = vsub.f32 1.5, %v724
        %v726 = vmul.f32 %v721, %v725
        %vm727 = vweird.f32 %v719
        %vm728 = vweird.f32 %v721
        %vm729 = vmor %vm727, %vm728
        %v730 = vsel %vm729, %v721, %v726
        %v731 = vrsqrt.pop %v720
        %v732 = vmul.f32 %v731, %v720
        %v733 = vmul.f32 %v732, %v731
        %v734 = vmul.f32 0.5, %v733
        %v735 = vsub.f32 1.5, %v734
        %v736 = vmul.f32 %v731, %v735
        %vm737 = vweird.f32 %v720
        %vm738 = vweird.f32 %v731
        %vm739 = vmor %vm737, %vm738
        %v740 = vsel %vm739, %v731, %v736
        %v745 = vrot.slane %v566, 7
        %v746 = vrot.slane %v568, 7
        %v747 = vrot.slane %v570, 7
        %v748 = vrot.slane %v572, 7
        %v753 = vmul.f32 %v525, %v745
        %v754 = vmul.f32 %v529, %v745
        %v755 = vmul.f32 %v526, %v746
        %v756 = vmul.f32 %v530, %v746
        %v757 = vmul.f32 %v527, %v747
        %v758 = vmul.f32 %v531, %v747
        %v759 = vmul.f32 %v528, %v748
        %v760 = vmul.f32 %v532, %v748
        %vm761 = vcmask 130049
        %v762 = vsel %vm761, %v753, 0.0
        %v763 = vsel %vm761, %v755, 0.0
        %v764 = vadd.f32 %v762, %v763
        %v765 = vsel %vm761, %v757, 0.0
        %v766 = vadd.f32 %v764, %v765
        %v767 = vsel %vm761, %v759, 0.0
        %v768 = vadd.f32 %v766, %v767
        %vm769 = vcmask 122880
        %v770 = vsel %vm769, %v754, 0.0
        %v771 = vsel %vm769, %v756, 0.0
        %v772 = vadd.f32 %v770, %v771
        %v773 = vsel %vm769, %v758, 0.0
        %v774 = vadd.f32 %v772, %v773
        %v775 = vsel %vm769, %v760, 0.0
        %v776 = vadd.f32 %v774, %v775
        %v777 = vmul.f32 %v768, %v686
        %v778 = vmul.f32 %v776, %v696
        %v780 = vrot.slane %v642, 7
        %v782 = vmul.f32 %v777, %v780
        %v783 = vmul.f32 %v778, %v780
        %v784 = vrot.slane %v525, 7
        %v785 = vrot.slane %v526, 7
        %v786 = vrot.slane %v527, 7
        %v787 = vrot.slane %v528, 7
        %v792 = vmul.f32 %v525, %v784
        %v793 = vmul.f32 %v529, %v784
        %v794 = vmul.f32 %v526, %v785
        %v795 = vmul.f32 %v530, %v785
        %v796 = vmul.f32 %v527, %v786
        %v797 = vmul.f32 %v531, %v786
        %v798 = vmul.f32 %v528, %v787
        %v799 = vmul.f32 %v532, %v787
        %v800 = vsel %vm761, %v792, 0.0
        %v801 = vsel %vm761, %v794, 0.0
        %v802 = vadd.f32 %v800, %v801
        %v803 = vsel %vm761, %v796, 0.0
        %v804 = vadd.f32 %v802, %v803
        %v805 = vsel %vm761, %v798, 0.0
        %v806 = vadd.f32 %v804, %v805
        %v807 = vsel %vm769, %v793, 0.0
        %v808 = vsel %vm769, %v795, 0.0
        %v809 = vadd.f32 %v807, %v808
        %v810 = vsel %vm769, %v797, 0.0
        %v811 = vadd.f32 %v809, %v810
        %v812 = vsel %vm769, %v799, 0.0
        %v813 = vadd.f32 %v811, %v812
        %v814 = vmul.f32 %v806, %v686
        %v815 = vmul.f32 %v813, %v696
        %v817 = vrot.slane %v686, 7
        %v819 = vmul.f32 %v814, %v817
        %v820 = vmul.f32 %v815, %v817
        %v825 = vrot.slane %v599, 7
        %v826 = vrot.slane %v601, 7
        %v827 = vrot.slane %v603, 7
        %v828 = vrot.slane %v605, 7
        %v833 = vmul.f32 %v525, %v825
        %v834 = vmul.f32 %v529, %v825
        %v835 = vmul.f32 %v526, %v826
        %v836 = vmul.f32 %v530, %v826
        %v837 = vmul.f32 %v527, %v827
        %v838 = vmul.f32 %v531, %v827
        %v839 = vmul.f32 %v528, %v828
        %v840 = vmul.f32 %v532, %v828
        %v841 = vsel %vm761, %v833, 0.0
        %v842 = vsel %vm761, %v835, 0.0
        %v843 = vadd.f32 %v841, %v842
        %v844 = vsel %vm761, %v837, 0.0
        %v845 = vadd.f32 %v843, %v844
        %v846 = vsel %vm761, %v839, 0.0
        %v847 = vadd.f32 %v845, %v846
        %v848 = vsel %vm769, %v834, 0.0
        %v849 = vsel %vm769, %v836, 0.0
        %v850 = vadd.f32 %v848, %v849
        %v851 = vsel %vm769, %v838, 0.0
        %v852 = vadd.f32 %v850, %v851
        %v853 = vsel %vm769, %v840, 0.0
        %v854 = vadd.f32 %v852, %v853
        %v855 = vmul.f32 %v847, %v686
        %v856 = vmul.f32 %v854, %v696
        %v858 = vrot.slane %v730, 7
        %v860 = vmul.f32 %v855, %v858
        %v861 = vmul.f32 %v856, %v858
        %v862 = vmul.f32 %v525, %v566
        %v863 = vmul.f32 %v529, %v567
        %v864 = vmul.f32 %v526, %v568
        %v865 = vmul.f32 %v530, %v569
        %v866 = vmul.f32 %v527, %v570
        %v867 = vmul.f32 %v531, %v571
        %v868 = vmul.f32 %v528, %v572
        %v869 = vmul.f32 %v532, %v573
        %v870 = vsel %vm761, %v862, 0.0
        %v871 = vsel %vm761, %v864, 0.0
        %v872 = vadd.f32 %v870, %v871
        %v873 = vsel %vm761, %v866, 0.0
        %v874 = vadd.f32 %v872, %v873
        %v875 = vsel %vm761, %v868, 0.0
        %v876 = vadd.f32 %v874, %v875
        %v877 = vsel %vm769, %v863, 0.0
        %v878 = vsel %vm769, %v865, 0.0
        %v879 = vadd.f32 %v877, %v878
        %v880 = vsel %vm769, %v867, 0.0
        %v881 = vadd.f32 %v879, %v880
        %v882 = vsel %vm769, %v869, 0.0
        %v883 = vadd.f32 %v881, %v882
        %v884 = vmul.f32 %v876, %v686
        %v885 = vmul.f32 %v883, %v696
        %v886 = vmul.f32 %v884, %v642
        %v887 = vmul.f32 %v885, %v652
        %v888 = vsel %vm761, %v653, 0.0
        %v889 = vsel %vm761, %v655, 0.0
        %v890 = vadd.f32 %v888, %v889
        %v891 = vsel %vm761, %v657, 0.0
        %v892 = vadd.f32 %v890, %v891
        %v893 = vsel %vm761, %v659, 0.0
        %v894 = vadd.f32 %v892, %v893
        %v895 = vsel %vm769, %v654, 0.0
        %v896 = vsel %vm769, %v656, 0.0
        %v897 = vadd.f32 %v895, %v896
        %v898 = vsel %vm769, %v658, 0.0
        %v899 = vadd.f32 %v897, %v898
        %v900 = vsel %vm769, %v660, 0.0
        %v901 = vadd.f32 %v899, %v900
        %v902 = vmul.f32 %v894, %v686
        %v903 = vmul.f32 %v901, %v696
        %v904 = vmul.f32 %v902, %v686
        %v905 = vmul.f32 %v903, %v696
        %v906 = vmul.f32 %v525, %v599
        %v907 = vmul.f32 %v529, %v600
        %v908 = vmul.f32 %v526, %v601
        %v909 = vmul.f32 %v530, %v602
        %v910 = vmul.f32 %v527, %v603
        %v911 = vmul.f32 %v531, %v604
        %v912 = vmul.f32 %v528, %v605
        %v913 = vmul.f32 %v532, %v606
        %v914 = vsel %vm761, %v906, 0.0
        %v915 = vsel %vm761, %v908, 0.0
        %v916 = vadd.f32 %v914, %v915
        %v917 = vsel %vm761, %v910, 0.0
        %v918 = vadd.f32 %v916, %v917
        %v919 = vsel %vm761, %v912, 0.0
        %v920 = vadd.f32 %v918, %v919
        %v921 = vsel %vm769, %v907, 0.0
        %v922 = vsel %vm769, %v909, 0.0
        %v923 = vadd.f32 %v921, %v922
        %v924 = vsel %vm769, %v911, 0.0
        %v925 = vadd.f32 %v923, %v924
        %v926 = vsel %vm769, %v913, 0.0
        %v927 = vadd.f32 %v925, %v926
        %v928 = vmul.f32 %v920, %v686
        %v929 = vmul.f32 %v927, %v696
        %v930 = vmul.f32 %v928, %v730
        %v931 = vmul.f32 %v929, %v740
        %vm936 = vcmask 1046528
        %v937 = vrot.slane %v566, 1
        %v938 = vrot.slane %v567, 1
        %v939 = vsel %vm936, %v937, %v938
        %v940 = vrot.slane %v568, 1
        %v941 = vrot.slane %v569, 1
        %v942 = vsel %vm936, %v940, %v941
        %v943 = vrot.slane %v570, 1
        %v944 = vrot.slane %v571, 1
        %v945 = vsel %vm936, %v943, %v944
        %v946 = vrot.slane %v572, 1
        %v947 = vrot.slane %v573, 1
        %v948 = vsel %vm936, %v946, %v947
        %v957 = vmul.f32 %v525, %v939
        %v958 = vmul.f32 %v529, %v938
        %v959 = vmul.f32 %v526, %v942
        %v960 = vmul.f32 %v530, %v941
        %v961 = vmul.f32 %v527, %v945
        %v962 = vmul.f32 %v531, %v944
        %v963 = vmul.f32 %v528, %v948
        %v964 = vmul.f32 %v532, %v947
        %v965 = vsel %vm761, %v957, 0.0
        %v966 = vsel %vm761, %v959, 0.0
        %v967 = vadd.f32 %v965, %v966
        %v968 = vsel %vm761, %v961, 0.0
        %v969 = vadd.f32 %v967, %v968
        %v970 = vsel %vm761, %v963, 0.0
        %v971 = vadd.f32 %v969, %v970
        %v972 = vsel %vm769, %v958, 0.0
        %v973 = vsel %vm769, %v960, 0.0
        %v974 = vadd.f32 %v972, %v973
        %v975 = vsel %vm769, %v962, 0.0
        %v976 = vadd.f32 %v974, %v975
        %v977 = vsel %vm769, %v964, 0.0
        %v978 = vadd.f32 %v976, %v977
        %v979 = vmul.f32 %v971, %v686
        %v980 = vmul.f32 %v978, %v696
        %v982 = vrot.slane %v642, 1
        %v983 = vrot.slane %v652, 1
        %v984 = vsel %vm936, %v982, %v983
        %v987 = vmul.f32 %v979, %v984
        %v988 = vmul.f32 %v980, %v983
        %v989 = vrot.slane %v525, 1
        %v990 = vrot.slane %v529, 1
        %v991 = vsel %vm936, %v989, %v990
        %v992 = vrot.slane %v526, 1
        %v993 = vrot.slane %v530, 1
        %v994 = vsel %vm936, %v992, %v993
        %v995 = vrot.slane %v527, 1
        %v996 = vrot.slane %v531, 1
        %v997 = vsel %vm936, %v995, %v996
        %v998 = vrot.slane %v528, 1
        %v999 = vrot.slane %v532, 1
        %v1000 = vsel %vm936, %v998, %v999
        %v1009 = vmul.f32 %v525, %v991
        %v1010 = vmul.f32 %v529, %v990
        %v1011 = vmul.f32 %v526, %v994
        %v1012 = vmul.f32 %v530, %v993
        %v1013 = vmul.f32 %v527, %v997
        %v1014 = vmul.f32 %v531, %v996
        %v1015 = vmul.f32 %v528, %v1000
        %v1016 = vmul.f32 %v532, %v999
        %v1017 = vsel %vm761, %v1009, 0.0
        %v1018 = vsel %vm761, %v1011, 0.0
        %v1019 = vadd.f32 %v1017, %v1018
        %v1020 = vsel %vm761, %v1013, 0.0
        %v1021 = vadd.f32 %v1019, %v1020
        %v1022 = vsel %vm761, %v1015, 0.0
        %v1023 = vadd.f32 %v1021, %v1022
        %v1024 = vsel %vm769, %v1010, 0.0
        %v1025 = vsel %vm769, %v1012, 0.0
        %v1026 = vadd.f32 %v1024, %v1025
        %v1027 = vsel %vm769, %v1014, 0.0
        %v1028 = vadd.f32 %v1026, %v1027
        %v1029 = vsel %vm769, %v1016, 0.0
        %v1030 = vadd.f32 %v1028, %v1029
        %v1031 = vmul.f32 %v1023, %v686
        %v1032 = vmul.f32 %v1030, %v696
        %v1034 = vrot.slane %v686, 1
        %v1035 = vrot.slane %v696, 1
        %v1036 = vsel %vm936, %v1034, %v1035
        %v1039 = vmul.f32 %v1031, %v1036
        %v1040 = vmul.f32 %v1032, %v1035
        %v1045 = vrot.slane %v599, 1
        %v1046 = vrot.slane %v600, 1
        %v1047 = vsel %vm936, %v1045, %v1046
        %v1048 = vrot.slane %v601, 1
        %v1049 = vrot.slane %v602, 1
        %v1050 = vsel %vm936, %v1048, %v1049
        %v1051 = vrot.slane %v603, 1
        %v1052 = vrot.slane %v604, 1
        %v1053 = vsel %vm936, %v1051, %v1052
        %v1054 = vrot.slane %v605, 1
        %v1055 = vrot.slane %v606, 1
        %v1056 = vsel %vm936, %v1054, %v1055
        %v1065 = vmul.f32 %v525, %v1047
        %v1066 = vmul.f32 %v529, %v1046
        %v1067 = vmul.f32 %v526, %v1050
        %v1068 = vmul.f32 %v530, %v1049
        %v1069 = vmul.f32 %v527, %v1053
        %v1070 = vmul.f32 %v531, %v1052
        %v1071 = vmul.f32 %v528, %v1056
        %v1072 = vmul.f32 %v532, %v1055
        %v1073 = vsel %vm761, %v1065, 0.0
        %v1074 = vsel %vm761, %v1067, 0.0
        %v1075 = vadd.f32 %v1073, %v1074
        %v1076 = vsel %vm761, %v1069, 0.0
        %v1077 = vadd.f32 %v1075, %v1076
        %v1078 = vsel %vm761, %v1071, 0.0
        %v1079 = vadd.f32 %v1077, %v1078
        %v1080 = vsel %vm769, %v1066, 0.0
        %v1081 = vsel %vm769, %v1068, 0.0
        %v1082 = vadd.f32 %v1080, %v1081
        %v1083 = vsel %vm769, %v1070, 0.0
        %v1084 = vadd.f32 %v1082, %v1083
        %v1085 = vsel %vm769, %v1072, 0.0
        %v1086 = vadd.f32 %v1084, %v1085
        %v1087 = vmul.f32 %v1079, %v686
        %v1088 = vmul.f32 %v1086, %v696
        %v1090 = vrot.slane %v730, 1
        %v1091 = vrot.slane %v740, 1
        %v1092 = vsel %vm936, %v1090, %v1091
        %v1095 = vmul.f32 %v1087, %v1092
        %v1096 = vmul.f32 %v1088, %v1091
        %v1097 = vld [vmem:[%s486] sm:$0xff]
        %vm1098 = vcmp.gt.f32.partialorder %v819, %v782
        %vm1099 = vcmp.gt.f32.partialorder %v820, %v783
        %v1100 = vsel %vm1098, 1.0, 0.0
        %v1101 = vsel %vm1099, 1.0, 0.0
        %v1102 = vadd.f32 %v1100, 0.0
        %v1103 = vadd.f32 %v1101, 0.0
        %vm1104 = vcmp.gt.f32.partialorder %v860, %v782
        %vm1105 = vcmp.gt.f32.partialorder %v861, %v783
        %v1106 = vsel %vm1104, 1.0, 0.0
        %v1107 = vsel %vm1105, 1.0, 0.0
        %v1108 = vadd.f32 %v1102, %v1106
        %v1109 = vadd.f32 %v1103, %v1107
        %vm1110 = vcmp.gt.f32.partialorder %v886, %v782
        %vm1111 = vcmp.gt.f32.partialorder %v887, %v783
        %v1112 = vsel %vm1110, 1.0, 0.0
        %v1113 = vsel %vm1111, 1.0, 0.0
        %v1114 = vadd.f32 %v1108, %v1112
        %v1115 = vadd.f32 %v1109, %v1113
        %vm1116 = vcmp.gt.f32.partialorder %v904, %v782
        %vm1117 = vcmp.gt.f32.partialorder %v905, %v783
        %v1118 = vsel %vm1116, 1.0, 0.0
        %v1119 = vsel %vm1117, 1.0, 0.0
        %v1120 = vadd.f32 %v1114, %v1118
        %v1121 = vadd.f32 %v1115, %v1119
        %vm1122 = vcmp.gt.f32.partialorder %v930, %v782
        %vm1123 = vcmp.gt.f32.partialorder %v931, %v783
        %v1124 = vsel %vm1122, 1.0, 0.0
        %v1125 = vsel %vm1123, 1.0, 0.0
        %v1126 = vadd.f32 %v1120, %v1124
        %v1127 = vadd.f32 %v1121, %v1125
        %vm1128 = vcmp.gt.f32.partialorder %v987, %v782
        %vm1129 = vcmp.gt.f32.partialorder %v988, %v783
        %v1130 = vsel %vm1128, 1.0, 0.0
        %v1131 = vsel %vm1129, 1.0, 0.0
        %v1132 = vadd.f32 %v1126, %v1130
        %v1133 = vadd.f32 %v1127, %v1131
        %vm1134 = vcmp.gt.f32.partialorder %v1039, %v782
        %vm1135 = vcmp.gt.f32.partialorder %v1040, %v783
        %v1136 = vsel %vm1134, 1.0, 0.0
        %v1137 = vsel %vm1135, 1.0, 0.0
        %v1138 = vadd.f32 %v1132, %v1136
        %v1139 = vadd.f32 %v1133, %v1137
        %vm1140 = vcmp.gt.f32.partialorder %v1095, %v782
        %vm1141 = vcmp.gt.f32.partialorder %v1096, %v783
        %v1142 = vsel %vm1140, 1.0, 0.0
        %v1143 = vsel %vm1141, 1.0, 0.0
        %v1144 = vadd.f32 %v1138, %v1142
        %v1145 = vadd.f32 %v1139, %v1143
        %v1147 = vrot.slane %v1097, 7
        %vm1149 = vcmp.lt.f32.partialorder %v1144, %v1147
        %vm1150 = vcmp.lt.f32.partialorder %v1145, %v1147
        %v1151 = vmul.f32 %v782, 1.442695
        %v1152 = vpow.pop %v1151
        %v1153 = vmul.f32 %v783, 1.442695
        %v1154 = vpow.pop %v1153
        %v1155 = vsel %vm1149, %v1152, 0.0
        %v1156 = vsel %vm1150, %v1154, 0.0
        %v1157 = vadd.f32 %v1155, 0.0
        %v1158 = vadd.f32 %v1156, 0.0
        %vm1159 = vcmp.ge.f32.partialorder %v782, %v819
        %vm1160 = vcmp.ge.f32.partialorder %v783, %v820
        %v1161 = vsel %vm1159, 1.0, 0.0
        %v1162 = vsel %vm1160, 1.0, 0.0
        %v1163 = vadd.f32 %v1161, 0.0
        %v1164 = vadd.f32 %v1162, 0.0
        %vm1165 = vcmp.gt.f32.partialorder %v860, %v819
        %vm1166 = vcmp.gt.f32.partialorder %v861, %v820
        %v1167 = vsel %vm1165, 1.0, 0.0
        %v1168 = vsel %vm1166, 1.0, 0.0
        %v1169 = vadd.f32 %v1163, %v1167
        %v1170 = vadd.f32 %v1164, %v1168
        %vm1171 = vcmp.gt.f32.partialorder %v886, %v819
        %vm1172 = vcmp.gt.f32.partialorder %v887, %v820
        %v1173 = vsel %vm1171, 1.0, 0.0
        %v1174 = vsel %vm1172, 1.0, 0.0
        %v1175 = vadd.f32 %v1169, %v1173
        %v1176 = vadd.f32 %v1170, %v1174
        %vm1177 = vcmp.gt.f32.partialorder %v904, %v819
        %vm1178 = vcmp.gt.f32.partialorder %v905, %v820
        %v1179 = vsel %vm1177, 1.0, 0.0
        %v1180 = vsel %vm1178, 1.0, 0.0
        %v1181 = vadd.f32 %v1175, %v1179
        %v1182 = vadd.f32 %v1176, %v1180
        %vm1183 = vcmp.gt.f32.partialorder %v930, %v819
        %vm1184 = vcmp.gt.f32.partialorder %v931, %v820
        %v1185 = vsel %vm1183, 1.0, 0.0
        %v1186 = vsel %vm1184, 1.0, 0.0
        %v1187 = vadd.f32 %v1181, %v1185
        %v1188 = vadd.f32 %v1182, %v1186
        %vm1189 = vcmp.gt.f32.partialorder %v987, %v819
        %vm1190 = vcmp.gt.f32.partialorder %v988, %v820
        %v1191 = vsel %vm1189, 1.0, 0.0
        %v1192 = vsel %vm1190, 1.0, 0.0
        %v1193 = vadd.f32 %v1187, %v1191
        %v1194 = vadd.f32 %v1188, %v1192
        %vm1195 = vcmp.gt.f32.partialorder %v1039, %v819
        %vm1196 = vcmp.gt.f32.partialorder %v1040, %v820
        %v1197 = vsel %vm1195, 1.0, 0.0
        %v1198 = vsel %vm1196, 1.0, 0.0
        %v1199 = vadd.f32 %v1193, %v1197
        %v1200 = vadd.f32 %v1194, %v1198
        %vm1201 = vcmp.gt.f32.partialorder %v1095, %v819
        %vm1202 = vcmp.gt.f32.partialorder %v1096, %v820
        %v1203 = vsel %vm1201, 1.0, 0.0
        %v1204 = vsel %vm1202, 1.0, 0.0
        %v1205 = vadd.f32 %v1199, %v1203
        %v1206 = vadd.f32 %v1200, %v1204
        %vm1207 = vcmp.lt.f32.partialorder %v1205, %v1147
        %vm1208 = vcmp.lt.f32.partialorder %v1206, %v1147
        %v1209 = vmul.f32 %v819, 1.442695
        %v1210 = vpow.pop %v1209
        %v1211 = vmul.f32 %v820, 1.442695
        %v1212 = vpow.pop %v1211
        %v1213 = vsel %vm1207, %v1210, 0.0
        %v1214 = vsel %vm1208, %v1212, 0.0
        %v1215 = vadd.f32 %v1157, %v1213
        %v1216 = vadd.f32 %v1158, %v1214
        %vm1217 = vcmp.ge.f32.partialorder %v782, %v860
        %vm1218 = vcmp.ge.f32.partialorder %v783, %v861
        %v1219 = vsel %vm1217, 1.0, 0.0
        %v1220 = vsel %vm1218, 1.0, 0.0
        %v1221 = vadd.f32 %v1219, 0.0
        %v1222 = vadd.f32 %v1220, 0.0
        %vm1223 = vcmp.ge.f32.partialorder %v819, %v860
        %vm1224 = vcmp.ge.f32.partialorder %v820, %v861
        %v1225 = vsel %vm1223, 1.0, 0.0
        %v1226 = vsel %vm1224, 1.0, 0.0
        %v1227 = vadd.f32 %v1221, %v1225
        %v1228 = vadd.f32 %v1222, %v1226
        %vm1229 = vcmp.gt.f32.partialorder %v886, %v860
        %vm1230 = vcmp.gt.f32.partialorder %v887, %v861
        %v1231 = vsel %vm1229, 1.0, 0.0
        %v1232 = vsel %vm1230, 1.0, 0.0
        %v1233 = vadd.f32 %v1227, %v1231
        %v1234 = vadd.f32 %v1228, %v1232
        %vm1235 = vcmp.gt.f32.partialorder %v904, %v860
        %vm1236 = vcmp.gt.f32.partialorder %v905, %v861
        %v1237 = vsel %vm1235, 1.0, 0.0
        %v1238 = vsel %vm1236, 1.0, 0.0
        %v1239 = vadd.f32 %v1233, %v1237
        %v1240 = vadd.f32 %v1234, %v1238
        %vm1241 = vcmp.gt.f32.partialorder %v930, %v860
        %vm1242 = vcmp.gt.f32.partialorder %v931, %v861
        %v1243 = vsel %vm1241, 1.0, 0.0
        %v1244 = vsel %vm1242, 1.0, 0.0
        %v1245 = vadd.f32 %v1239, %v1243
        %v1246 = vadd.f32 %v1240, %v1244
        %vm1247 = vcmp.gt.f32.partialorder %v987, %v860
        %vm1248 = vcmp.gt.f32.partialorder %v988, %v861
        %v1249 = vsel %vm1247, 1.0, 0.0
        %v1250 = vsel %vm1248, 1.0, 0.0
        %v1251 = vadd.f32 %v1245, %v1249
        %v1252 = vadd.f32 %v1246, %v1250
        %vm1253 = vcmp.gt.f32.partialorder %v1039, %v860
        %vm1254 = vcmp.gt.f32.partialorder %v1040, %v861
        %v1255 = vsel %vm1253, 1.0, 0.0
        %v1256 = vsel %vm1254, 1.0, 0.0
        %v1257 = vadd.f32 %v1251, %v1255
        %v1258 = vadd.f32 %v1252, %v1256
        %vm1259 = vcmp.gt.f32.partialorder %v1095, %v860
        %vm1260 = vcmp.gt.f32.partialorder %v1096, %v861
        %v1261 = vsel %vm1259, 1.0, 0.0
        %v1262 = vsel %vm1260, 1.0, 0.0
        %v1263 = vadd.f32 %v1257, %v1261
        %v1264 = vadd.f32 %v1258, %v1262
        %vm1265 = vcmp.lt.f32.partialorder %v1263, %v1147
        %vm1266 = vcmp.lt.f32.partialorder %v1264, %v1147
        %v1267 = vmul.f32 %v860, 1.442695
        %v1268 = vpow.pop %v1267
        %v1269 = vmul.f32 %v861, 1.442695
        %v1270 = vpow.pop %v1269
        %v1271 = vsel %vm1265, %v1268, 0.0
        %v1272 = vsel %vm1266, %v1270, 0.0
        %v1273 = vadd.f32 %v1215, %v1271
        %v1274 = vadd.f32 %v1216, %v1272
        %vm1275 = vcmp.ge.f32.partialorder %v782, %v886
        %vm1276 = vcmp.ge.f32.partialorder %v783, %v887
        %v1277 = vsel %vm1275, 1.0, 0.0
        %v1278 = vsel %vm1276, 1.0, 0.0
        %v1279 = vadd.f32 %v1277, 0.0
        %v1280 = vadd.f32 %v1278, 0.0
        %vm1281 = vcmp.ge.f32.partialorder %v819, %v886
        %vm1282 = vcmp.ge.f32.partialorder %v820, %v887
        %v1283 = vsel %vm1281, 1.0, 0.0
        %v1284 = vsel %vm1282, 1.0, 0.0
        %v1285 = vadd.f32 %v1279, %v1283
        %v1286 = vadd.f32 %v1280, %v1284
        %vm1287 = vcmp.ge.f32.partialorder %v860, %v886
        %vm1288 = vcmp.ge.f32.partialorder %v861, %v887
        %v1289 = vsel %vm1287, 1.0, 0.0
        %v1290 = vsel %vm1288, 1.0, 0.0
        %v1291 = vadd.f32 %v1285, %v1289
        %v1292 = vadd.f32 %v1286, %v1290
        %vm1293 = vcmp.gt.f32.partialorder %v904, %v886
        %vm1294 = vcmp.gt.f32.partialorder %v905, %v887
        %v1295 = vsel %vm1293, 1.0, 0.0
        %v1296 = vsel %vm1294, 1.0, 0.0
        %v1297 = vadd.f32 %v1291, %v1295
        %v1298 = vadd.f32 %v1292, %v1296
        %vm1299 = vcmp.gt.f32.partialorder %v930, %v886
        %vm1300 = vcmp.gt.f32.partialorder %v931, %v887
        %v1301 = vsel %vm1299, 1.0, 0.0
        %v1302 = vsel %vm1300, 1.0, 0.0
        %v1303 = vadd.f32 %v1297, %v1301
        %v1304 = vadd.f32 %v1298, %v1302
        %vm1305 = vcmp.gt.f32.partialorder %v987, %v886
        %vm1306 = vcmp.gt.f32.partialorder %v988, %v887
        %v1307 = vsel %vm1305, 1.0, 0.0
        %v1308 = vsel %vm1306, 1.0, 0.0
        %v1309 = vadd.f32 %v1303, %v1307
        %v1310 = vadd.f32 %v1304, %v1308
        %vm1311 = vcmp.gt.f32.partialorder %v1039, %v886
        %vm1312 = vcmp.gt.f32.partialorder %v1040, %v887
        %v1313 = vsel %vm1311, 1.0, 0.0
        %v1314 = vsel %vm1312, 1.0, 0.0
        %v1315 = vadd.f32 %v1309, %v1313
        %v1316 = vadd.f32 %v1310, %v1314
        %vm1317 = vcmp.gt.f32.partialorder %v1095, %v886
        %vm1318 = vcmp.gt.f32.partialorder %v1096, %v887
        %v1319 = vsel %vm1317, 1.0, 0.0
        %v1320 = vsel %vm1318, 1.0, 0.0
        %v1321 = vadd.f32 %v1315, %v1319
        %v1322 = vadd.f32 %v1316, %v1320
        %vm1323 = vcmp.lt.f32.partialorder %v1321, %v1147
        %vm1324 = vcmp.lt.f32.partialorder %v1322, %v1147
        %v1325 = vmul.f32 %v886, 1.442695
        %v1326 = vpow.pop %v1325
        %v1327 = vmul.f32 %v887, 1.442695
        %v1328 = vpow.pop %v1327
        %v1329 = vsel %vm1323, %v1326, 0.0
        %v1330 = vsel %vm1324, %v1328, 0.0
        %v1331 = vadd.f32 %v1273, %v1329
        %v1332 = vadd.f32 %v1274, %v1330
        %vm1333 = vcmp.ge.f32.partialorder %v782, %v904
        %vm1334 = vcmp.ge.f32.partialorder %v783, %v905
        %v1335 = vsel %vm1333, 1.0, 0.0
        %v1336 = vsel %vm1334, 1.0, 0.0
        %v1337 = vadd.f32 %v1335, 0.0
        %v1338 = vadd.f32 %v1336, 0.0
        %vm1339 = vcmp.ge.f32.partialorder %v819, %v904
        %vm1340 = vcmp.ge.f32.partialorder %v820, %v905
        %v1341 = vsel %vm1339, 1.0, 0.0
        %v1342 = vsel %vm1340, 1.0, 0.0
        %v1343 = vadd.f32 %v1337, %v1341
        %v1344 = vadd.f32 %v1338, %v1342
        %vm1345 = vcmp.ge.f32.partialorder %v860, %v904
        %vm1346 = vcmp.ge.f32.partialorder %v861, %v905
        %v1347 = vsel %vm1345, 1.0, 0.0
        %v1348 = vsel %vm1346, 1.0, 0.0
        %v1349 = vadd.f32 %v1343, %v1347
        %v1350 = vadd.f32 %v1344, %v1348
        %vm1351 = vcmp.ge.f32.partialorder %v886, %v904
        %vm1352 = vcmp.ge.f32.partialorder %v887, %v905
        %v1353 = vsel %vm1351, 1.0, 0.0
        %v1354 = vsel %vm1352, 1.0, 0.0
        %v1355 = vadd.f32 %v1349, %v1353
        %v1356 = vadd.f32 %v1350, %v1354
        %vm1357 = vcmp.gt.f32.partialorder %v930, %v904
        %vm1358 = vcmp.gt.f32.partialorder %v931, %v905
        %v1359 = vsel %vm1357, 1.0, 0.0
        %v1360 = vsel %vm1358, 1.0, 0.0
        %v1361 = vadd.f32 %v1355, %v1359
        %v1362 = vadd.f32 %v1356, %v1360
        %vm1363 = vcmp.gt.f32.partialorder %v987, %v904
        %vm1364 = vcmp.gt.f32.partialorder %v988, %v905
        %v1365 = vsel %vm1363, 1.0, 0.0
        %v1366 = vsel %vm1364, 1.0, 0.0
        %v1367 = vadd.f32 %v1361, %v1365
        %v1368 = vadd.f32 %v1362, %v1366
        %vm1369 = vcmp.gt.f32.partialorder %v1039, %v904
        %vm1370 = vcmp.gt.f32.partialorder %v1040, %v905
        %v1371 = vsel %vm1369, 1.0, 0.0
        %v1372 = vsel %vm1370, 1.0, 0.0
        %v1373 = vadd.f32 %v1367, %v1371
        %v1374 = vadd.f32 %v1368, %v1372
        %vm1375 = vcmp.gt.f32.partialorder %v1095, %v904
        %vm1376 = vcmp.gt.f32.partialorder %v1096, %v905
        %v1377 = vsel %vm1375, 1.0, 0.0
        %v1378 = vsel %vm1376, 1.0, 0.0
        %v1379 = vadd.f32 %v1373, %v1377
        %v1380 = vadd.f32 %v1374, %v1378
        %vm1381 = vcmp.lt.f32.partialorder %v1379, %v1147
        %vm1382 = vcmp.lt.f32.partialorder %v1380, %v1147
        %v1383 = vmul.f32 %v904, 1.442695
        %v1384 = vpow.pop %v1383
        %v1385 = vmul.f32 %v905, 1.442695
        %v1386 = vpow.pop %v1385
        %v1387 = vsel %vm1381, %v1384, 0.0
        %v1388 = vsel %vm1382, %v1386, 0.0
        %v1389 = vadd.f32 %v1331, %v1387
        %v1390 = vadd.f32 %v1332, %v1388
        %vm1391 = vcmp.ge.f32.partialorder %v782, %v930
        %vm1392 = vcmp.ge.f32.partialorder %v783, %v931
        %v1393 = vsel %vm1391, 1.0, 0.0
        %v1394 = vsel %vm1392, 1.0, 0.0
        %v1395 = vadd.f32 %v1393, 0.0
        %v1396 = vadd.f32 %v1394, 0.0
        %vm1397 = vcmp.ge.f32.partialorder %v819, %v930
        %vm1398 = vcmp.ge.f32.partialorder %v820, %v931
        %v1399 = vsel %vm1397, 1.0, 0.0
        %v1400 = vsel %vm1398, 1.0, 0.0
        %v1401 = vadd.f32 %v1395, %v1399
        %v1402 = vadd.f32 %v1396, %v1400
        %vm1403 = vcmp.ge.f32.partialorder %v860, %v930
        %vm1404 = vcmp.ge.f32.partialorder %v861, %v931
        %v1405 = vsel %vm1403, 1.0, 0.0
        %v1406 = vsel %vm1404, 1.0, 0.0
        %v1407 = vadd.f32 %v1401, %v1405
        %v1408 = vadd.f32 %v1402, %v1406
        %vm1409 = vcmp.ge.f32.partialorder %v886, %v930
        %vm1410 = vcmp.ge.f32.partialorder %v887, %v931
        %v1411 = vsel %vm1409, 1.0, 0.0
        %v1412 = vsel %vm1410, 1.0, 0.0
        %v1413 = vadd.f32 %v1407, %v1411
        %v1414 = vadd.f32 %v1408, %v1412
        %vm1415 = vcmp.ge.f32.partialorder %v904, %v930
        %vm1416 = vcmp.ge.f32.partialorder %v905, %v931
        %v1417 = vsel %vm1415, 1.0, 0.0
        %v1418 = vsel %vm1416, 1.0, 0.0
        %v1419 = vadd.f32 %v1413, %v1417
        %v1420 = vadd.f32 %v1414, %v1418
        %vm1421 = vcmp.gt.f32.partialorder %v987, %v930
        %vm1422 = vcmp.gt.f32.partialorder %v988, %v931
        %v1423 = vsel %vm1421, 1.0, 0.0
        %v1424 = vsel %vm1422, 1.0, 0.0
        %v1425 = vadd.f32 %v1419, %v1423
        %v1426 = vadd.f32 %v1420, %v1424
        %vm1427 = vcmp.gt.f32.partialorder %v1039, %v930
        %vm1428 = vcmp.gt.f32.partialorder %v1040, %v931
        %v1429 = vsel %vm1427, 1.0, 0.0
        %v1430 = vsel %vm1428, 1.0, 0.0
        %v1431 = vadd.f32 %v1425, %v1429
        %v1432 = vadd.f32 %v1426, %v1430
        %vm1433 = vcmp.gt.f32.partialorder %v1095, %v930
        %vm1434 = vcmp.gt.f32.partialorder %v1096, %v931
        %v1435 = vsel %vm1433, 1.0, 0.0
        %v1436 = vsel %vm1434, 1.0, 0.0
        %v1437 = vadd.f32 %v1431, %v1435
        %v1438 = vadd.f32 %v1432, %v1436
        %vm1439 = vcmp.lt.f32.partialorder %v1437, %v1147
        %vm1440 = vcmp.lt.f32.partialorder %v1438, %v1147
        %v1441 = vmul.f32 %v930, 1.442695
        %v1442 = vpow.pop %v1441
        %v1443 = vmul.f32 %v931, 1.442695
        %v1444 = vpow.pop %v1443
        %v1445 = vsel %vm1439, %v1442, 0.0
        %v1446 = vsel %vm1440, %v1444, 0.0
        %v1447 = vadd.f32 %v1389, %v1445
        %v1448 = vadd.f32 %v1390, %v1446
        %vm1449 = vcmp.ge.f32.partialorder %v782, %v987
        %vm1450 = vcmp.ge.f32.partialorder %v783, %v988
        %v1451 = vsel %vm1449, 1.0, 0.0
        %v1452 = vsel %vm1450, 1.0, 0.0
        %v1453 = vadd.f32 %v1451, 0.0
        %v1454 = vadd.f32 %v1452, 0.0
        %vm1455 = vcmp.ge.f32.partialorder %v819, %v987
        %vm1456 = vcmp.ge.f32.partialorder %v820, %v988
        %v1457 = vsel %vm1455, 1.0, 0.0
        %v1458 = vsel %vm1456, 1.0, 0.0
        %v1459 = vadd.f32 %v1453, %v1457
        %v1460 = vadd.f32 %v1454, %v1458
        %vm1461 = vcmp.ge.f32.partialorder %v860, %v987
        %vm1462 = vcmp.ge.f32.partialorder %v861, %v988
        %v1463 = vsel %vm1461, 1.0, 0.0
        %v1464 = vsel %vm1462, 1.0, 0.0
        %v1465 = vadd.f32 %v1459, %v1463
        %v1466 = vadd.f32 %v1460, %v1464
        %vm1467 = vcmp.ge.f32.partialorder %v886, %v987
        %vm1468 = vcmp.ge.f32.partialorder %v887, %v988
        %v1469 = vsel %vm1467, 1.0, 0.0
        %v1470 = vsel %vm1468, 1.0, 0.0
        %v1471 = vadd.f32 %v1465, %v1469
        %v1472 = vadd.f32 %v1466, %v1470
        %vm1473 = vcmp.ge.f32.partialorder %v904, %v987
        %vm1474 = vcmp.ge.f32.partialorder %v905, %v988
        %v1475 = vsel %vm1473, 1.0, 0.0
        %v1476 = vsel %vm1474, 1.0, 0.0
        %v1477 = vadd.f32 %v1471, %v1475
        %v1478 = vadd.f32 %v1472, %v1476
        %vm1479 = vcmp.ge.f32.partialorder %v930, %v987
        %vm1480 = vcmp.ge.f32.partialorder %v931, %v988
        %v1481 = vsel %vm1479, 1.0, 0.0
        %v1482 = vsel %vm1480, 1.0, 0.0
        %v1483 = vadd.f32 %v1477, %v1481
        %v1484 = vadd.f32 %v1478, %v1482
        %vm1485 = vcmp.gt.f32.partialorder %v1039, %v987
        %vm1486 = vcmp.gt.f32.partialorder %v1040, %v988
        %v1487 = vsel %vm1485, 1.0, 0.0
        %v1488 = vsel %vm1486, 1.0, 0.0
        %v1489 = vadd.f32 %v1483, %v1487
        %v1490 = vadd.f32 %v1484, %v1488
        %vm1491 = vcmp.gt.f32.partialorder %v1095, %v987
        %vm1492 = vcmp.gt.f32.partialorder %v1096, %v988
        %v1493 = vsel %vm1491, 1.0, 0.0
        %v1494 = vsel %vm1492, 1.0, 0.0
        %v1495 = vadd.f32 %v1489, %v1493
        %v1496 = vadd.f32 %v1490, %v1494
        %vm1497 = vcmp.lt.f32.partialorder %v1495, %v1147
        %vm1498 = vcmp.lt.f32.partialorder %v1496, %v1147
        %v1499 = vmul.f32 %v987, 1.442695
        %v1500 = vpow.pop %v1499
        %v1501 = vmul.f32 %v988, 1.442695
        %v1502 = vpow.pop %v1501
        %v1503 = vsel %vm1497, %v1500, 0.0
        %v1504 = vsel %vm1498, %v1502, 0.0
        %v1505 = vadd.f32 %v1447, %v1503
        %v1506 = vadd.f32 %v1448, %v1504
        %vm1507 = vcmp.ge.f32.partialorder %v782, %v1039
        %vm1508 = vcmp.ge.f32.partialorder %v783, %v1040
        %v1509 = vsel %vm1507, 1.0, 0.0
        %v1510 = vsel %vm1508, 1.0, 0.0
        %v1511 = vadd.f32 %v1509, 0.0
        %v1512 = vadd.f32 %v1510, 0.0
        %vm1513 = vcmp.ge.f32.partialorder %v819, %v1039
        %vm1514 = vcmp.ge.f32.partialorder %v820, %v1040
        %v1515 = vsel %vm1513, 1.0, 0.0
        %v1516 = vsel %vm1514, 1.0, 0.0
        %v1517 = vadd.f32 %v1511, %v1515
        %v1518 = vadd.f32 %v1512, %v1516
        %vm1519 = vcmp.ge.f32.partialorder %v860, %v1039
        %vm1520 = vcmp.ge.f32.partialorder %v861, %v1040
        %v1521 = vsel %vm1519, 1.0, 0.0
        %v1522 = vsel %vm1520, 1.0, 0.0
        %v1523 = vadd.f32 %v1517, %v1521
        %v1524 = vadd.f32 %v1518, %v1522
        %vm1525 = vcmp.ge.f32.partialorder %v886, %v1039
        %vm1526 = vcmp.ge.f32.partialorder %v887, %v1040
        %v1527 = vsel %vm1525, 1.0, 0.0
        %v1528 = vsel %vm1526, 1.0, 0.0
        %v1529 = vadd.f32 %v1523, %v1527
        %v1530 = vadd.f32 %v1524, %v1528
        %vm1531 = vcmp.ge.f32.partialorder %v904, %v1039
        %vm1532 = vcmp.ge.f32.partialorder %v905, %v1040
        %v1533 = vsel %vm1531, 1.0, 0.0
        %v1534 = vsel %vm1532, 1.0, 0.0
        %v1535 = vadd.f32 %v1529, %v1533
        %v1536 = vadd.f32 %v1530, %v1534
        %vm1537 = vcmp.ge.f32.partialorder %v930, %v1039
        %vm1538 = vcmp.ge.f32.partialorder %v931, %v1040
        %v1539 = vsel %vm1537, 1.0, 0.0
        %v1540 = vsel %vm1538, 1.0, 0.0
        %v1541 = vadd.f32 %v1535, %v1539
        %v1542 = vadd.f32 %v1536, %v1540
        %vm1543 = vcmp.ge.f32.partialorder %v987, %v1039
        %vm1544 = vcmp.ge.f32.partialorder %v988, %v1040
        %v1545 = vsel %vm1543, 1.0, 0.0
        %v1546 = vsel %vm1544, 1.0, 0.0
        %v1547 = vadd.f32 %v1541, %v1545
        %v1548 = vadd.f32 %v1542, %v1546
        %vm1549 = vcmp.gt.f32.partialorder %v1095, %v1039
        %vm1550 = vcmp.gt.f32.partialorder %v1096, %v1040
        %v1551 = vsel %vm1549, 1.0, 0.0
        %v1552 = vsel %vm1550, 1.0, 0.0
        %v1553 = vadd.f32 %v1547, %v1551
        %v1554 = vadd.f32 %v1548, %v1552
        %vm1555 = vcmp.lt.f32.partialorder %v1553, %v1147
        %vm1556 = vcmp.lt.f32.partialorder %v1554, %v1147
        %v1557 = vmul.f32 %v1039, 1.442695
        %v1558 = vpow.pop %v1557
        %v1559 = vmul.f32 %v1040, 1.442695
        %v1560 = vpow.pop %v1559
        %v1561 = vsel %vm1555, %v1558, 0.0
        %v1562 = vsel %vm1556, %v1560, 0.0
        %v1563 = vadd.f32 %v1505, %v1561
        %v1564 = vadd.f32 %v1506, %v1562
        %vm1565 = vcmp.ge.f32.partialorder %v782, %v1095
        %vm1566 = vcmp.ge.f32.partialorder %v783, %v1096
        %v1567 = vsel %vm1565, 1.0, 0.0
        %v1568 = vsel %vm1566, 1.0, 0.0
        %v1569 = vadd.f32 %v1567, 0.0
        %v1570 = vadd.f32 %v1568, 0.0
        %vm1571 = vcmp.ge.f32.partialorder %v819, %v1095
        %vm1572 = vcmp.ge.f32.partialorder %v820, %v1096
        %v1573 = vsel %vm1571, 1.0, 0.0
        %v1574 = vsel %vm1572, 1.0, 0.0
        %v1575 = vadd.f32 %v1569, %v1573
        %v1576 = vadd.f32 %v1570, %v1574
        %vm1577 = vcmp.ge.f32.partialorder %v860, %v1095
        %vm1578 = vcmp.ge.f32.partialorder %v861, %v1096
        %v1579 = vsel %vm1577, 1.0, 0.0
        %v1580 = vsel %vm1578, 1.0, 0.0
        %v1581 = vadd.f32 %v1575, %v1579
        %v1582 = vadd.f32 %v1576, %v1580
        %vm1583 = vcmp.ge.f32.partialorder %v886, %v1095
        %vm1584 = vcmp.ge.f32.partialorder %v887, %v1096
        %v1585 = vsel %vm1583, 1.0, 0.0
        %v1586 = vsel %vm1584, 1.0, 0.0
        %v1587 = vadd.f32 %v1581, %v1585
        %v1588 = vadd.f32 %v1582, %v1586
        %vm1589 = vcmp.ge.f32.partialorder %v904, %v1095
        %vm1590 = vcmp.ge.f32.partialorder %v905, %v1096
        %v1591 = vsel %vm1589, 1.0, 0.0
        %v1592 = vsel %vm1590, 1.0, 0.0
        %v1593 = vadd.f32 %v1587, %v1591
        %v1594 = vadd.f32 %v1588, %v1592
        %vm1595 = vcmp.ge.f32.partialorder %v930, %v1095
        %vm1596 = vcmp.ge.f32.partialorder %v931, %v1096
        %v1597 = vsel %vm1595, 1.0, 0.0
        %v1598 = vsel %vm1596, 1.0, 0.0
        %v1599 = vadd.f32 %v1593, %v1597
        %v1600 = vadd.f32 %v1594, %v1598
        %vm1601 = vcmp.ge.f32.partialorder %v987, %v1095
        %vm1602 = vcmp.ge.f32.partialorder %v988, %v1096
        %v1603 = vsel %vm1601, 1.0, 0.0
        %v1604 = vsel %vm1602, 1.0, 0.0
        %v1605 = vadd.f32 %v1599, %v1603
        %v1606 = vadd.f32 %v1600, %v1604
        %vm1607 = vcmp.ge.f32.partialorder %v1039, %v1095
        %vm1608 = vcmp.ge.f32.partialorder %v1040, %v1096
        %v1609 = vsel %vm1607, 1.0, 0.0
        %v1610 = vsel %vm1608, 1.0, 0.0
        %v1611 = vadd.f32 %v1605, %v1609
        %v1612 = vadd.f32 %v1606, %v1610
        %vm1613 = vcmp.lt.f32.partialorder %v1611, %v1147
        %vm1614 = vcmp.lt.f32.partialorder %v1612, %v1147
        %v1615 = vmul.f32 %v1095, 1.442695
        %v1616 = vpow.pop %v1615
        %v1617 = vmul.f32 %v1096, 1.442695
        %v1618 = vpow.pop %v1617
        %v1619 = vsel %vm1613, %v1616, 0.0
        %v1620 = vsel %vm1614, %v1618, 0.0
        %v1621 = vadd.f32 %v1563, %v1619
        %v1622 = vadd.f32 %v1564, %v1620
        %v1623 = vadd.f32 %v1621, 1e-08
        %v1624 = vadd.f32 %v1622, 1e-08
        %v1625 = vrcp.pop %v1623
        %v1626 = vmul.f32 %v1623, %v1625
        %v1627 = vsub.f32 1.0, %v1626
        %v1628 = vmul.f32 %v1625, %v1627
        %v1629 = vadd.f32 %v1625, %v1628
        %vm1630 = vweird.f32 %v1623
        %vm1631 = vweird.f32 %v1625
        %vm1632 = vmor %vm1630, %vm1631
        %v1633 = vsel %vm1632, %v1625, %v1629
        %v1634 = vand.u32 2147483647, %v1623
        %vm1635 = vcmp.eq.f32.partialorder %v1634, 8.507059e+37
        %v1636 = vand.u32 %v1623, 2147483648
        %v1637 = vor.u32 1.1754944e-38, %v1636
        %v1638 = vsel %vm1635, %v1637, %v1633
        %v1639 = vmul.f32 1.0, %v1638
        %v1640 = vrcp.pop %v1624
        %v1641 = vmul.f32 %v1624, %v1640
        %v1642 = vsub.f32 1.0, %v1641
        %v1643 = vmul.f32 %v1640, %v1642
        %v1644 = vadd.f32 %v1640, %v1643
        %vm1645 = vweird.f32 %v1624
        %vm1646 = vweird.f32 %v1640
        %vm1647 = vmor %vm1645, %vm1646
        %v1648 = vsel %vm1647, %v1640, %v1644
        %v1649 = vand.u32 2147483647, %v1624
        %vm1650 = vcmp.eq.f32.partialorder %v1649, 8.507059e+37
        %v1651 = vand.u32 %v1624, 2147483648
        %v1652 = vor.u32 1.1754944e-38, %v1651
        %v1653 = vsel %vm1650, %v1652, %v1648
        %v1654 = vmul.f32 1.0, %v1653
        %v1655 = vmul.f32 %v1155, %v1639
        %v1656 = vmul.f32 %v1156, %v1654
        %v1657 = vmul.f32 %v1213, %v1639
        %v1658 = vmul.f32 %v1214, %v1654
        %v1659 = vmul.f32 %v1271, %v1639
        %v1660 = vmul.f32 %v1272, %v1654
        %v1661 = vmul.f32 %v1329, %v1639
        %v1662 = vmul.f32 %v1330, %v1654
        %v1663 = vmul.f32 %v1387, %v1639
        %v1664 = vmul.f32 %v1388, %v1654
        %v1665 = vmul.f32 %v1445, %v1639
        %v1666 = vmul.f32 %v1446, %v1654
        %v1667 = vmul.f32 %v1503, %v1639
        %v1668 = vmul.f32 %v1504, %v1654
        %v1669 = vmul.f32 %v1561, %v1639
        %v1670 = vmul.f32 %v1562, %v1654
        %v1671 = vmul.f32 %v1619, %v1639
        %v1672 = vmul.f32 %v1620, %v1654
        %v1673 = vld [vmem:[%s490] sm:$0x1]
        %v1674 = vld [vmem:[%s490 + $0x1] sm:$0x1]
        %v1675 = vld [vmem:[%s490 + $0x2] sm:$0x1]
        %v1676 = vld [vmem:[%s490 + $0x3] sm:$0x1]
        %v1677 = vld [vmem:[%s494] sm:$0x1]
        %v1678 = vld [vmem:[%s494 + $0x1] sm:$0x1]
        %v1679 = vld [vmem:[%s494 + $0x2] sm:$0x1]
        %v1680 = vld [vmem:[%s494 + $0x3] sm:$0x1]
        %v1683 = vrot.slane %v1655, 1
        %v1684 = vrot.slane %v1656, 1
        %v1685 = vsel %vm936, %v1683, %v1684
        %v1687 = vmul.f32 %v566, %v1685
        %v1688 = vmul.f32 %v568, %v1685
        %v1689 = vmul.f32 %v570, %v1685
        %v1690 = vmul.f32 %v572, %v1685
        %v1693 = vrot.slane %v1657, 1
        %v1694 = vrot.slane %v1658, 1
        %v1695 = vsel %vm936, %v1693, %v1694
        %v1697 = vmul.f32 %v525, %v1695
        %v1698 = vmul.f32 %v526, %v1695
        %v1699 = vmul.f32 %v527, %v1695
        %v1700 = vmul.f32 %v528, %v1695
        %v1701 = vadd.f32 %v1687, %v1697
        %v1702 = vadd.f32 %v1688, %v1698
        %v1703 = vadd.f32 %v1689, %v1699
        %v1704 = vadd.f32 %v1690, %v1700
        %v1707 = vrot.slane %v1659, 1
        %v1708 = vrot.slane %v1660, 1
        %v1709 = vsel %vm936, %v1707, %v1708
        %v1711 = vmul.f32 %v599, %v1709
        %v1712 = vmul.f32 %v601, %v1709
        %v1713 = vmul.f32 %v603, %v1709
        %v1714 = vmul.f32 %v605, %v1709
        %v1715 = vadd.f32 %v1701, %v1711
        %v1716 = vadd.f32 %v1702, %v1712
        %v1717 = vadd.f32 %v1703, %v1713
        %v1718 = vadd.f32 %v1704, %v1714
        %v1719 = vmul.f32 %v566, %v1661
        %v1720 = vmul.f32 %v567, %v1662
        %v1721 = vmul.f32 %v568, %v1661
        %v1722 = vmul.f32 %v569, %v1662
        %v1723 = vmul.f32 %v570, %v1661
        %v1724 = vmul.f32 %v571, %v1662
        %v1725 = vmul.f32 %v572, %v1661
        %v1726 = vmul.f32 %v573, %v1662
        %v1735 = vrot.slane %v1719, 1
        %v1736 = vrot.slane %v1720, 1
        %v1737 = vsel %vm936, %v1735, %v1736
        %v1738 = vrot.slane %v1721, 1
        %v1739 = vrot.slane %v1722, 1
        %v1740 = vsel %vm936, %v1738, %v1739
        %v1741 = vrot.slane %v1723, 1
        %v1742 = vrot.slane %v1724, 1
        %v1743 = vsel %vm936, %v1741, %v1742
        %v1744 = vrot.slane %v1725, 1
        %v1745 = vrot.slane %v1726, 1
        %v1746 = vsel %vm936, %v1744, %v1745
        %v1751 = vadd.f32 %v1715, %v1737
        %v1752 = vadd.f32 %v1716, %v1740
        %v1753 = vadd.f32 %v1717, %v1743
        %v1754 = vadd.f32 %v1718, %v1746
        %v1755 = vmul.f32 %v525, %v1663
        %v1756 = vmul.f32 %v529, %v1664
        %v1757 = vmul.f32 %v526, %v1663
        %v1758 = vmul.f32 %v530, %v1664
        %v1759 = vmul.f32 %v527, %v1663
        %v1760 = vmul.f32 %v531, %v1664
        %v1761 = vmul.f32 %v528, %v1663
        %v1762 = vmul.f32 %v532, %v1664
        %v1771 = vrot.slane %v1755, 1
        %v1772 = vrot.slane %v1756, 1
        %v1773 = vsel %vm936, %v1771, %v1772
        %v1774 = vrot.slane %v1757, 1
        %v1775 = vrot.slane %v1758, 1
        %v1776 = vsel %vm936, %v1774, %v1775
        %v1777 = vrot.slane %v1759, 1
        %v1778 = vrot.slane %v1760, 1
        %v1779 = vsel %vm936, %v1777, %v1778
        %v1780 = vrot.slane %v1761, 1
        %v1781 = vrot.slane %v1762, 1
        %v1782 = vsel %vm936, %v1780, %v1781
        %v1787 = vadd.f32 %v1751, %v1773
        %v1788 = vadd.f32 %v1752, %v1776
        %v1789 = vadd.f32 %v1753, %v1779
        %v1790 = vadd.f32 %v1754, %v1782
        %v1791 = vmul.f32 %v599, %v1665
        %v1792 = vmul.f32 %v600, %v1666
        %v1793 = vmul.f32 %v601, %v1665
        %v1794 = vmul.f32 %v602, %v1666
        %v1795 = vmul.f32 %v603, %v1665
        %v1796 = vmul.f32 %v604, %v1666
        %v1797 = vmul.f32 %v605, %v1665
        %v1798 = vmul.f32 %v606, %v1666
        %v1807 = vrot.slane %v1791, 1
        %v1808 = vrot.slane %v1792, 1
        %v1809 = vsel %vm936, %v1807, %v1808
        %v1810 = vrot.slane %v1793, 1
        %v1811 = vrot.slane %v1794, 1
        %v1812 = vsel %vm936, %v1810, %v1811
        %v1813 = vrot.slane %v1795, 1
        %v1814 = vrot.slane %v1796, 1
        %v1815 = vsel %vm936, %v1813, %v1814
        %v1816 = vrot.slane %v1797, 1
        %v1817 = vrot.slane %v1798, 1
        %v1818 = vsel %vm936, %v1816, %v1817
        %v1823 = vadd.f32 %v1787, %v1809
        %v1824 = vadd.f32 %v1788, %v1812
        %v1825 = vadd.f32 %v1789, %v1815
        %v1826 = vadd.f32 %v1790, %v1818
        %v1829 = vrot.slane %v1667, 7
        %v1830 = vrot.slane %v1668, 7
        %v1831 = vsel %vm524, %v1829, %v1830
        %v1834 = vmul.f32 %v566, %v1829
        %v1835 = vmul.f32 %v567, %v1831
        %v1836 = vmul.f32 %v568, %v1829
        %v1837 = vmul.f32 %v569, %v1831
        %v1838 = vmul.f32 %v570, %v1829
        %v1839 = vmul.f32 %v571, %v1831
        %v1840 = vmul.f32 %v572, %v1829
        %v1841 = vmul.f32 %v573, %v1831
        %vm1850 = vcmask 1045504
        %v1851 = vrot.slane %v1834, 2
        %v1852 = vrot.slane %v1835, 2
        %v1853 = vsel %vm1850, %v1851, %v1852
        %v1854 = vrot.slane %v1836, 2
        %v1855 = vrot.slane %v1837, 2
        %v1856 = vsel %vm1850, %v1854, %v1855
        %v1857 = vrot.slane %v1838, 2
        %v1858 = vrot.slane %v1839, 2
        %v1859 = vsel %vm1850, %v1857, %v1858
        %v1860 = vrot.slane %v1840, 2
        %v1861 = vrot.slane %v1841, 2
        %v1862 = vsel %vm1850, %v1860, %v1861
        %v1867 = vadd.f32 %v1823, %v1853
        %v1868 = vadd.f32 %v1824, %v1856
        %v1869 = vadd.f32 %v1825, %v1859
        %v1870 = vadd.f32 %v1826, %v1862
        %v1873 = vrot.slane %v1669, 7
        %v1874 = vrot.slane %v1670, 7
        %v1875 = vsel %vm524, %v1873, %v1874
        %v1878 = vmul.f32 %v525, %v1873
        %v1879 = vmul.f32 %v529, %v1875
        %v1880 = vmul.f32 %v526, %v1873
        %v1881 = vmul.f32 %v530, %v1875
        %v1882 = vmul.f32 %v527, %v1873
        %v1883 = vmul.f32 %v531, %v1875
        %v1884 = vmul.f32 %v528, %v1873
        %v1885 = vmul.f32 %v532, %v1875
        %v1894 = vrot.slane %v1878, 2
        %v1895 = vrot.slane %v1879, 2
        %v1896 = vsel %vm1850, %v1894, %v1895
        %v1897 = vrot.slane %v1880, 2
        %v1898 = vrot.slane %v1881, 2
        %v1899 = vsel %vm1850, %v1897, %v1898
        %v1900 = vrot.slane %v1882, 2
        %v1901 = vrot.slane %v1883, 2
        %v1902 = vsel %vm1850, %v1900, %v1901
        %v1903 = vrot.slane %v1884, 2
        %v1904 = vrot.slane %v1885, 2
        %v1905 = vsel %vm1850, %v1903, %v1904
        %v1910 = vadd.f32 %v1867, %v1896
        %v1911 = vadd.f32 %v1868, %v1899
        %v1912 = vadd.f32 %v1869, %v1902
        %v1913 = vadd.f32 %v1870, %v1905
        %v1916 = vrot.slane %v1671, 7
        %v1917 = vrot.slane %v1672, 7
        %v1918 = vsel %vm524, %v1916, %v1917
        %v1921 = vmul.f32 %v599, %v1916
        %v1922 = vmul.f32 %v600, %v1918
        %v1923 = vmul.f32 %v601, %v1916
        %v1924 = vmul.f32 %v602, %v1918
        %v1925 = vmul.f32 %v603, %v1916
        %v1926 = vmul.f32 %v604, %v1918
        %v1927 = vmul.f32 %v605, %v1916
        %v1928 = vmul.f32 %v606, %v1918
        %v1937 = vrot.slane %v1921, 2
        %v1938 = vrot.slane %v1922, 2
        %v1939 = vsel %vm1850, %v1937, %v1938
        %v1940 = vrot.slane %v1923, 2
        %v1941 = vrot.slane %v1924, 2
        %v1942 = vsel %vm1850, %v1940, %v1941
        %v1943 = vrot.slane %v1925, 2
        %v1944 = vrot.slane %v1926, 2
        %v1945 = vsel %vm1850, %v1943, %v1944
        %v1946 = vrot.slane %v1927, 2
        %v1947 = vrot.slane %v1928, 2
        %v1948 = vsel %vm1850, %v1946, %v1947
        %v1953 = vadd.f32 %v1910, %v1939
        %v1954 = vadd.f32 %v1911, %v1942
        %v1955 = vadd.f32 %v1912, %v1945
        %v1956 = vadd.f32 %v1913, %v1948
        %v1961 = vperm.slane %v1673, 0
        %v1962 = vperm.slane %v1674, 0
        %v1963 = vperm.slane %v1675, 0
        %v1964 = vperm.slane %v1676, 0
        %1965 = vset.pattern.permute.xlu0 0
        %1966 = vperm.xlu0 %1965, %v1961
        %v1967 = vpop.permute.xlu0 %1966
        %1969 = vset.pattern.permute.xlu0 0
        %1970 = vperm.xlu0 %1969, %v1962
        %v1971 = vpop.permute.xlu0 %1970
        %1973 = vset.pattern.permute.xlu0 0
        %1974 = vperm.xlu0 %1973, %v1963
        %v1975 = vpop.permute.xlu0 %1974
        %1977 = vset.pattern.permute.xlu0 0
        %1978 = vperm.xlu0 %1977, %v1964
        %v1979 = vpop.permute.xlu0 %1978
        %v1981 = vmul.f32 %v525, %v1967
        %v1982 = vmul.f32 %v529, %v1967
        %v1983 = vmul.f32 %v526, %v1971
        %v1984 = vmul.f32 %v530, %v1971
        %v1985 = vmul.f32 %v527, %v1975
        %v1986 = vmul.f32 %v531, %v1975
        %v1987 = vmul.f32 %v528, %v1979
        %v1988 = vmul.f32 %v532, %v1979
        %v1997 = vrot.slane %v1981, 1
        %v1998 = vrot.slane %v1982, 1
        %v1999 = vsel %vm936, %v1997, %v1998
        %v2000 = vrot.slane %v1983, 1
        %v2001 = vrot.slane %v1984, 1
        %v2002 = vsel %vm936, %v2000, %v2001
        %v2003 = vrot.slane %v1985, 1
        %v2004 = vrot.slane %v1986, 1
        %v2005 = vsel %vm936, %v2003, %v2004
        %v2006 = vrot.slane %v1987, 1
        %v2007 = vrot.slane %v1988, 1
        %v2008 = vsel %vm936, %v2006, %v2007
        %v2013 = vadd.f32 %v1953, %v1999
        %v2014 = vadd.f32 %v1954, %v2002
        %v2015 = vadd.f32 %v1955, %v2005
        %v2016 = vadd.f32 %v1956, %v2008
        %v2021 = vperm.slane %v1677, 0
        %v2022 = vperm.slane %v1678, 0
        %v2023 = vperm.slane %v1679, 0
        %v2024 = vperm.slane %v1680, 0
        %2025 = vset.pattern.permute.xlu0 0
        %2026 = vperm.xlu0 %2025, %v2021
        %v2027 = vpop.permute.xlu0 %2026
        %2029 = vset.pattern.permute.xlu0 0
        %2030 = vperm.xlu0 %2029, %v2022
        %v2031 = vpop.permute.xlu0 %2030
        %2033 = vset.pattern.permute.xlu0 0
        %2034 = vperm.xlu0 %2033, %v2023
        %v2035 = vpop.permute.xlu0 %2034
        %2037 = vset.pattern.permute.xlu0 0
        %2038 = vperm.xlu0 %2037, %v2024
        %v2039 = vpop.permute.xlu0 %2038
        %v2041 = vadd.f32 %v2013, %v2027
        %v2042 = vadd.f32 %v2014, %v2031
        %v2043 = vadd.f32 %v2015, %v2035
        %v2044 = vadd.f32 %v2016, %v2039
        %v2049 = vrot.slane %v2042, 7
        %vm2050 = vcmask 1041409
        %v2051 = vsel %vm2050, %v2049, %v2041
        %v2052 = vrot.slane %v2043, 6
        %vm2053 = vcmask 1042434
        %v2054 = vsel %vm2053, %v2052, %v2051
        %v2055 = vrot.slane %v2044, 5
        %vm2056 = vcmask 1043459
        %v2057 = vsel %vm2056, %v2055, %v2054
        %v2059 = vrot.slane %v2041, 1
        %v2060 = vsel %vm2050, %v2042, %v2059
        %v2061 = vrot.slane %v2043, 7
        %v2062 = vsel %vm2053, %v2061, %v2060
        %v2063 = vrot.slane %v2044, 6
        %v2064 = vsel %vm2056, %v2063, %v2062
        %2065 = vrot.lane.b32.xlu0 %v2064, 16
        %v2066 = vpop.permute.xlu0 %2065
        %v2068 = vrot.slane %v2041, 2
        %v2069 = vrot.slane %v2042, 1
        %v2070 = vsel %vm2050, %v2069, %v2068
        %v2071 = vsel %vm2053, %v2043, %v2070
        %v2072 = vrot.slane %v2044, 7
        %v2073 = vsel %vm2056, %v2072, %v2071
        %2074 = vrot.lane.b32.xlu0 %v2073, 32
        %v2075 = vpop.permute.xlu0 %2074
        %v2077 = vrot.slane %v2041, 3
        %v2078 = vrot.slane %v2042, 2
        %v2079 = vsel %vm2050, %v2078, %v2077
        %v2080 = vrot.slane %v2043, 1
        %v2081 = vsel %vm2053, %v2080, %v2079
        %v2082 = vsel %vm2056, %v2044, %v2081
        %2083 = vrot.lane.b32.xlu0 %v2082, 48
        %v2084 = vpop.permute.xlu0 %2083
        %v2086 = vrot.slane %v2041, 4
        %v2087 = vrot.slane %v2042, 3
        %v2088 = vsel %vm2050, %v2087, %v2086
        %v2089 = vrot.slane %v2043, 2
        %v2090 = vsel %vm2053, %v2089, %v2088
        %v2091 = vrot.slane %v2044, 1
        %v2092 = vsel %vm2056, %v2091, %v2090
        %2093 = vrot.lane.b32.xlu0 %v2092, 64
        %v2094 = vpop.permute.xlu0 %2093
        %v2096 = vrot.slane %v2041, 5
        %v2097 = vrot.slane %v2042, 4
        %v2098 = vsel %vm2050, %v2097, %v2096
        %v2099 = vrot.slane %v2043, 3
        %v2100 = vsel %vm2053, %v2099, %v2098
        %v2101 = vrot.slane %v2044, 2
        %v2102 = vsel %vm2056, %v2101, %v2100
        %2103 = vrot.lane.b32.xlu0 %v2102, 80
        %v2104 = vpop.permute.xlu0 %2103
        %v2106 = vrot.slane %v2041, 6
        %v2107 = vrot.slane %v2042, 5
        %v2108 = vsel %vm2050, %v2107, %v2106
        %v2109 = vrot.slane %v2043, 4
        %v2110 = vsel %vm2053, %v2109, %v2108
        %v2111 = vrot.slane %v2044, 3
        %v2112 = vsel %vm2056, %v2111, %v2110
        %2113 = vrot.lane.b32.xlu0 %v2112, 96
        %v2114 = vpop.permute.xlu0 %2113
        %v2116 = vrot.slane %v2041, 7
        %v2117 = vrot.slane %v2042, 6
        %v2118 = vsel %vm2050, %v2117, %v2116
        %v2119 = vrot.slane %v2043, 5
        %v2120 = vsel %vm2053, %v2119, %v2118
        %v2121 = vrot.slane %v2044, 4
        %v2122 = vsel %vm2056, %v2121, %v2120
        %2123 = vrot.lane.b32.xlu0 %v2122, 112
        %v2124 = vpop.permute.xlu0 %2123
        %v2126 = vsel %vm615, %v2057, %v2066
        %vm2127 = vcmask 261120
        %v2128 = vsel %vm2127, %v2126, %v2075
        %vm2129 = vcmask 392192
        %v2130 = vsel %vm2129, %v2128, %v2084
        %vm2131 = vcmask 523264
        %v2132 = vsel %vm2131, %v2130, %v2094
        %vm2133 = vcmask 654336
        %v2134 = vsel %vm2133, %v2132, %v2104
        %vm2135 = vcmask 785408
        %v2136 = vsel %vm2135, %v2134, %v2114
        %vm2137 = vcmask 916480
        %v2138 = vsel %vm2137, %v2136, %v2124
        %v2139 = vld [vmem:[%s5] sm:$0xf]
        %v2140 = vpack.c.bf16 %v2138, %v2138
        %v2141 = vld [vmem:[%s6] sm:$0xff]
        %2143 = vset.pattern.permute.xlu0 0
        %2144 = vperm.xlu0 %2143, %v2141
        %v2145 = vpop.permute.xlu0 %2144
        %vm2147 = vcmask 31744
        %v2149 = vsel %vm2147, %v2139, 0
        %vm2151 = vcmask 1041408
        %v2153 = vsel %vm2151, %v2140, 0
        %2155 = vmatpush.bf16.msra.mxu0 0
        %2156 = vmatpush.bf16.msra.mxu0 0
        %2157 = vmatpush.bf16.msra.mxu0 0
        %2158 = vmatpush.bf16.msra.mxu0 0
        %2159 = vmatpush.bf16.msra.mxu0 0
        %2160 = vmatpush.bf16.msra.mxu0 0
        %2161 = vmatpush.bf16.msra.mxu0 0
        %2162 = vmatpush.bf16.msra.mxu0 %v2153
        %2163 = vmatmul.bf16.gmra.mxu0 %v2149
        %v2164 = vpop.f32.mrf.mxu0
        %v2165 = vadd.f32 %v2145, %v2164
        %v2166 = vpop.f32.mrf.mxu0
        %2167 = vdwg.mxu0
        %v2168 = vmax.f32 %v2165, 0.0
        %v2169 = vld [vmem:[%s7] sm:$0x3]
        %v2170 = vpack.c.bf16 %v2168, %v2168
        %v2171 = vld [vmem:[%s8] sm:$0xf]
        %2173 = vset.pattern.permute.xlu0 0
        %2174 = vperm.xlu0 %2173, %v2171
        %v2175 = vpop.permute.xlu0 %2174
        %vm2177 = vcmask 64512
        %v2179 = vsel %vm2177, %v2169, 0
        %vm2181 = vcmask 1043456
        %v2183 = vsel %vm2181, %v2170, 0
        %2185 = vmatpush.bf16.msra.mxu0 0
        %2186 = vmatpush.bf16.msra.mxu0 0
        %2187 = vmatpush.bf16.msra.mxu0 0
        %2188 = vmatpush.bf16.msra.mxu0 0
        %2189 = vmatpush.bf16.msra.mxu0 0
        %2190 = vmatpush.bf16.msra.mxu0 0
        %2191 = vmatpush.bf16.msra.mxu0 0
        %2192 = vmatpush.bf16.msra.mxu0 %v2183
        %2193 = vmatmul.bf16.gmra.mxu0 %v2179
        %v2194 = vpop.f32.mrf.mxu0
        %v2195 = vadd.f32 %v2175, %v2194
        %v2196 = vpop.f32.mrf.mxu0
        %2197 = vdwg.mxu0
        %v2198 = vadd.f32 %v2138, %v2195
        %2199 = vst [vmem:[%s502] sm:$0xf] %v2198
        %p2200 = scmp.lt.s32.totalorder %s25, 1
        %s2201 = scalar_select %p2200, %s25, 1
        %p2202 = scmp.lt.s32.totalorder %s24, 1
        %s2203 = scalar_select %p2202, %s24, 1
        %s2204 = smul.addr %s2201, 2
        %s2205 = sadd.s32 %s2203, %s2204
        %s2206 = smul.addr %s2205, 4
        %s2207 = scalar_lea.vmem %s9, %s2206
        // Predicated region
        $region95: #{optimized_ipg_layer.1} parent=89 // pred_check
          %p2208 = pneg %p272
        $region96: #{optimized_ipg_layer.1} parent=89 // pred_check_branch
          %2210 = sbr.rel (%p2208) target = $region98
        $region97: #{optimized_ipg_layer.1} parent=89 // pred_region
          _
        $region98: #{optimized_ipg_layer.1} parent=89 // pred_fallthru
          _
      $region90: #{optimized_ipg_layer.1} parent=5 // pred_fallthru
        _
      %p2211 = scmp.le.s32.totalorder 2, %s15
      // Predicated region
      $region99: #{optimized_ipg_layer.1} parent=5 // pred_check
        %p2212 = pneg %p2211
      $region100: #{optimized_ipg_layer.1} parent=5 // pred_check_branch
        %2214 = sbr.rel (%p2212) target = $region102
      $region101: #{optimized_ipg_layer.1} parent=5 // pred_region
        %s2215 = ssub.s32 %s15, 2
        // Predicated region
        $region103: #{optimized_ipg_layer.1} parent=101 // pred_check
          %p2216 = pneg %p278
        $region104: #{optimized_ipg_layer.1} parent=101 // pred_check_branch
          %2218 = sbr.rel (%p2216) target = $region106
        $region105: #{optimized_ipg_layer.1} parent=101 // pred_region
          %p2219 = scmp.lt.s32.totalorder %s27, 1
          %s2220 = scalar_select %p2219, %s27, 1
          %p2221 = scmp.lt.s32.totalorder %s26, 1
          %s2222 = scalar_select %p2221, %s26, 1
          %s2223 = smul.addr %s2220, 2
          %s2224 = sadd.s32 %s2222, %s2223
          %s2225 = smul.addr %s2224, 4
          %s2226 = scalar_lea.vmem %s9, %s2225
        $region106: #{optimized_ipg_layer.1} parent=101 // pred_fallthru
          _
      $region102: #{optimized_ipg_layer.1} parent=5 // pred_fallthru
        _
    $region6: #{optimized_ipg_layer.1} parent=1 // loop_footer
      %s19 = sadd.s32 1, %s15
    $region7: #{optimized_ipg_layer.1} parent=1 // loop_footer_branch
      %14 = sbr.rel target = $region3
    $region8: #{optimized_ipg_layer.1} parent=1 // loop_exit
      _

</llo_original>
